<compile_context>
chip_gen: v7x
topology: tpu7x:2x2x1
jax: 0.10.0
libtpu: 0.0.40
codegen_flags: <defaults>
</compile_context>

<pallas_src>
import functools

import jax
import jax.numpy as jnp
from jax import lax
from jax.experimental import pallas as pl
from jax.experimental.pallas import tpu as pltpu

EPS = 1e-5


def _row_tile(h, cap=64):
    """Largest divisor of h that is <= cap, preferring sublane multiples of 8."""
    divs = [t for t in range(1, min(h, cap) + 1) if h % t == 0]
    mult8 = [t for t in divs if t % 8 == 0]
    return max(mult8) if mult8 else max(divs)


# ------------------------------- in-kernel helpers --------------------------- #

def _pad_ring(interior, ho, wo, cin):
    """Surround an (Ho, Wo, Cin) slab with a zero 1-pixel ring -> (Ho+2, Wo+2, Cin).

    Built with concatenations only (full-ref store afterwards), so no partial
    offset stores and no HBM-side jnp.pad."""
    zc = jnp.zeros((ho, 1, cin), jnp.float32)
    p = jnp.concatenate([zc, interior, zc], axis=1)           # (Ho, Wo+2, Cin)
    zr = jnp.zeros((1, wo + 2, cin), jnp.float32)
    return jnp.concatenate([zr, p, zr], axis=0)               # (Ho+2, Wo+2, Cin)


def _conv_rows(xp_ref, w_ref, row0, *, tr, wo, cin, cout):
    """3x3 'same' conv of `tr` output rows starting at `row0`, one deep-K matmul.

    xp_ref: (Ho+2, Wo+2, Cin) zero-padded sample resident in VMEM scratch.
    w_ref : (9*Cin, Cout), tap-major (dy outer, dx inner) to match the concat.
    Returns (tr*Wo, Cout) f32."""
    slabs = []
    for dy in range(3):
        xs = xp_ref[pl.ds(row0 + dy, tr), :, :]               # (tr, Wo+2, Cin)
        for dx in range(3):
            slabs.append(xs[:, dx:dx + wo, :])                # (tr, Wo, Cin)
    patch = jnp.concatenate(slabs, axis=-1)                   # (tr, Wo, 9*Cin)
    patch2d = patch.reshape(tr * wo, 9 * cin)                 # minor dim preserved
    return jnp.dot(patch2d, w_ref[...], preferred_element_type=jnp.float32)


# ----------------------------------- kernels --------------------------------- #

def _pool_conv_stats_kernel(x6_ref, w_ref, y_ref, ssum_ref, ssq_ref, xp_ref, *,
                            tr, ho, wo, cin, cout):
    """MaxPool2d(2) fused with conv1 + BN pass-1 partial statistics."""
    r = pl.program_id(1)

    @pl.when(r == 0)
    def _():
        x6 = x6_ref[0]                                        # (Ho, 2, Wo, 2, Cin)
        pooled = jnp.maximum(
            jnp.maximum(x6[:, 0, :, 0, :], x6[:, 0, :, 1, :]),
            jnp.maximum(x6[:, 1, :, 0, :], x6[:, 1, :, 1, :]))  # (Ho, Wo, Cin)
        xp_ref[...] = _pad_ring(pooled.astype(jnp.float32), ho, wo, cin)

    row0 = r * tr
    if tr % 8 == 0:
        row0 = pl.multiple_of(row0, 8)
    acc = _conv_rows(xp_ref, w_ref, row0, tr=tr, wo=wo, cin=cin, cout=cout)

    y_ref[...] = acc[None]                                    # (1, tr*Wo, Cout)
    ssum_ref[...] = jnp.sum(acc, axis=0, keepdims=True).reshape(1, 1, 1, cout)
    ssq_ref[...] = jnp.sum(acc * acc, axis=0, keepdims=True).reshape(1, 1, 1, cout)


def _bnrelu_conv_stats_kernel(y_ref, sc_ref, sh_ref, w_ref, o_ref,
                              ssum_ref, ssq_ref, xp_ref, *,
                              tr, ho, wo, cin, cout):
    """BN1(scale/shift)+ReLU fused into the input read of conv2 + BN2 stats."""
    r = pl.program_id(1)

    @pl.when(r == 0)
    def _():
        a = jnp.maximum(y_ref[0] * sc_ref[...] + sh_ref[...], 0.0)  # (Ho*Wo, Cin)
        xp_ref[...] = _pad_ring(a.reshape(ho, wo, cin), ho, wo, cin)

    row0 = r * tr
    if tr % 8 == 0:
        row0 = pl.multiple_of(row0, 8)
    acc = _conv_rows(xp_ref, w_ref, row0, tr=tr, wo=wo, cin=cin, cout=cout)

    o_ref[...] = acc[None]
    ssum_ref[...] = jnp.sum(acc, axis=0, keepdims=True).reshape(1, 1, 1, cout)
    ssq_ref[...] = jnp.sum(acc * acc, axis=0, keepdims=True).reshape(1, 1, 1, cout)


def _bn_relu_kernel(y_ref, sc_ref, sh_ref, o_ref):
    """Final BN pass-2 + ReLU: y*scale + shift, clamp at 0."""
    o_ref[...] = jnp.maximum(
        y_ref[...] * sc_ref[...][None] + sh_ref[...][None], 0.0
    ).astype(o_ref.dtype)


# ----------------------------------- wrapper --------------------------------- #

def _bn_fold(ssum, ssq, gamma, beta, m):
    """Finalize training-mode BN stats (biased var) and fold gamma/beta."""
    mean = jnp.sum(ssum, axis=(0, 1, 2)) / m
    var = jnp.sum(ssq, axis=(0, 1, 2)) / m - mean * mean
    inv = lax.rsqrt(var + EPS)
    scale = gamma.astype(jnp.float32) * inv
    shift = beta.astype(jnp.float32) - mean * scale
    return scale, shift


def down_block(x_nchw, params):
    """DownBlock forward. x_nchw: (N, Cin, H, W) -> (N, Cout, H//2, W//2)."""
    w1, g1, b1, w2, g2, b2 = params
    N, Cin, H, W = x_nchw.shape
    assert H % 2 == 0 and W % 2 == 0
    Ho, Wo = H // 2, W // 2
    C1, C2 = w1.shape[0], w2.shape[0]
    tr = _row_tile(Ho)
    nrt = Ho // tr
    m = N * Ho * Wo

    # NCHW -> NHWC, then a free contiguous split exposing the 2x2 pool pairs.
    x = jnp.transpose(x_nchw, (0, 2, 3, 1))
    x6 = x.reshape(N, Ho, 2, Wo, 2, Cin)

    # PyTorch (Cout, Cin, kh, kw) -> (kh, kw, Cin, Cout) -> (9*Cin, Cout)
    # (tap-major layout matching the slab concatenation order inside the kernel)
    w1f = jnp.transpose(w1, (2, 3, 1, 0)).reshape(9 * Cin, C1)
    w2f = jnp.transpose(w2, (2, 3, 1, 0)).reshape(9 * C1, C2)

    cparams = pltpu.CompilerParams(
        dimension_semantics=("parallel", "arbitrary"),
        # Toy sizes need almost nothing; at production sizes derive this from
        # the per-generation VMEM budget (<=~96 MiB on v5e/v6e, <=~48 MiB v7x).
        vmem_limit_bytes=32 * 1024 * 1024)

    # ---- layer 1: MaxPool -> Conv -> (BN pass 1 stats), one fused call ----- #
    y1, s1, q1 = pl.pallas_call(
        functools.partial(_pool_conv_stats_kernel,
                          tr=tr, ho=Ho, wo=Wo, cin=Cin, cout=C1),
        out_shape=(jax.ShapeDtypeStruct((N, Ho * Wo, C1), jnp.float32),
                   jax.ShapeDtypeStruct((N, nrt, 1, C1), jnp.float32),
                   jax.ShapeDtypeStruct((N, nrt, 1, C1), jnp.float32)),
        grid=(N, nrt),
        in_specs=[pl.BlockSpec((1, Ho, 2, Wo, 2, Cin),
                               lambda n, r: (n, 0, 0, 0, 0, 0)),   # resident / revisited
                  pl.BlockSpec((9 * Cin, C1), lambda n, r: (0, 0))],
        out_specs=(pl.BlockSpec((1, tr * Wo, C1), lambda n, r: (n, r, 0)),
                   pl.BlockSpec((1, 1, 1, C1), lambda n, r: (n, r, 0, 0)),
                   pl.BlockSpec((1, 1, 1, C1), lambda n, r: (n, r, 0, 0))),
        scratch_shapes=[pltpu.VMEM((Ho + 2, Wo + 2, Cin), jnp.float32)],
        compiler_params=cparams,
    )(x6, w1f)

    sc1, sh1 = _bn_fold(s1, q1, g1, b1, m)

    # ---- layer 2: (BN1+ReLU fused on read) -> Conv -> (BN pass 1 stats) ---- #
    y2, s2, q2 = pl.pallas_call(
        functools.partial(_bnrelu_conv_stats_kernel,
                          tr=tr, ho=Ho, wo=Wo, cin=C1, cout=C2),
        out_shape=(jax.ShapeDtypeStruct((N, Ho * Wo, C2), jnp.float32),
                   jax.ShapeDtypeStruct((N, nrt, 1, C2), jnp.float32),
                   jax.ShapeDtypeStruct((N, nrt, 1, C2), jnp.float32)),
        grid=(N, nrt),
        in_specs=[pl.BlockSpec((1, Ho * Wo, C1), lambda n, r: (n, 0, 0)),  # resident
                  pl.BlockSpec((1, C1), lambda n, r: (0, 0)),
                  pl.BlockSpec((1, C1), lambda n, r: (0, 0)),
                  pl.BlockSpec((9 * C1, C2), lambda n, r: (0, 0))],
        out_specs=(pl.BlockSpec((1, tr * Wo, C2), lambda n, r: (n, r, 0)),
                   pl.BlockSpec((1, 1, 1, C2), lambda n, r: (n, r, 0, 0)),
                   pl.BlockSpec((1, 1, 1, C2), lambda n, r: (n, r, 0, 0))),
        scratch_shapes=[pltpu.VMEM((Ho + 2, Wo + 2, C1), jnp.float32)],
        compiler_params=cparams,
    )(y1, sc1.reshape(1, C1), sh1.reshape(1, C1), w2f)

    sc2, sh2 = _bn_fold(s2, q2, g2, b2, m)

    # ---- final BN2 + ReLU (last op of the block; nothing to fuse it into) -- #
    out = pl.pallas_call(
        _bn_relu_kernel,
        out_shape=jax.ShapeDtypeStruct((N, Ho * Wo, C2), jnp.float32),
        grid=(N, nrt),
        in_specs=[pl.BlockSpec((1, tr * Wo, C2), lambda n, r: (n, r, 0)),
                  pl.BlockSpec((1, C2), lambda n, r: (0, 0)),
                  pl.BlockSpec((1, C2), lambda n, r: (0, 0))],
        out_specs=pl.BlockSpec((1, tr * Wo, C2), lambda n, r: (n, r, 0)),
        compiler_params=pltpu.CompilerParams(
            dimension_semantics=("parallel", "parallel")),
    )(y2, sc2.reshape(1, C2), sh2.reshape(1, C2))

    out = out.reshape(N, Ho, Wo, C2)
    return jnp.transpose(out, (0, 3, 1, 2))                   # NHWC -> NCHW


# ------------------------------ pure-JAX reference --------------------------- #

def _ref_down_block(x_nchw, params):
    w1, g1, b1, w2, g2, b2 = params
    x = jnp.transpose(x_nchw, (0, 2, 3, 1))
    x = lax.reduce_window(x, -jnp.inf, lax.max, (1, 2, 2, 1), (1, 2, 2, 1), "VALID")

    def conv_bn_relu(x, w, g, b):
        w_hwio = jnp.transpose(w, (2, 3, 1, 0))
        y = lax.conv_general_dilated(x, w_hwio, (1, 1), "SAME",
                                     dimension_numbers=("NHWC", "HWIO", "NHWC"))
        mean = jnp.mean(y, axis=(0, 1, 2), keepdims=True)
        var = jnp.mean((y - mean) ** 2, axis=(0, 1, 2), keepdims=True)
        y = (y - mean) * lax.rsqrt(var + EPS) * g + b
        return jnp.maximum(y, 0.0)

    x = conv_bn_relu(x, w1, g1, b1)
    x = conv_bn_relu(x, w2, g2, b2)
    return jnp.transpose(x, (0, 3, 1, 2))


# ----------------------------------- main ------------------------------------ #

if __name__ == "__main__":
    N, Cin, H, W = 2, 4, 16, 16
    Cout = 8

    key = jax.random.PRNGKey(0)
    kx, k1, k2 = jax.random.split(key, 3)
    x = jax.random.normal(kx, (N, Cin, H, W), jnp.float32)

    # Shapes match nn.Conv2d(bias=False) / nn.BatchNorm2d defaults.
    w1 = jax.random.normal(k1, (Cout, Cin, 3, 3), jnp.float32) * 0.1
    w2 = jax.random.normal(k2, (Cout, Cout, 3, 3), jnp.float32) * 0.1
    g1 = jnp.ones((Cout,), jnp.float32)
    b1 = jnp.zeros((Cout,), jnp.float32)
    g2 = jnp.ones((Cout,), jnp.float32)
    b2 = jnp.zeros((Cout,), jnp.float32)
    params = (w1, g1, b1, w2, g2, b2)

    out = jax.block_until_ready(jax.jit(down_block)(x, params))
    assert out.shape == (N, Cout, H // 2, W // 2), out.shape

    ref = jax.block_until_ready(_ref_down_block(x, params))
    assert jnp.allclose(out, ref, atol=1e-4, rtol=1e-4), "mismatch vs JAX reference"

    print("KERNEL_OK")
</pallas_src>

<mosaic_0001>
module attributes {stable_mosaic.version = 11 : i64} {
  func.func @_pool_conv_stats_kernel(%arg0: i32, %arg1: i32, %arg2: memref<1x8x2x8x2x4xf32, #tpu.memory_space<vmem>>, %arg3: memref<36x8xf32, #tpu.memory_space<vmem>>, %arg4: memref<1x64x8xf32, #tpu.memory_space<vmem>>, %arg5: memref<1x1x1x8xf32, #tpu.memory_space<vmem>>, %arg6: memref<1x1x1x8xf32, #tpu.memory_space<vmem>>, %arg7: memref<10x10x4xf32, #tpu.memory_space<vmem>>) attributes {dimension_semantics = [#tpu.dimension_semantics<parallel>, #tpu.dimension_semantics<arbitrary>], iteration_bounds = array<i64: 2, 1>, scalar_prefetch = 0 : i64, scratch_operands = 1 : i64, tpu.core_type = #tpu.core_type<tc>, window_params = [{transform_indices = @transform_0, window_bounds = array<i64: 1, 8, 2, 8, 2, 4>}, {pipeline_mode = #tpu.pipeline_mode<synchronous>, transform_indices = @transform_1, window_bounds = array<i64: 36, 8>}, {transform_indices = @transform_2, window_bounds = array<i64: 1, 64, 8>}, {transform_indices = @transform_3, window_bounds = array<i64: 1, 1, 1, 8>}, {transform_indices = @transform_4, window_bounds = array<i64: 1, 1, 1, 8>}]} {
    %c0_i32 = arith.constant 0 : i32
    %0 = arith.cmpi eq, %arg1, %c0_i32 : i32
    %1 = arith.extui %0 : i1 to i32
    %c0_i32_0 = arith.constant 0 : i32
    %2 = arith.cmpi ne, %1, %c0_i32_0 : i32
    scf.if %2 {
      %c0_22 = arith.constant 0 : index
      %c0_23 = arith.constant 0 : index
      %c0_24 = arith.constant 0 : index
      %c0_25 = arith.constant 0 : index
      %c0_26 = arith.constant 0 : index
      %c0_27 = arith.constant 0 : index
      %38 = vector.load %arg2[%c0_22, %c0_23, %c0_24, %c0_25, %c0_26, %c0_27] : memref<1x8x2x8x2x4xf32, #tpu.memory_space<vmem>>, vector<1x8x2x8x2x4xf32>
      %39 = vector.shape_cast %38 : vector<1x8x2x8x2x4xf32> to vector<8x2x8x2x4xf32>
      %40 = vector.extract_strided_slice %39 {offsets = [0, 0, 0, 0, 0], sizes = [8, 1, 8, 1, 4], strides = [1, 1, 1, 1, 1]} : vector<8x2x8x2x4xf32> to vector<8x1x8x1x4xf32>
      %41 = vector.shape_cast %40 : vector<8x1x8x1x4xf32> to vector<8x8x4xf32>
      %42 = vector.extract_strided_slice %39 {offsets = [0, 0, 0, 1, 0], sizes = [8, 1, 8, 1, 4], strides = [1, 1, 1, 1, 1]} : vector<8x2x8x2x4xf32> to vector<8x1x8x1x4xf32>
      %43 = vector.shape_cast %42 : vector<8x1x8x1x4xf32> to vector<8x8x4xf32>
      %44 = arith.maximumf %41, %43 : vector<8x8x4xf32>
      %45 = vector.extract_strided_slice %39 {offsets = [0, 1, 0, 0, 0], sizes = [8, 1, 8, 1, 4], strides = [1, 1, 1, 1, 1]} : vector<8x2x8x2x4xf32> to vector<8x1x8x1x4xf32>
      %46 = vector.shape_cast %45 : vector<8x1x8x1x4xf32> to vector<8x8x4xf32>
      %47 = vector.extract_strided_slice %39 {offsets = [0, 1, 0, 1, 0], sizes = [8, 1, 8, 1, 4], strides = [1, 1, 1, 1, 1]} : vector<8x2x8x2x4xf32> to vector<8x1x8x1x4xf32>
      %48 = vector.shape_cast %47 : vector<8x1x8x1x4xf32> to vector<8x8x4xf32>
      %49 = arith.maximumf %46, %48 : vector<8x8x4xf32>
      %50 = arith.maximumf %44, %49 : vector<8x8x4xf32>
      %cst_28 = arith.constant 0.000000e+00 : f32
      %51 = vector.broadcast %cst_28 : f32 to vector<8x1x4xf32>
      %52 = tpu.concatenate %51, %50, %51 in 1 : vector<8x1x4xf32>, vector<8x8x4xf32>, vector<8x1x4xf32> -> vector<8x10x4xf32>
      %cst_29 = arith.constant 0.000000e+00 : f32
      %53 = vector.broadcast %cst_29 : f32 to vector<1x10x4xf32>
      %54 = tpu.concatenate %53, %52, %53 in 0 : vector<1x10x4xf32>, vector<8x10x4xf32>, vector<1x10x4xf32> -> vector<10x10x4xf32>
      %c0_30 = arith.constant 0 : index
      %c0_31 = arith.constant 0 : index
      %c0_32 = arith.constant 0 : index
      %55 = vector.load %arg7[%c0_30, %c0_31, %c0_32] : memref<10x10x4xf32, #tpu.memory_space<vmem>>, vector<10x10x4xf32>
      tpu.vector_store %arg7[%c0_30, %c0_31, %c0_32], %54 {strides = array<i32>} : memref<10x10x4xf32, #tpu.memory_space<vmem>>, vector<10x10x4xf32>,
    } else {
    }
    %c8_i32 = arith.constant 8 : i32
    %3 = arith.muli %arg1, %c8_i32 : i32
    %4 = tpu.assume_multiple %3, 8 : i32
    %c0_i32_1 = arith.constant 0 : i32
    %5 = arith.addi %4, %c0_i32_1 : i32
    %6 = arith.index_cast %5 : i32 to index
    %c0 = arith.constant 0 : index
    %c0_2 = arith.constant 0 : index
    %7 = vector.load %arg7[%6, %c0, %c0_2] : memref<10x10x4xf32, #tpu.memory_space<vmem>>, vector<8x10x4xf32>
    %8 = vector.extract_strided_slice %7 {offsets = [0, 0, 0], sizes = [8, 8, 4], strides = [1, 1, 1]} : vector<8x10x4xf32> to vector<8x8x4xf32>
    %9 = vector.extract_strided_slice %7 {offsets = [0, 1, 0], sizes = [8, 8, 4], strides = [1, 1, 1]} : vector<8x10x4xf32> to vector<8x8x4xf32>
    %10 = vector.extract_strided_slice %7 {offsets = [0, 2, 0], sizes = [8, 8, 4], strides = [1, 1, 1]} : vector<8x10x4xf32> to vector<8x8x4xf32>
    %c1_i32 = arith.constant 1 : i32
    %11 = arith.addi %4, %c1_i32 : i32
    %12 = arith.index_cast %11 : i32 to index
    %c0_3 = arith.constant 0 : index
    %c0_4 = arith.constant 0 : index
    %13 = vector.load %arg7[%12, %c0_3, %c0_4] : memref<10x10x4xf32, #tpu.memory_space<vmem>>, vector<8x10x4xf32>
    %14 = vector.extract_strided_slice %13 {offsets = [0, 0, 0], sizes = [8, 8, 4], strides = [1, 1, 1]} : vector<8x10x4xf32> to vector<8x8x4xf32>
    %15 = vector.extract_strided_slice %13 {offsets = [0, 1, 0], sizes = [8, 8, 4], strides = [1, 1, 1]} : vector<8x10x4xf32> to vector<8x8x4xf32>
    %16 = vector.extract_strided_slice %13 {offsets = [0, 2, 0], sizes = [8, 8, 4], strides = [1, 1, 1]} : vector<8x10x4xf32> to vector<8x8x4xf32>
    %c2_i32 = arith.constant 2 : i32
    %17 = arith.addi %4, %c2_i32 : i32
    %18 = arith.index_cast %17 : i32 to index
    %c0_5 = arith.constant 0 : index
    %c0_6 = arith.constant 0 : index
    %19 = vector.load %arg7[%18, %c0_5, %c0_6] : memref<10x10x4xf32, #tpu.memory_space<vmem>>, vector<8x10x4xf32>
    %20 = vector.extract_strided_slice %19 {offsets = [0, 0, 0], sizes = [8, 8, 4], strides = [1, 1, 1]} : vector<8x10x4xf32> to vector<8x8x4xf32>
    %21 = vector.extract_strided_slice %19 {offsets = [0, 1, 0], sizes = [8, 8, 4], strides = [1, 1, 1]} : vector<8x10x4xf32> to vector<8x8x4xf32>
    %22 = vector.extract_strided_slice %19 {offsets = [0, 2, 0], sizes = [8, 8, 4], strides = [1, 1, 1]} : vector<8x10x4xf32> to vector<8x8x4xf32>
    %23 = tpu.concatenate %8, %9, %10, %14, %15, %16, %20, %21, %22 in 2 : vector<8x8x4xf32>, vector<8x8x4xf32>, vector<8x8x4xf32>, vector<8x8x4xf32>, vector<8x8x4xf32>, vector<8x8x4xf32>, vector<8x8x4xf32>, vector<8x8x4xf32>, vector<8x8x4xf32> -> vector<8x8x36xf32>
    %24 = vector.shape_cast %23 : vector<8x8x36xf32> to vector<64x36xf32>
    %c0_7 = arith.constant 0 : index
    %c0_8 = arith.constant 0 : index
    %25 = vector.load %arg3[%c0_7, %c0_8] : memref<36x8xf32, #tpu.memory_space<vmem>>, vector<36x8xf32>
    %cst = arith.constant dense<0.000000e+00> : vector<64x8xf32>
    %26 = tpu.matmul %24, %25, %cst {dimension_numbers = #tpu.dot_dimension_numbers<[1], [0], [0], [1], [0, 0, 1, 1], [], []>} : vector<64x36xf32>, vector<36x8xf32>, vector<64x8xf32> -> vector<64x8xf32>
    %27 = vector.shape_cast %26 : vector<64x8xf32> to vector<1x64x8xf32>
    %c0_9 = arith.constant 0 : index
    %c0_10 = arith.constant 0 : index
    %c0_11 = arith.constant 0 : index
    %28 = vector.load %arg4[%c0_9, %c0_10, %c0_11] : memref<1x64x8xf32, #tpu.memory_space<vmem>>, vector<1x64x8xf32>
    tpu.vector_store %arg4[%c0_9, %c0_10, %c0_11], %27 {strides = array<i32>} : memref<1x64x8xf32, #tpu.memory_space<vmem>>, vector<1x64x8xf32>,
    %cst_12 = arith.constant dense<0.000000e+00> : vector<8xf32>
    %29 = vector.multi_reduction <add>, %26, %cst_12 [0] : vector<64x8xf32> to vector<8xf32>
    %30 = vector.shape_cast %29 : vector<8xf32> to vector<1x8xf32>
    %31 = vector.shape_cast %30 : vector<1x8xf32> to vector<1x1x1x8xf32>
    %c0_13 = arith.constant 0 : index
    %c0_14 = arith.constant 0 : index
    %c0_15 = arith.constant 0 : index
    %c0_16 = arith.constant 0 : index
    %32 = vector.load %arg5[%c0_13, %c0_14, %c0_15, %c0_16] : memref<1x1x1x8xf32, #tpu.memory_space<vmem>>, vector<1x1x1x8xf32>
    tpu.vector_store %arg5[%c0_13, %c0_14, %c0_15, %c0_16], %31 {strides = array<i32>} : memref<1x1x1x8xf32, #tpu.memory_space<vmem>>, vector<1x1x1x8xf32>,
    %33 = arith.mulf %26, %26 : vector<64x8xf32>
    %cst_17 = arith.constant dense<0.000000e+00> : vector<8xf32>
    %34 = vector.multi_reduction <add>, %33, %cst_17 [0] : vector<64x8xf32> to vector<8xf32>
    %35 = vector.shape_cast %34 : vector<8xf32> to vector<1x8xf32>
    %36 = vector.shape_cast %35 : vector<1x8xf32> to vector<1x1x1x8xf32>
    %c0_18 = arith.constant 0 : index
    %c0_19 = arith.constant 0 : index
    %c0_20 = arith.constant 0 : index
    %c0_21 = arith.constant 0 : index
    %37 = vector.load %arg6[%c0_18, %c0_19, %c0_20, %c0_21] : memref<1x1x1x8xf32, #tpu.memory_space<vmem>>, vector<1x1x1x8xf32>
    tpu.vector_store %arg6[%c0_18, %c0_19, %c0_20, %c0_21], %36 {strides = array<i32>} : memref<1x1x1x8xf32, #tpu.memory_space<vmem>>, vector<1x1x1x8xf32>,
    return
  }
  func.func @transform_0(%arg0: i32, %arg1: i32) -> (i32, i32, i32, i32, i32, i32) {
    %c0_i32 = arith.constant 0 : i32
    %c0_i32_0 = arith.constant 0 : i32
    %c0_i32_1 = arith.constant 0 : i32
    %c0_i32_2 = arith.constant 0 : i32
    %c0_i32_3 = arith.constant 0 : i32
    %c0_i32_4 = arith.constant 0 : i32
    return %arg0, %c0_i32, %c0_i32_0, %c0_i32_1, %c0_i32_2, %c0_i32_3 : i32, i32, i32, i32, i32, i32
  }
  func.func @transform_1(%arg0: i32, %arg1: i32) -> (i32, i32) {
    %c0_i32 = arith.constant 0 : i32
    %c0_i32_0 = arith.constant 0 : i32
    %c0_i32_1 = arith.constant 0 : i32
    return %c0_i32, %c0_i32_0 : i32, i32
  }
  func.func @transform_2(%arg0: i32, %arg1: i32) -> (i32, i32, i32) {
    %c0_i32 = arith.constant 0 : i32
    %c0_i32_0 = arith.constant 0 : i32
    return %arg0, %arg1, %c0_i32 : i32, i32, i32
  }
  func.func @transform_3(%arg0: i32, %arg1: i32) -> (i32, i32, i32, i32) {
    %c0_i32 = arith.constant 0 : i32
    %c0_i32_0 = arith.constant 0 : i32
    %c0_i32_1 = arith.constant 0 : i32
    return %arg0, %arg1, %c0_i32, %c0_i32_0 : i32, i32, i32, i32
  }
  func.func @transform_4(%arg0: i32, %arg1: i32) -> (i32, i32, i32, i32) {
    %c0_i32 = arith.constant 0 : i32
    %c0_i32_0 = arith.constant 0 : i32
    %c0_i32_1 = arith.constant 0 : i32
    return %arg0, %arg1, %c0_i32, %c0_i32_0 : i32, i32, i32, i32
  }
}

module attributes {stable_mosaic.version = 11 : i64} {
  func.func @_bnrelu_conv_stats_kernel(%arg0: i32, %arg1: i32, %arg2: memref<1x64x8xf32, #tpu.memory_space<vmem>>, %arg3: memref<1x8xf32, #tpu.memory_space<vmem>>, %arg4: memref<1x8xf32, #tpu.memory_space<vmem>>, %arg5: memref<72x8xf32, #tpu.memory_space<vmem>>, %arg6: memref<1x64x8xf32, #tpu.memory_space<vmem>>, %arg7: memref<1x1x1x8xf32, #tpu.memory_space<vmem>>, %arg8: memref<1x1x1x8xf32, #tpu.memory_space<vmem>>, %arg9: memref<10x10x8xf32, #tpu.memory_space<vmem>>) attributes {dimension_semantics = [#tpu.dimension_semantics<parallel>, #tpu.dimension_semantics<arbitrary>], iteration_bounds = array<i64: 2, 1>, scalar_prefetch = 0 : i64, scratch_operands = 1 : i64, tpu.core_type = #tpu.core_type<tc>, window_params = [{transform_indices = @transform_0, window_bounds = array<i64: 1, 64, 8>}, {pipeline_mode = #tpu.pipeline_mode<synchronous>, transform_indices = @transform_1, window_bounds = array<i64: 1, 8>}, {pipeline_mode = #tpu.pipeline_mode<synchronous>, transform_indices = @transform_2, window_bounds = array<i64: 1, 8>}, {pipeline_mode = #tpu.pipeline_mode<synchronous>, transform_indices = @transform_3, window_bounds = array<i64: 72, 8>}, {transform_indices = @transform_4, window_bounds = array<i64: 1, 64, 8>}, {transform_indices = @transform_5, window_bounds = array<i64: 1, 1, 1, 8>}, {transform_indices = @transform_6, window_bounds = array<i64: 1, 1, 1, 8>}]} {
    %c0_i32 = arith.constant 0 : i32
    %0 = arith.cmpi eq, %arg1, %c0_i32 : i32
    %1 = arith.extui %0 : i1 to i32
    %c0_i32_0 = arith.constant 0 : i32
    %2 = arith.cmpi ne, %1, %c0_i32_0 : i32
    scf.if %2 {
      %c0_22 = arith.constant 0 : index
      %c0_23 = arith.constant 0 : index
      %c0_24 = arith.constant 0 : index
      %38 = vector.load %arg2[%c0_22, %c0_23, %c0_24] : memref<1x64x8xf32, #tpu.memory_space<vmem>>, vector<1x64x8xf32>
      %39 = vector.shape_cast %38 : vector<1x64x8xf32> to vector<64x8xf32>
      %c0_25 = arith.constant 0 : index
      %c0_26 = arith.constant 0 : index
      %40 = vector.load %arg3[%c0_25, %c0_26] : memref<1x8xf32, #tpu.memory_space<vmem>>, vector<1x8xf32>
      %41 = vector.broadcast %40 : vector<1x8xf32> to vector<64x8xf32>
      %42 = arith.mulf %39, %41 : vector<64x8xf32>
      %c0_27 = arith.constant 0 : index
      %c0_28 = arith.constant 0 : index
      %43 = vector.load %arg4[%c0_27, %c0_28] : memref<1x8xf32, #tpu.memory_space<vmem>>, vector<1x8xf32>
      %44 = vector.broadcast %43 : vector<1x8xf32> to vector<64x8xf32>
      %45 = arith.addf %42, %44 : vector<64x8xf32>
      %cst_29 = arith.constant 0.000000e+00 : f32
      %46 = vector.broadcast %cst_29 : f32 to vector<64x8xf32>
      %47 = arith.maximumf %45, %46 : vector<64x8xf32>
      %48 = vector.shape_cast %47 : vector<64x8xf32> to vector<8x8x8xf32>
      %cst_30 = arith.constant 0.000000e+00 : f32
      %49 = vector.broadcast %cst_30 : f32 to vector<8x1x8xf32>
      %50 = tpu.concatenate %49, %48, %49 in 1 : vector<8x1x8xf32>, vector<8x8x8xf32>, vector<8x1x8xf32> -> vector<8x10x8xf32>
      %cst_31 = arith.constant 0.000000e+00 : f32
      %51 = vector.broadcast %cst_31 : f32 to vector<1x10x8xf32>
      %52 = tpu.concatenate %51, %50, %51 in 0 : vector<1x10x8xf32>, vector<8x10x8xf32>, vector<1x10x8xf32> -> vector<10x10x8xf32>
      %c0_32 = arith.constant 0 : index
      %c0_33 = arith.constant 0 : index
      %c0_34 = arith.constant 0 : index
      %53 = vector.load %arg9[%c0_32, %c0_33, %c0_34] : memref<10x10x8xf32, #tpu.memory_space<vmem>>, vector<10x10x8xf32>
      tpu.vector_store %arg9[%c0_32, %c0_33, %c0_34], %52 {strides = array<i32>} : memref<10x10x8xf32, #tpu.memory_space<vmem>>, vector<10x10x8xf32>,
    } else {
    }
    %c8_i32 = arith.constant 8 : i32
    %3 = arith.muli %arg1, %c8_i32 : i32
    %4 = tpu.assume_multiple %3, 8 : i32
    %c0_i32_1 = arith.constant 0 : i32
    %5 = arith.addi %4, %c0_i32_1 : i32
    %6 = arith.index_cast %5 : i32 to index
    %c0 = arith.constant 0 : index
    %c0_2 = arith.constant 0 : index
    %7 = vector.load %arg9[%6, %c0, %c0_2] : memref<10x10x8xf32, #tpu.memory_space<vmem>>, vector<8x10x8xf32>
    %8 = vector.extract_strided_slice %7 {offsets = [0, 0, 0], sizes = [8, 8, 8], strides = [1, 1, 1]} : vector<8x10x8xf32> to vector<8x8x8xf32>
    %9 = vector.extract_strided_slice %7 {offsets = [0, 1, 0], sizes = [8, 8, 8], strides = [1, 1, 1]} : vector<8x10x8xf32> to vector<8x8x8xf32>
    %10 = vector.extract_strided_slice %7 {offsets = [0, 2, 0], sizes = [8, 8, 8], strides = [1, 1, 1]} : vector<8x10x8xf32> to vector<8x8x8xf32>
    %c1_i32 = arith.constant 1 : i32
    %11 = arith.addi %4, %c1_i32 : i32
    %12 = arith.index_cast %11 : i32 to index
    %c0_3 = arith.constant 0 : index
    %c0_4 = arith.constant 0 : index
    %13 = vector.load %arg9[%12, %c0_3, %c0_4] : memref<10x10x8xf32, #tpu.memory_space<vmem>>, vector<8x10x8xf32>
    %14 = vector.extract_strided_slice %13 {offsets = [0, 0, 0], sizes = [8, 8, 8], strides = [1, 1, 1]} : vector<8x10x8xf32> to vector<8x8x8xf32>
    %15 = vector.extract_strided_slice %13 {offsets = [0, 1, 0], sizes = [8, 8, 8], strides = [1, 1, 1]} : vector<8x10x8xf32> to vector<8x8x8xf32>
    %16 = vector.extract_strided_slice %13 {offsets = [0, 2, 0], sizes = [8, 8, 8], strides = [1, 1, 1]} : vector<8x10x8xf32> to vector<8x8x8xf32>
    %c2_i32 = arith.constant 2 : i32
    %17 = arith.addi %4, %c2_i32 : i32
    %18 = arith.index_cast %17 : i32 to index
    %c0_5 = arith.constant 0 : index
    %c0_6 = arith.constant 0 : index
    %19 = vector.load %arg9[%18, %c0_5, %c0_6] : memref<10x10x8xf32, #tpu.memory_space<vmem>>, vector<8x10x8xf32>
    %20 = vector.extract_strided_slice %19 {offsets = [0, 0, 0], sizes = [8, 8, 8], strides = [1, 1, 1]} : vector<8x10x8xf32> to vector<8x8x8xf32>
    %21 = vector.extract_strided_slice %19 {offsets = [0, 1, 0], sizes = [8, 8, 8], strides = [1, 1, 1]} : vector<8x10x8xf32> to vector<8x8x8xf32>
    %22 = vector.extract_strided_slice %19 {offsets = [0, 2, 0], sizes = [8, 8, 8], strides = [1, 1, 1]} : vector<8x10x8xf32> to vector<8x8x8xf32>
    %23 = tpu.concatenate %8, %9, %10, %14, %15, %16, %20, %21, %22 in 2 : vector<8x8x8xf32>, vector<8x8x8xf32>, vector<8x8x8xf32>, vector<8x8x8xf32>, vector<8x8x8xf32>, vector<8x8x8xf32>, vector<8x8x8xf32>, vector<8x8x8xf32>, vector<8x8x8xf32> -> vector<8x8x72xf32>
    %24 = vector.shape_cast %23 : vector<8x8x72xf32> to vector<64x72xf32>
    %c0_7 = arith.constant 0 : index
    %c0_8 = arith.constant 0 : index
    %25 = vector.load %arg5[%c0_7, %c0_8] : memref<72x8xf32, #tpu.memory_space<vmem>>, vector<72x8xf32>
    %cst = arith.constant dense<0.000000e+00> : vector<64x8xf32>
    %26 = tpu.matmul %24, %25, %cst {dimension_numbers = #tpu.dot_dimension_numbers<[1], [0], [0], [1], [0, 0, 1, 1], [], []>} : vector<64x72xf32>, vector<72x8xf32>, vector<64x8xf32> -> vector<64x8xf32>
    %27 = vector.shape_cast %26 : vector<64x8xf32> to vector<1x64x8xf32>
    %c0_9 = arith.constant 0 : index
    %c0_10 = arith.constant 0 : index
    %c0_11 = arith.constant 0 : index
    %28 = vector.load %arg6[%c0_9, %c0_10, %c0_11] : memref<1x64x8xf32, #tpu.memory_space<vmem>>, vector<1x64x8xf32>
    tpu.vector_store %arg6[%c0_9, %c0_10, %c0_11], %27 {strides = array<i32>} : memref<1x64x8xf32, #tpu.memory_space<vmem>>, vector<1x64x8xf32>,
    %cst_12 = arith.constant dense<0.000000e+00> : vector<8xf32>
    %29 = vector.multi_reduction <add>, %26, %cst_12 [0] : vector<64x8xf32> to vector<8xf32>
    %30 = vector.shape_cast %29 : vector<8xf32> to vector<1x8xf32>
    %31 = vector.shape_cast %30 : vector<1x8xf32> to vector<1x1x1x8xf32>
    %c0_13 = arith.constant 0 : index
    %c0_14 = arith.constant 0 : index
    %c0_15 = arith.constant 0 : index
    %c0_16 = arith.constant 0 : index
    %32 = vector.load %arg7[%c0_13, %c0_14, %c0_15, %c0_16] : memref<1x1x1x8xf32, #tpu.memory_space<vmem>>, vector<1x1x1x8xf32>
    tpu.vector_store %arg7[%c0_13, %c0_14, %c0_15, %c0_16], %31 {strides = array<i32>} : memref<1x1x1x8xf32, #tpu.memory_space<vmem>>, vector<1x1x1x8xf32>,
    %33 = arith.mulf %26, %26 : vector<64x8xf32>
    %cst_17 = arith.constant dense<0.000000e+00> : vector<8xf32>
    %34 = vector.multi_reduction <add>, %33, %cst_17 [0] : vector<64x8xf32> to vector<8xf32>
    %35 = vector.shape_cast %34 : vector<8xf32> to vector<1x8xf32>
    %36 = vector.shape_cast %35 : vector<1x8xf32> to vector<1x1x1x8xf32>
    %c0_18 = arith.constant 0 : index
    %c0_19 = arith.constant 0 : index
    %c0_20 = arith.constant 0 : index
    %c0_21 = arith.constant 0 : index
    %37 = vector.load %arg8[%c0_18, %c0_19, %c0_20, %c0_21] : memref<1x1x1x8xf32, #tpu.memory_space<vmem>>, vector<1x1x1x8xf32>
    tpu.vector_store %arg8[%c0_18, %c0_19, %c0_20, %c0_21], %36 {strides = array<i32>} : memref<1x1x1x8xf32, #tpu.memory_space<vmem>>, vector<1x1x1x8xf32>,
    return
  }
  func.func @transform_0(%arg0: i32, %arg1: i32) -> (i32, i32, i32) {
    %c0_i32 = arith.constant 0 : i32
    %c0_i32_0 = arith.constant 0 : i32
    %c0_i32_1 = arith.constant 0 : i32
    return %arg0, %c0_i32, %c0_i32_0 : i32, i32, i32
  }
  func.func @transform_1(%arg0: i32, %arg1: i32) -> (i32, i32) {
    %c0_i32 = arith.constant 0 : i32
    %c0_i32_0 = arith.constant 0 : i32
    %c0_i32_1 = arith.constant 0 : i32
    return %c0_i32, %c0_i32_0 : i32, i32
  }
  func.func @transform_2(%arg0: i32, %arg1: i32) -> (i32, i32) {
    %c0_i32 = arith.constant 0 : i32
    %c0_i32_0 = arith.constant 0 : i32
    %c0_i32_1 = arith.constant 0 : i32
    return %c0_i32, %c0_i32_0 : i32, i32
  }
  func.func @transform_3(%arg0: i32, %arg1: i32) -> (i32, i32) {
    %c0_i32 = arith.constant 0 : i32
    %c0_i32_0 = arith.constant 0 : i32
    %c0_i32_1 = arith.constant 0 : i32
    return %c0_i32, %c0_i32_0 : i32, i32
  }
  func.func @transform_4(%arg0: i32, %arg1: i32) -> (i32, i32, i32) {
    %c0_i32 = arith.constant 0 : i32
    %c0_i32_0 = arith.constant 0 : i32
    return %arg0, %arg1, %c0_i32 : i32, i32, i32
  }
  func.func @transform_5(%arg0: i32, %arg1: i32) -> (i32, i32, i32, i32) {
    %c0_i32 = arith.constant 0 : i32
    %c0_i32_0 = arith.constant 0 : i32
    %c0_i32_1 = arith.constant 0 : i32
    return %arg0, %arg1, %c0_i32, %c0_i32_0 : i32, i32, i32, i32
  }
  func.func @transform_6(%arg0: i32, %arg1: i32) -> (i32, i32, i32, i32) {
    %c0_i32 = arith.constant 0 : i32
    %c0_i32_0 = arith.constant 0 : i32
    %c0_i32_1 = arith.constant 0 : i32
    return %arg0, %arg1, %c0_i32, %c0_i32_0 : i32, i32, i32, i32
  }
}

module attributes {stable_mosaic.version = 11 : i64} {
  func.func @_bn_relu_kernel(%arg0: i32, %arg1: i32, %arg2: memref<1x64x8xf32, #tpu.memory_space<vmem>>, %arg3: memref<1x8xf32, #tpu.memory_space<vmem>>, %arg4: memref<1x8xf32, #tpu.memory_space<vmem>>, %arg5: memref<1x64x8xf32, #tpu.memory_space<vmem>>) attributes {dimension_semantics = [#tpu.dimension_semantics<parallel>, #tpu.dimension_semantics<parallel>], iteration_bounds = array<i64: 2, 1>, scalar_prefetch = 0 : i64, scratch_operands = 0 : i64, tpu.core_type = #tpu.core_type<tc>, window_params = [{transform_indices = @transform_0, window_bounds = array<i64: 1, 64, 8>}, {pipeline_mode = #tpu.pipeline_mode<synchronous>, transform_indices = @transform_1, window_bounds = array<i64: 1, 8>}, {pipeline_mode = #tpu.pipeline_mode<synchronous>, transform_indices = @transform_2, window_bounds = array<i64: 1, 8>}, {transform_indices = @transform_3, window_bounds = array<i64: 1, 64, 8>}]} {
    %c0 = arith.constant 0 : index
    %c0_0 = arith.constant 0 : index
    %c0_1 = arith.constant 0 : index
    %0 = vector.load %arg2[%c0, %c0_0, %c0_1] : memref<1x64x8xf32, #tpu.memory_space<vmem>>, vector<1x64x8xf32>
    %c0_2 = arith.constant 0 : index
    %c0_3 = arith.constant 0 : index
    %1 = vector.load %arg3[%c0_2, %c0_3] : memref<1x8xf32, #tpu.memory_space<vmem>>, vector<1x8xf32>
    %2 = vector.shape_cast %1 : vector<1x8xf32> to vector<1x1x8xf32>
    %3 = vector.broadcast %2 : vector<1x1x8xf32> to vector<1x64x8xf32>
    %4 = arith.mulf %0, %3 : vector<1x64x8xf32>
    %c0_4 = arith.constant 0 : index
    %c0_5 = arith.constant 0 : index
    %5 = vector.load %arg4[%c0_4, %c0_5] : memref<1x8xf32, #tpu.memory_space<vmem>>, vector<1x8xf32>
    %6 = vector.shape_cast %5 : vector<1x8xf32> to vector<1x1x8xf32>
    %7 = vector.broadcast %6 : vector<1x1x8xf32> to vector<1x64x8xf32>
    %8 = arith.addf %4, %7 : vector<1x64x8xf32>
    %cst = arith.constant 0.000000e+00 : f32
    %9 = vector.broadcast %cst : f32 to vector<1x64x8xf32>
    %10 = arith.maximumf %8, %9 : vector<1x64x8xf32>
    %c0_6 = arith.constant 0 : index
    %c0_7 = arith.constant 0 : index
    %c0_8 = arith.constant 0 : index
    %11 = vector.load %arg5[%c0_6, %c0_7, %c0_8] : memref<1x64x8xf32, #tpu.memory_space<vmem>>, vector<1x64x8xf32>
    tpu.vector_store %arg5[%c0_6, %c0_7, %c0_8], %10 {strides = array<i32>} : memref<1x64x8xf32, #tpu.memory_space<vmem>>, vector<1x64x8xf32>,
    return
  }
  func.func @transform_0(%arg0: i32, %arg1: i32) -> (i32, i32, i32) {
    %c0_i32 = arith.constant 0 : i32
    %c0_i32_0 = arith.constant 0 : i32
    return %arg0, %arg1, %c0_i32 : i32, i32, i32
  }
  func.func @transform_1(%arg0: i32, %arg1: i32) -> (i32, i32) {
    %c0_i32 = arith.constant 0 : i32
    %c0_i32_0 = arith.constant 0 : i32
    %c0_i32_1 = arith.constant 0 : i32
    return %c0_i32, %c0_i32_0 : i32, i32
  }
  func.func @transform_2(%arg0: i32, %arg1: i32) -> (i32, i32) {
    %c0_i32 = arith.constant 0 : i32
    %c0_i32_0 = arith.constant 0 : i32
    %c0_i32_1 = arith.constant 0 : i32
    return %c0_i32, %c0_i32_0 : i32, i32
  }
  func.func @transform_3(%arg0: i32, %arg1: i32) -> (i32, i32, i32) {
    %c0_i32 = arith.constant 0 : i32
    %c0_i32_0 = arith.constant 0 : i32
    return %arg0, %arg1, %c0_i32 : i32, i32, i32
  }
}

</mosaic_0001>

<llo_original>
// kernel: down_block.5
$region0: #{down_block.5}
  #allocation0 [shape = 'u32[]', space=smem, size = 0x4, offset = 0x4, fixed_abs, tag = 'smem constant byte address 0x4 - core index']
  #allocation1 [shape = 'u32[144,128]{1,0:T(1,128)}', space=vmem, size = 0x12000, scoped, tag = 'internal scratch']
  %s0 = inlined_call_operand.vmem [shape: f32[2,64,8], index: 0, kind: input, shape index: {}]
  %s1 = inlined_call_operand.vmem [shape: f32[1,8], index: 1, kind: input, shape index: {}]
  %s2 = inlined_call_operand.vmem [shape: f32[1,8], index: 2, kind: input, shape index: {}]
  %s3 = inlined_call_operand.vmem [shape: f32[2,64,8], index: 3, kind: output, shape index: {}]
  %s4 = sld [smem:[#allocation0]]
  $region45: #{down_block.5} parent=0
    _
  %s6 = ssub.s32 1, %s4
  %s7 = scalar_select 0, %s6, %s4
  loop: start=0, step=1, limit=4
  $region2: #{down_block.5} parent=0 // loop_pre_header
    _
  $region3: #{down_block.5} parent=0 // loop_header
    %s9 = sphi 0, %s13
    %p10 = scmp.ge.s32.totalorder %s9, 4
    %s16 = sphi 0, %s28
    %s17 = sphi 0, %s24
    %s18 = sphi 0, %s16
    %s19 = sphi 0, %s17
    %s20 = sphi 0, %s18
    %s21 = sphi 0, %s19
    %s33 = sphi 0, %s35
    %s36 = sphi 0, %s33
    %s37 = sphi 0, %s36
    %s53 = sphi 0, %s37
    %s57 = sphi 0, %s57
    %s59 = sphi 0, %s57
    %s60 = sphi 0, %s59
    %s74 = sphi 0, %s60
    %s78 = sphi 0, %s78
    %s80 = sphi 0, %s78
    %s81 = sphi 0, %s80
    %s95 = sphi 0, %s81
    %s103 = sphi 0, %s105
    %s106 = sphi 0, %s103
    %s107 = sphi 0, %s106
    %s123 = sphi 0, %s107
  $region4: #{down_block.5} parent=0 // loop_header_branch
    %12 = sbr.rel (%p10) target = $region8
  $region5: #{down_block.5} parent=0 // loop_body
    %s14 = ssub.s32 %s9, 1
    %s15 = ssub.s32 %s9, 2
    %s22 = sadd.s32 1, %s17
    %p23 = scmp.ge.s32.totalorder %s22, 1
    %s24 = scalar_select %p23, 0, %s22
    %s25 = sadd.s32 1, %s16
    %s26 = scalar_select %p23, %s25, %s16
    %p27 = scmp.ge.s32.totalorder %s26, 2
    %s28 = scalar_select %p27, 0, %s26
    %s29 = ssub.s32 %s16, %s28
    %s30 = ssub.s32 %s17, %s24
    %s31 = sor.u32 %s29, %s30
    %p32 = scmp.eq.s32.totalorder %s31, 0
    %s34 = sadd.s32 %s33, 1
    %s35 = scalar_select %p32, %s33, %s34
    %p38 = pneg %p32
    %p39 = scmp.eq.s32.totalorder %s9, 1
    %p40 = por %p38, %p39
    %p41 = scmp.ne.s32.totalorder %s33, %s36
    %p42 = scmp.eq.s32.totalorder %s9, 0
    %p43 = por %p41, %p42
    %p44 = scmp.ne.s32.totalorder %s33, %s36
    %p45 = scmp.eq.s32.totalorder %s14, 1
    %p46 = por %p44, %p45
    %p47 = scmp.ne.s32.totalorder %s36, %s37
    %p48 = scmp.eq.s32.totalorder %s14, 0
    %p49 = por %p47, %p48
    %p50 = scmp.ne.s32.totalorder %s36, %s37
    %p51 = scmp.eq.s32.totalorder %s15, 1
    %p52 = por %p50, %p51
    %p54 = scmp.ne.s32.totalorder %s37, %s53
    %p55 = scmp.eq.s32.totalorder %s15, 0
    %p56 = por %p54, %p55
    %s58 = sadd.s32 %s57, 1
    %p61 = scmp.eq.s32.totalorder %s9, 1
    %p62 = scmp.ne.s32.totalorder %s57, %s59
    %p63 = scmp.eq.s32.totalorder %s9, 0
    %p64 = por %p62, %p63
    %p65 = scmp.ne.s32.totalorder %s57, %s59
    %p66 = scmp.eq.s32.totalorder %s14, 1
    %p67 = por %p65, %p66
    %p68 = scmp.ne.s32.totalorder %s59, %s60
    %p69 = scmp.eq.s32.totalorder %s14, 0
    %p70 = por %p68, %p69
    %p71 = scmp.ne.s32.totalorder %s59, %s60
    %p72 = scmp.eq.s32.totalorder %s15, 1
    %p73 = por %p71, %p72
    %p75 = scmp.ne.s32.totalorder %s60, %s74
    %p76 = scmp.eq.s32.totalorder %s15, 0
    %p77 = por %p75, %p76
    %s79 = sadd.s32 %s78, 1
    %p82 = scmp.eq.s32.totalorder %s9, 1
    %p83 = scmp.ne.s32.totalorder %s78, %s80
    %p84 = scmp.eq.s32.totalorder %s9, 0
    %p85 = por %p83, %p84
    %p86 = scmp.ne.s32.totalorder %s78, %s80
    %p87 = scmp.eq.s32.totalorder %s14, 1
    %p88 = por %p86, %p87
    %p89 = scmp.ne.s32.totalorder %s80, %s81
    %p90 = scmp.eq.s32.totalorder %s14, 0
    %p91 = por %p89, %p90
    %p92 = scmp.ne.s32.totalorder %s80, %s81
    %p93 = scmp.eq.s32.totalorder %s15, 1
    %p94 = por %p92, %p93
    %p96 = scmp.ne.s32.totalorder %s81, %s95
    %p97 = scmp.eq.s32.totalorder %s15, 0
    %p98 = por %p96, %p97
    %s99 = ssub.s32 %s16, %s28
    %s100 = ssub.s32 %s17, %s24
    %s101 = sor.u32 %s99, %s100
    %p102 = scmp.eq.s32.totalorder %s101, 0
    %s104 = sadd.s32 %s103, 1
    %s105 = scalar_select %p102, %s103, %s104
    %p108 = pneg %p102
    %p109 = scmp.eq.s32.totalorder %s9, 1
    %p110 = por %p108, %p109
    %p111 = scmp.ne.s32.totalorder %s103, %s106
    %p112 = scmp.eq.s32.totalorder %s9, 0
    %p113 = por %p111, %p112
    %p114 = scmp.ne.s32.totalorder %s103, %s106
    %p115 = scmp.eq.s32.totalorder %s14, 1
    %p116 = por %p114, %p115
    %p117 = scmp.ne.s32.totalorder %s106, %s107
    %p118 = scmp.eq.s32.totalorder %s14, 0
    %p119 = por %p117, %p118
    %p120 = scmp.ne.s32.totalorder %s106, %s107
    %p121 = scmp.eq.s32.totalorder %s15, 1
    %p122 = por %p120, %p121
    %p124 = scmp.ne.s32.totalorder %s107, %s123
    %p125 = scmp.eq.s32.totalorder %s15, 0
    %p126 = por %p124, %p125
    %p127 = scmp.le.s32.totalorder 1, %s9
    %p128 = scmp.lt.s32.totalorder %s9, 3
    %p129 = pnand %p127, %p128
    %p130 = pneg %p129
    // Predicated region
    $region9: #{down_block.5} parent=5 // pred_check
      _
    $region10: #{down_block.5} parent=5 // pred_check_branch
      %132 = sbr.rel (%p129) target = $region12
    $region11: #{down_block.5} parent=5 // pred_region
      %s133 = ssub.s32 %s9, 1
      // Predicated region
      $region13: #{down_block.5} parent=11 // pred_check
        %p134 = pneg %p70
      $region14: #{down_block.5} parent=11 // pred_check_branch
        %136 = sbr.rel (%p134) target = $region16
      $region15: #{down_block.5} parent=11 // pred_region
        _
      $region16: #{down_block.5} parent=11 // pred_fallthru
        _
      // Predicated region
      $region17: #{down_block.5} parent=11 // pred_check
        %p137 = pneg %p91
      $region18: #{down_block.5} parent=11 // pred_check_branch
        %139 = sbr.rel (%p137) target = $region20
      $region19: #{down_block.5} parent=11 // pred_region
        _
      $region20: #{down_block.5} parent=11 // pred_fallthru
        _
    $region12: #{down_block.5} parent=5 // pred_fallthru
      _
    %p140 = scmp.lt.s32.totalorder %s9, 2
    // Predicated region
    $region21: #{down_block.5} parent=5 // pred_check
      %p141 = pneg %p140
    $region22: #{down_block.5} parent=5 // pred_check_branch
      %143 = sbr.rel (%p141) target = $region24
    $region23: #{down_block.5} parent=5 // pred_region
      // Predicated region
      $region25: #{down_block.5} parent=23 // pred_check
        %p144 = pneg %p43
      $region26: #{down_block.5} parent=23 // pred_check_branch
        %146 = sbr.rel (%p144) target = $region28
      $region27: #{down_block.5} parent=23 // pred_region
        %s147 = smul.u32 8, %s17
        %p148 = scmp.lt.s32.totalorder %s16, 1
        %s149 = scalar_select %p148, %s16, 1
        %p150 = scmp.lt.s32.totalorder %s147, 7
        %s151 = scalar_select %p150, %s147, 7
        %s152 = smul.addr %s149, 8
        %s153 = sadd.s32 %s151, %s152
        %s154 = smul.addr %s153, 8
        %s155 = scalar_lea.vmem %s0, %s154
        %s156 = smul.u32 8, %s17
      $region28: #{down_block.5} parent=23 // pred_fallthru
        _
    $region24: #{down_block.5} parent=5 // pred_fallthru
      _
    %p157 = scmp.le.s32.totalorder 1, %s9
    %p158 = scmp.lt.s32.totalorder %s9, 3
    %p159 = pnand %p157, %p158
    %p160 = pneg %p159
    // Predicated region
    $region29: #{down_block.5} parent=5 // pred_check
      _
    $region30: #{down_block.5} parent=5 // pred_check_branch
      %162 = sbr.rel (%p159) target = $region32
    $region31: #{down_block.5} parent=5 // pred_region
      %s163 = ssub.s32 %s9, 1
      %s164 = smul.u32 8, %s19
      %p165 = scmp.lt.s32.totalorder %s18, 1
      %s166 = scalar_select %p165, %s18, 1
      %p167 = scmp.lt.s32.totalorder %s164, 7
      %s168 = scalar_select %p167, %s164, 7
      %s169 = smul.addr %s166, 8
      %s170 = sadd.s32 %s168, %s169
      %s171 = smul.addr %s170, 8
      %s172 = scalar_lea.vmem %s0, %s171
      %p173 = pneg %p49
      %p174 = pneg %p46
      %p175 = pneg %p70
      %p176 = pneg %p67
      %p177 = pneg %p91
      %p178 = pneg %p88
      %p179 = pneg %p119
      %p180 = pneg %p116
      %s181 = smul.u32 8, %s19
      %p182 = scmp.lt.s32.totalorder %s18, 1
      %s183 = scalar_select %p182, %s18, 1
      %p184 = scmp.lt.s32.totalorder %s181, 7
      %s185 = scalar_select %p184, %s181, 7
      %s186 = smul.addr %s183, 8
      %s187 = sadd.s32 %s185, %s186
      %s188 = smul.addr %s187, 8
      %s189 = scalar_lea.vmem %s3, %s188
      %s190 = smul.u32 8, %s19
      %p191 = scmp.lt.s32.totalorder %s18, 1
      %s192 = scalar_select %p191, %s18, 1
      %p193 = scmp.lt.s32.totalorder %s190, 7
      %s194 = scalar_select %p193, %s190, 7
      %s195 = smul.addr %s192, 8
      %s196 = sadd.s32 %s194, %s195
      %s197 = smul.addr %s196, 8
      %s198 = scalar_lea.vmem %s0, %s197
      %s199 = smul.u32 8, %s19
      %s200 = smul.u32 8, %s19
      %p201 = scmp.lt.s32.totalorder %s18, 1
      %s202 = scalar_select %p201, %s18, 1
      %p203 = scmp.lt.s32.totalorder %s200, 7
      %s204 = scalar_select %p203, %s200, 7
      %s205 = smul.addr %s202, 8
      %s206 = sadd.s32 %s204, %s205
      %s207 = smul.addr %s206, 8
      %s208 = scalar_lea.vmem %s3, %s207
      %s209 = smul.u32 8, %s19
      %v210 = vld [vmem:[%s198] sm:$0xff]
      %v211 = vld [vmem:[%s198 + $0x8] sm:$0xff]
      %v212 = vld [vmem:[%s198 + $0x10] sm:$0xff]
      %v213 = vld [vmem:[%s198 + $0x18] sm:$0xff]
      %v214 = vld [vmem:[%s198 + $0x20] sm:$0xff]
      %v215 = vld [vmem:[%s198 + $0x28] sm:$0xff]
      %v216 = vld [vmem:[%s198 + $0x30] sm:$0xff]
      %v217 = vld [vmem:[%s198 + $0x38] sm:$0xff]
      %v218 = vld [vmem:[%s1] sm:$0x1]
      %v220 = vlaneseq
      %v221 = vshrl.u32 %v220, 7
      %v222 = vsub.s32 0, %v221
      %v223 = vrot.slane %v218, %v222
      %v225 = vmul.f32 %v210, %v223
      %v226 = vmul.f32 %v211, %v223
      %v227 = vmul.f32 %v212, %v223
      %v228 = vmul.f32 %v213, %v223
      %v229 = vmul.f32 %v214, %v223
      %v230 = vmul.f32 %v215, %v223
      %v231 = vmul.f32 %v216, %v223
      %v232 = vmul.f32 %v217, %v223
      %v233 = vld [vmem:[%s2] sm:$0x1]
      %v235 = vlaneseq
      %v236 = vshrl.u32 %v235, 7
      %v237 = vsub.s32 0, %v236
      %v238 = vrot.slane %v233, %v237
      %v240 = vadd.f32 %v225, %v238
      %v241 = vadd.f32 %v226, %v238
      %v242 = vadd.f32 %v227, %v238
      %v243 = vadd.f32 %v228, %v238
      %v244 = vadd.f32 %v229, %v238
      %v245 = vadd.f32 %v230, %v238
      %v246 = vadd.f32 %v231, %v238
      %v247 = vadd.f32 %v232, %v238
      %v248 = vmax.f32 %v240, 0.0
      %v249 = vmax.f32 %v241, 0.0
      %v250 = vmax.f32 %v242, 0.0
      %v251 = vmax.f32 %v243, 0.0
      %v252 = vmax.f32 %v244, 0.0
      %v253 = vmax.f32 %v245, 0.0
      %v254 = vmax.f32 %v246, 0.0
      %v255 = vmax.f32 %v247, 0.0
      %vm256 = vcmask 64512
      %257 = vst.msk [vmem:[%s208] sm:$0xff] %vm256, %v248
      %258 = vst.msk [vmem:[%s208 + $0x8] sm:$0xff] %vm256, %v249
      %259 = vst.msk [vmem:[%s208 + $0x10] sm:$0xff] %vm256, %v250
      %260 = vst.msk [vmem:[%s208 + $0x18] sm:$0xff] %vm256, %v251
      %261 = vst.msk [vmem:[%s208 + $0x20] sm:$0xff] %vm256, %v252
      %262 = vst.msk [vmem:[%s208 + $0x28] sm:$0xff] %vm256, %v253
      %263 = vst.msk [vmem:[%s208 + $0x30] sm:$0xff] %vm256, %v254
      %264 = vst.msk [vmem:[%s208 + $0x38] sm:$0xff] %vm256, %v255
      %s265 = smul.u32 8, %s19
      %p266 = scmp.lt.s32.totalorder %s18, 1
      %s267 = scalar_select %p266, %s18, 1
      %p268 = scmp.lt.s32.totalorder %s265, 7
      %s269 = scalar_select %p268, %s265, 7
      %s270 = smul.addr %s267, 8
      %s271 = sadd.s32 %s269, %s270
      %s272 = smul.addr %s271, 8
      %s273 = scalar_lea.vmem %s3, %s272
      // Predicated region
      $region33: #{down_block.5} parent=31 // pred_check
        %p274 = pneg %p116
      $region34: #{down_block.5} parent=31 // pred_check_branch
        %276 = sbr.rel (%p274) target = $region36
      $region35: #{down_block.5} parent=31 // pred_region
        %s277 = smul.u32 8, %s19
      $region36: #{down_block.5} parent=31 // pred_fallthru
        _
    $region32: #{down_block.5} parent=5 // pred_fallthru
      _
    %p278 = scmp.le.s32.totalorder 2, %s9
    // Predicated region
    $region37: #{down_block.5} parent=5 // pred_check
      %p279 = pneg %p278
    $region38: #{down_block.5} parent=5 // pred_check_branch
      %281 = sbr.rel (%p279) target = $region40
    $region39: #{down_block.5} parent=5 // pred_region
      %s282 = ssub.s32 %s9, 2
      // Predicated region
      $region41: #{down_block.5} parent=39 // pred_check
        %p283 = pneg %p122
      $region42: #{down_block.5} parent=39 // pred_check_branch
        %285 = sbr.rel (%p283) target = $region44
      $region43: #{down_block.5} parent=39 // pred_region
        %s286 = smul.u32 8, %s21
        %p287 = scmp.lt.s32.totalorder %s20, 1
        %s288 = scalar_select %p287, %s20, 1
        %p289 = scmp.lt.s32.totalorder %s286, 7
        %s290 = scalar_select %p289, %s286, 7
        %s291 = smul.addr %s288, 8
        %s292 = sadd.s32 %s290, %s291
        %s293 = smul.addr %s292, 8
        %s294 = scalar_lea.vmem %s3, %s293
      $region44: #{down_block.5} parent=39 // pred_fallthru
        _
    $region40: #{down_block.5} parent=5 // pred_fallthru
      _
  $region6: #{down_block.5} parent=0 // loop_footer
    %s13 = sadd.s32 1, %s9
  $region7: #{down_block.5} parent=0 // loop_footer_branch
    %8 = sbr.rel target = $region3
  $region8: #{down_block.5} parent=0 // loop_exit
    _

// kernel: down_block.4
$region0: #{down_block.4}
  #allocation0 [shape = 'u32[]', space=smem, size = 0x4, offset = 0x4, fixed_abs, tag = 'smem constant byte address 0x4 - core index']
  #allocation1 [shape = 'u32[144,128]{1,0:T(1,128)}', space=vmem, size = 0x12000, scoped, tag = 'internal scratch']
  #allocation2 [shape = 'f32[10,10,8]{2,1,0:T(8,128)}', space=vmem, size = 0x14000, scoped, tag = 'scratch operand']
  %s0 = inlined_call_operand.vmem [shape: f32[2,64,8], index: 0, kind: input, shape index: {}]
  %s1 = inlined_call_operand.vmem [shape: f32[1,8], index: 1, kind: input, shape index: {}]
  %s2 = inlined_call_operand.vmem [shape: f32[1,8], index: 2, kind: input, shape index: {}]
  %s3 = inlined_call_operand.vmem [shape: f32[72,8], index: 3, kind: input, shape index: {}]
  %s4 = inlined_call_operand.vmem [shape: f32[2,64,8], index: 4, kind: output, shape index: {0}]
  %s5 = inlined_call_operand.vmem [shape: f32[2,1,1,8], index: 5, kind: output, shape index: {1}]
  %s6 = inlined_call_operand.vmem [shape: f32[2,1,1,8], index: 6, kind: output, shape index: {2}]
  %7 = xla_tuple %s4, %s5, %s6
  %s8 = sld [smem:[#allocation0]]
  $region69: #{down_block.4} parent=0
    _
  %s10 = ssub.s32 1, %s8
  %s11 = scalar_select 0, %s10, %s8
  loop: start=0, step=1, limit=4
  $region2: #{down_block.4} parent=0 // loop_pre_header
    _
  $region3: #{down_block.4} parent=0 // loop_header
    %s13 = sphi 0, %s17
    %p14 = scmp.ge.s32.totalorder %s13, 4
    %s20 = sphi 0, %s32
    %s21 = sphi 0, %s28
    %s22 = sphi 0, %s20
    %s23 = sphi 0, %s21
    %s24 = sphi 0, %s22
    %s25 = sphi 0, %s23
    %s35 = sphi 0, %s37
    %s38 = sphi 0, %s35
    %s39 = sphi 0, %s38
    %s55 = sphi 0, %s39
    %s59 = sphi 0, %s59
    %s61 = sphi 0, %s59
    %s62 = sphi 0, %s61
    %s76 = sphi 0, %s62
    %s80 = sphi 0, %s80
    %s82 = sphi 0, %s80
    %s83 = sphi 0, %s82
    %s97 = sphi 0, %s83
    %s101 = sphi 0, %s101
    %s103 = sphi 0, %s101
    %s104 = sphi 0, %s103
    %s118 = sphi 0, %s104
    %s126 = sphi 0, %s128
    %s129 = sphi 0, %s126
    %s130 = sphi 0, %s129
    %s146 = sphi 0, %s130
    %s154 = sphi 0, %s156
    %s157 = sphi 0, %s154
    %s158 = sphi 0, %s157
    %s174 = sphi 0, %s158
    %s182 = sphi 0, %s184
    %s185 = sphi 0, %s182
    %s186 = sphi 0, %s185
    %s202 = sphi 0, %s186
  $region4: #{down_block.4} parent=0 // loop_header_branch
    %16 = sbr.rel (%p14) target = $region8
  $region5: #{down_block.4} parent=0 // loop_body
    %s18 = ssub.s32 %s13, 1
    %s19 = ssub.s32 %s13, 2
    %s26 = sadd.s32 1, %s21
    %p27 = scmp.ge.s32.totalorder %s26, 1
    %s28 = scalar_select %p27, 0, %s26
    %s29 = sadd.s32 1, %s20
    %s30 = scalar_select %p27, %s29, %s20
    %p31 = scmp.ge.s32.totalorder %s30, 2
    %s32 = scalar_select %p31, 0, %s30
    %s33 = ssub.s32 %s20, %s32
    %p34 = scmp.eq.s32.totalorder %s33, 0
    %s36 = sadd.s32 %s35, 1
    %s37 = scalar_select %p34, %s35, %s36
    %p40 = pneg %p34
    %p41 = scmp.eq.s32.totalorder %s13, 1
    %p42 = por %p40, %p41
    %p43 = scmp.ne.s32.totalorder %s35, %s38
    %p44 = scmp.eq.s32.totalorder %s13, 0
    %p45 = por %p43, %p44
    %p46 = scmp.ne.s32.totalorder %s35, %s38
    %p47 = scmp.eq.s32.totalorder %s18, 1
    %p48 = por %p46, %p47
    %p49 = scmp.ne.s32.totalorder %s38, %s39
    %p50 = scmp.eq.s32.totalorder %s18, 0
    %p51 = por %p49, %p50
    %p52 = scmp.ne.s32.totalorder %s38, %s39
    %p53 = scmp.eq.s32.totalorder %s19, 1
    %p54 = por %p52, %p53
    %p56 = scmp.ne.s32.totalorder %s39, %s55
    %p57 = scmp.eq.s32.totalorder %s19, 0
    %p58 = por %p56, %p57
    %s60 = sadd.s32 %s59, 1
    %p63 = scmp.eq.s32.totalorder %s13, 1
    %p64 = scmp.ne.s32.totalorder %s59, %s61
    %p65 = scmp.eq.s32.totalorder %s13, 0
    %p66 = por %p64, %p65
    %p67 = scmp.ne.s32.totalorder %s59, %s61
    %p68 = scmp.eq.s32.totalorder %s18, 1
    %p69 = por %p67, %p68
    %p70 = scmp.ne.s32.totalorder %s61, %s62
    %p71 = scmp.eq.s32.totalorder %s18, 0
    %p72 = por %p70, %p71
    %p73 = scmp.ne.s32.totalorder %s61, %s62
    %p74 = scmp.eq.s32.totalorder %s19, 1
    %p75 = por %p73, %p74
    %p77 = scmp.ne.s32.totalorder %s62, %s76
    %p78 = scmp.eq.s32.totalorder %s19, 0
    %p79 = por %p77, %p78
    %s81 = sadd.s32 %s80, 1
    %p84 = scmp.eq.s32.totalorder %s13, 1
    %p85 = scmp.ne.s32.totalorder %s80, %s82
    %p86 = scmp.eq.s32.totalorder %s13, 0
    %p87 = por %p85, %p86
    %p88 = scmp.ne.s32.totalorder %s80, %s82
    %p89 = scmp.eq.s32.totalorder %s18, 1
    %p90 = por %p88, %p89
    %p91 = scmp.ne.s32.totalorder %s82, %s83
    %p92 = scmp.eq.s32.totalorder %s18, 0
    %p93 = por %p91, %p92
    %p94 = scmp.ne.s32.totalorder %s82, %s83
    %p95 = scmp.eq.s32.totalorder %s19, 1
    %p96 = por %p94, %p95
    %p98 = scmp.ne.s32.totalorder %s83, %s97
    %p99 = scmp.eq.s32.totalorder %s19, 0
    %p100 = por %p98, %p99
    %s102 = sadd.s32 %s101, 1
    %p105 = scmp.eq.s32.totalorder %s13, 1
    %p106 = scmp.ne.s32.totalorder %s101, %s103
    %p107 = scmp.eq.s32.totalorder %s13, 0
    %p108 = por %p106, %p107
    %p109 = scmp.ne.s32.totalorder %s101, %s103
    %p110 = scmp.eq.s32.totalorder %s18, 1
    %p111 = por %p109, %p110
    %p112 = scmp.ne.s32.totalorder %s103, %s104
    %p113 = scmp.eq.s32.totalorder %s18, 0
    %p114 = por %p112, %p113
    %p115 = scmp.ne.s32.totalorder %s103, %s104
    %p116 = scmp.eq.s32.totalorder %s19, 1
    %p117 = por %p115, %p116
    %p119 = scmp.ne.s32.totalorder %s104, %s118
    %p120 = scmp.eq.s32.totalorder %s19, 0
    %p121 = por %p119, %p120
    %s122 = ssub.s32 %s20, %s32
    %s123 = ssub.s32 %s21, %s28
    %s124 = sor.u32 %s122, %s123
    %p125 = scmp.eq.s32.totalorder %s124, 0
    %s127 = sadd.s32 %s126, 1
    %s128 = scalar_select %p125, %s126, %s127
    %p131 = pneg %p125
    %p132 = scmp.eq.s32.totalorder %s13, 1
    %p133 = por %p131, %p132
    %p134 = scmp.ne.s32.totalorder %s126, %s129
    %p135 = scmp.eq.s32.totalorder %s13, 0
    %p136 = por %p134, %p135
    %p137 = scmp.ne.s32.totalorder %s126, %s129
    %p138 = scmp.eq.s32.totalorder %s18, 1
    %p139 = por %p137, %p138
    %p140 = scmp.ne.s32.totalorder %s129, %s130
    %p141 = scmp.eq.s32.totalorder %s18, 0
    %p142 = por %p140, %p141
    %p143 = scmp.ne.s32.totalorder %s129, %s130
    %p144 = scmp.eq.s32.totalorder %s19, 1
    %p145 = por %p143, %p144
    %p147 = scmp.ne.s32.totalorder %s130, %s146
    %p148 = scmp.eq.s32.totalorder %s19, 0
    %p149 = por %p147, %p148
    %s150 = ssub.s32 %s20, %s32
    %s151 = ssub.s32 %s21, %s28
    %s152 = sor.u32 %s150, %s151
    %p153 = scmp.eq.s32.totalorder %s152, 0
    %s155 = sadd.s32 %s154, 1
    %s156 = scalar_select %p153, %s154, %s155
    %p159 = pneg %p153
    %p160 = scmp.eq.s32.totalorder %s13, 1
    %p161 = por %p159, %p160
    %p162 = scmp.ne.s32.totalorder %s154, %s157
    %p163 = scmp.eq.s32.totalorder %s13, 0
    %p164 = por %p162, %p163
    %p165 = scmp.ne.s32.totalorder %s154, %s157
    %p166 = scmp.eq.s32.totalorder %s18, 1
    %p167 = por %p165, %p166
    %p168 = scmp.ne.s32.totalorder %s157, %s158
    %p169 = scmp.eq.s32.totalorder %s18, 0
    %p170 = por %p168, %p169
    %p171 = scmp.ne.s32.totalorder %s157, %s158
    %p172 = scmp.eq.s32.totalorder %s19, 1
    %p173 = por %p171, %p172
    %p175 = scmp.ne.s32.totalorder %s158, %s174
    %p176 = scmp.eq.s32.totalorder %s19, 0
    %p177 = por %p175, %p176
    %s178 = ssub.s32 %s20, %s32
    %s179 = ssub.s32 %s21, %s28
    %s180 = sor.u32 %s178, %s179
    %p181 = scmp.eq.s32.totalorder %s180, 0
    %s183 = sadd.s32 %s182, 1
    %s184 = scalar_select %p181, %s182, %s183
    %p187 = pneg %p181
    %p188 = scmp.eq.s32.totalorder %s13, 1
    %p189 = por %p187, %p188
    %p190 = scmp.ne.s32.totalorder %s182, %s185
    %p191 = scmp.eq.s32.totalorder %s13, 0
    %p192 = por %p190, %p191
    %p193 = scmp.ne.s32.totalorder %s182, %s185
    %p194 = scmp.eq.s32.totalorder %s18, 1
    %p195 = por %p193, %p194
    %p196 = scmp.ne.s32.totalorder %s185, %s186
    %p197 = scmp.eq.s32.totalorder %s18, 0
    %p198 = por %p196, %p197
    %p199 = scmp.ne.s32.totalorder %s185, %s186
    %p200 = scmp.eq.s32.totalorder %s19, 1
    %p201 = por %p199, %p200
    %p203 = scmp.ne.s32.totalorder %s186, %s202
    %p204 = scmp.eq.s32.totalorder %s19, 0
    %p205 = por %p203, %p204
    %p206 = scmp.le.s32.totalorder 1, %s13
    %p207 = scmp.lt.s32.totalorder %s13, 3
    %p208 = pnand %p206, %p207
    %p209 = pneg %p208
    // Predicated region
    $region9: #{down_block.4} parent=5 // pred_check
      _
    $region10: #{down_block.4} parent=5 // pred_check_branch
      %211 = sbr.rel (%p208) target = $region12
    $region11: #{down_block.4} parent=5 // pred_region
      %s212 = ssub.s32 %s13, 1
      // Predicated region
      $region13: #{down_block.4} parent=11 // pred_check
        %p213 = pneg %p72
      $region14: #{down_block.4} parent=11 // pred_check_branch
        %215 = sbr.rel (%p213) target = $region16
      $region15: #{down_block.4} parent=11 // pred_region
        _
      $region16: #{down_block.4} parent=11 // pred_fallthru
        _
      // Predicated region
      $region17: #{down_block.4} parent=11 // pred_check
        %p216 = pneg %p93
      $region18: #{down_block.4} parent=11 // pred_check_branch
        %218 = sbr.rel (%p216) target = $region20
      $region19: #{down_block.4} parent=11 // pred_region
        _
      $region20: #{down_block.4} parent=11 // pred_fallthru
        _
      // Predicated region
      $region21: #{down_block.4} parent=11 // pred_check
        %p219 = pneg %p114
      $region22: #{down_block.4} parent=11 // pred_check_branch
        %221 = sbr.rel (%p219) target = $region24
      $region23: #{down_block.4} parent=11 // pred_region
        _
      $region24: #{down_block.4} parent=11 // pred_fallthru
        _
    $region12: #{down_block.4} parent=5 // pred_fallthru
      _
    %p222 = scmp.lt.s32.totalorder %s13, 2
    // Predicated region
    $region25: #{down_block.4} parent=5 // pred_check
      %p223 = pneg %p222
    $region26: #{down_block.4} parent=5 // pred_check_branch
      %225 = sbr.rel (%p223) target = $region28
    $region27: #{down_block.4} parent=5 // pred_region
      // Predicated region
      $region29: #{down_block.4} parent=27 // pred_check
        %p226 = pneg %p45
      $region30: #{down_block.4} parent=27 // pred_check_branch
        %228 = sbr.rel (%p226) target = $region32
      $region31: #{down_block.4} parent=27 // pred_region
        %p229 = scmp.lt.s32.totalorder %s20, 1
        %s230 = scalar_select %p229, %s20, 1
        %s231 = smul.addr %s230, 8
        %s232 = smul.addr %s231, 8
        %s233 = scalar_lea.vmem %s0, %s232
      $region32: #{down_block.4} parent=27 // pred_fallthru
        _
    $region28: #{down_block.4} parent=5 // pred_fallthru
      _
    %p234 = scmp.le.s32.totalorder 1, %s13
    %p235 = scmp.lt.s32.totalorder %s13, 3
    %p236 = pnand %p234, %p235
    %p237 = pneg %p236
    // Predicated region
    $region33: #{down_block.4} parent=5 // pred_check
      _
    $region34: #{down_block.4} parent=5 // pred_check_branch
      %239 = sbr.rel (%p236) target = $region36
    $region35: #{down_block.4} parent=5 // pred_region
      %s240 = ssub.s32 %s13, 1
      %p241 = scmp.lt.s32.totalorder %s22, 1
      %s242 = scalar_select %p241, %s22, 1
      %s243 = smul.addr %s242, 8
      %s244 = smul.addr %s243, 8
      %s245 = scalar_lea.vmem %s0, %s244
      %p246 = pneg %p51
      %p247 = pneg %p48
      %p248 = pneg %p72
      %p249 = pneg %p69
      %p250 = pneg %p93
      %p251 = pneg %p90
      %p252 = pneg %p114
      %p253 = pneg %p111
      %p254 = pneg %p142
      %p255 = pneg %p139
      %s256 = smul.u32 8, %s23
      %p257 = scmp.lt.s32.totalorder %s22, 1
      %s258 = scalar_select %p257, %s22, 1
      %p259 = scmp.lt.s32.totalorder %s256, 7
      %s260 = scalar_select %p259, %s256, 7
      %s261 = smul.addr %s258, 8
      %s262 = sadd.s32 %s260, %s261
      %s263 = smul.addr %s262, 8
      %s264 = scalar_lea.vmem %s4, %s263
      %p265 = pneg %p170
      %p266 = pneg %p167
      %p267 = scmp.lt.s32.totalorder %s22, 1
      %s268 = scalar_select %p267, %s22, 1
      %p269 = scmp.lt.s32.totalorder %s23, 0
      %s270 = scalar_select %p269, %s23, 0
      %s271 = sadd.s32 %s270, %s268
      %s272 = scalar_lea.vmem %s5, %s271
      %p273 = pneg %p198
      %p274 = pneg %p195
      %p275 = scmp.lt.s32.totalorder %s22, 1
      %s276 = scalar_select %p275, %s22, 1
      %p277 = scmp.lt.s32.totalorder %s23, 0
      %s278 = scalar_select %p277, %s23, 0
      %s279 = sadd.s32 %s278, %s276
      %s280 = scalar_lea.vmem %s6, %s279
      %p281 = scmp.lt.s32.totalorder %s22, 1
      %s282 = scalar_select %p281, %s22, 1
      %s283 = smul.addr %s282, 8
      %s284 = smul.addr %s283, 8
      %s285 = scalar_lea.vmem %s0, %s284
      %s286 = smul.u32 8, %s23
      %p287 = scmp.lt.s32.totalorder %s22, 1
      %s288 = scalar_select %p287, %s22, 1
      %p289 = scmp.lt.s32.totalorder %s286, 7
      %s290 = scalar_select %p289, %s286, 7
      %s291 = smul.addr %s288, 8
      %s292 = sadd.s32 %s290, %s291
      %s293 = smul.addr %s292, 8
      %s294 = scalar_lea.vmem %s4, %s293
      %s295 = smul.u32 8, %s23
      %p296 = scmp.lt.s32.totalorder %s22, 1
      %s297 = scalar_select %p296, %s22, 1
      %p298 = scmp.lt.s32.totalorder %s23, 0
      %s299 = scalar_select %p298, %s23, 0
      %s300 = sadd.s32 %s299, %s297
      %s301 = scalar_lea.vmem %s5, %s300
      %p302 = scmp.lt.s32.totalorder %s22, 1
      %s303 = scalar_select %p302, %s22, 1
      %p304 = scmp.lt.s32.totalorder %s23, 0
      %s305 = scalar_select %p304, %s23, 0
      %s306 = sadd.s32 %s305, %s303
      %s307 = scalar_lea.vmem %s6, %s306
      %p308 = scmp.eq.s32.totalorder %s23, 0
      // Predicated region
      $region37: #{down_block.4} parent=35 // pred_check
        %p309 = pneg %p308
      $region38: #{down_block.4} parent=35 // pred_check_branch
        %311 = sbr.rel (%p309) target = $region40
      $region39: #{down_block.4} parent=35 // pred_region
        %v312 = vld [vmem:[%s285] sm:$0xff]
        %v313 = vld [vmem:[%s285 + $0x8] sm:$0xff]
        %v314 = vld [vmem:[%s285 + $0x10] sm:$0xff]
        %v315 = vld [vmem:[%s285 + $0x18] sm:$0xff]
        %v316 = vld [vmem:[%s285 + $0x20] sm:$0xff]
        %v317 = vld [vmem:[%s285 + $0x28] sm:$0xff]
        %v318 = vld [vmem:[%s285 + $0x30] sm:$0xff]
        %v319 = vld [vmem:[%s285 + $0x38] sm:$0xff]
        %v320 = vld [vmem:[%s1] sm:$0x1]
        %v322 = vlaneseq
        %v323 = vshrl.u32 %v322, 7
        %v324 = vsub.s32 0, %v323
        %v325 = vrot.slane %v320, %v324
        %v327 = vmul.f32 %v312, %v325
        %v328 = vmul.f32 %v313, %v325
        %v329 = vmul.f32 %v314, %v325
        %v330 = vmul.f32 %v315, %v325
        %v331 = vmul.f32 %v316, %v325
        %v332 = vmul.f32 %v317, %v325
        %v333 = vmul.f32 %v318, %v325
        %v334 = vmul.f32 %v319, %v325
        %v335 = vld [vmem:[%s2] sm:$0x1]
        %v337 = vlaneseq
        %v338 = vshrl.u32 %v337, 7
        %v339 = vsub.s32 0, %v338
        %v340 = vrot.slane %v335, %v339
        %v342 = vadd.f32 %v327, %v340
        %v343 = vadd.f32 %v328, %v340
        %v344 = vadd.f32 %v329, %v340
        %v345 = vadd.f32 %v330, %v340
        %v346 = vadd.f32 %v331, %v340
        %v347 = vadd.f32 %v332, %v340
        %v348 = vadd.f32 %v333, %v340
        %v349 = vadd.f32 %v334, %v340
        %v350 = vmax.f32 %v342, 0.0
        %v351 = vmax.f32 %v343, 0.0
        %v352 = vmax.f32 %v344, 0.0
        %v353 = vmax.f32 %v345, 0.0
        %v354 = vmax.f32 %v346, 0.0
        %v355 = vmax.f32 %v347, 0.0
        %v356 = vmax.f32 %v348, 0.0
        %v357 = vmax.f32 %v349, 0.0
        %v366 = vrot.slane %v350, 7
        %v367 = vrot.slane %v351, 7
        %v368 = vrot.slane %v352, 7
        %v369 = vrot.slane %v353, 7
        %v370 = vrot.slane %v354, 7
        %v371 = vrot.slane %v355, 7
        %v372 = vrot.slane %v356, 7
        %v373 = vrot.slane %v357, 7
        %vm382 = vcmask 1040384
        %v383 = vsel %vm382, 0.0, %v366
        %v384 = vsel %vm382, 0.0, %v367
        %v385 = vsel %vm382, 0.0, %v368
        %v386 = vsel %vm382, 0.0, %v369
        %v387 = vsel %vm382, 0.0, %v370
        %v388 = vsel %vm382, 0.0, %v371
        %v389 = vsel %vm382, 0.0, %v372
        %v390 = vsel %vm382, 0.0, %v373
        %v391 = vsel %vm382, %v366, 0.0
        %v392 = vsel %vm382, %v367, 0.0
        %v393 = vsel %vm382, %v368, 0.0
        %v394 = vsel %vm382, %v369, 0.0
        %v395 = vsel %vm382, %v370, 0.0
        %v396 = vsel %vm382, %v371, 0.0
        %v397 = vsel %vm382, %v372, 0.0
        %v398 = vsel %vm382, %v373, 0.0
        %vm399 = vcmask 64512
        %400 = vst.msk [vmem:[#allocation2] sm:$0xff] %vm399, 0.0
        %vm401 = vcmask 58368
        %402 = vst.msk [vmem:[#allocation2 + $0x8] sm:$0x3] %vm401, 0.0
        %403 = vst.msk [vmem:[#allocation2 + $0x10] sm:$0xff] %vm399, %v383
        %404 = vst.msk [vmem:[#allocation2 + $0x18] sm:$0x3] %vm401, %v391
        %405 = vst.msk [vmem:[#allocation2 + $0x20] sm:$0xff] %vm399, %v384
        %406 = vst.msk [vmem:[#allocation2 + $0x28] sm:$0x3] %vm401, %v392
        %407 = vst.msk [vmem:[#allocation2 + $0x30] sm:$0xff] %vm399, %v385
        %408 = vst.msk [vmem:[#allocation2 + $0x38] sm:$0x3] %vm401, %v393
        %409 = vst.msk [vmem:[#allocation2 + $0x40] sm:$0xff] %vm399, %v386
        %410 = vst.msk [vmem:[#allocation2 + $0x48] sm:$0x3] %vm401, %v394
        %411 = vst.msk [vmem:[#allocation2 + $0x50] sm:$0xff] %vm399, %v387
        %412 = vst.msk [vmem:[#allocation2 + $0x58] sm:$0x3] %vm401, %v395
        %413 = vst.msk [vmem:[#allocation2 + $0x60] sm:$0xff] %vm399, %v388
        %414 = vst.msk [vmem:[#allocation2 + $0x68] sm:$0x3] %vm401, %v396
        %415 = vst.msk [vmem:[#allocation2 + $0x70] sm:$0xff] %vm399, %v389
        %416 = vst.msk [vmem:[#allocation2 + $0x78] sm:$0x3] %vm401, %v397
        %417 = vst.msk [vmem:[#allocation2 + $0x80] sm:$0xff] %vm399, %v390
        %418 = vst.msk [vmem:[#allocation2 + $0x88] sm:$0x3] %vm401, %v398
        %419 = vst.msk [vmem:[#allocation2 + $0x90] sm:$0xff] %vm399, 0.0
        %420 = vst.msk [vmem:[#allocation2 + $0x98] sm:$0x3] %vm401, 0.0
      $region40: #{down_block.4} parent=35 // pred_fallthru
        _
      %s421 = smul.u32 %s23, 8
      %s422 = smul.u32 %s421, 16
      %s423 = scalar_lea.vmem [#allocation2], %s422
      %v424 = vld [vmem:[%s423] sm:$0xff]
      %v425 = vld [vmem:[%s423 + $0x8] sm:$0x3]
      %v426 = vld [vmem:[%s423 + $0x10] sm:$0xff]
      %v427 = vld [vmem:[%s423 + $0x18] sm:$0x3]
      %v428 = vld [vmem:[%s423 + $0x20] sm:$0xff]
      %v429 = vld [vmem:[%s423 + $0x28] sm:$0x3]
      %v430 = vld [vmem:[%s423 + $0x30] sm:$0xff]
      %v431 = vld [vmem:[%s423 + $0x38] sm:$0x3]
      %v432 = vld [vmem:[%s423 + $0x40] sm:$0xff]
      %v433 = vld [vmem:[%s423 + $0x48] sm:$0x3]
      %v434 = vld [vmem:[%s423 + $0x50] sm:$0xff]
      %v435 = vld [vmem:[%s423 + $0x58] sm:$0x3]
      %v436 = vld [vmem:[%s423 + $0x60] sm:$0xff]
      %v437 = vld [vmem:[%s423 + $0x68] sm:$0x3]
      %v438 = vld [vmem:[%s423 + $0x70] sm:$0xff]
      %v439 = vld [vmem:[%s423 + $0x78] sm:$0x3]
      %s440 = sadd.s32 %s421, 1
      %s441 = smul.u32 %s440, 16
      %s442 = scalar_lea.vmem [#allocation2], %s441
      %v443 = vld [vmem:[%s442] sm:$0xff]
      %v444 = vld [vmem:[%s442 + $0x8] sm:$0x3]
      %v445 = vld [vmem:[%s442 + $0x10] sm:$0xff]
      %v446 = vld [vmem:[%s442 + $0x18] sm:$0x3]
      %v447 = vld [vmem:[%s442 + $0x20] sm:$0xff]
      %v448 = vld [vmem:[%s442 + $0x28] sm:$0x3]
      %v449 = vld [vmem:[%s442 + $0x30] sm:$0xff]
      %v450 = vld [vmem:[%s442 + $0x38] sm:$0x3]
      %v451 = vld [vmem:[%s442 + $0x40] sm:$0xff]
      %v452 = vld [vmem:[%s442 + $0x48] sm:$0x3]
      %v453 = vld [vmem:[%s442 + $0x50] sm:$0xff]
      %v454 = vld [vmem:[%s442 + $0x58] sm:$0x3]
      %v455 = vld [vmem:[%s442 + $0x60] sm:$0xff]
      %v456 = vld [vmem:[%s442 + $0x68] sm:$0x3]
      %v457 = vld [vmem:[%s442 + $0x70] sm:$0xff]
      %v458 = vld [vmem:[%s442 + $0x78] sm:$0x3]
      %s459 = sadd.s32 %s421, 2
      %s460 = smul.u32 %s459, 16
      %s461 = scalar_lea.vmem [#allocation2], %s460
      %v462 = vld [vmem:[%s461] sm:$0xff]
      %v463 = vld [vmem:[%s461 + $0x8] sm:$0x3]
      %v464 = vld [vmem:[%s461 + $0x10] sm:$0xff]
      %v465 = vld [vmem:[%s461 + $0x18] sm:$0x3]
      %v466 = vld [vmem:[%s461 + $0x20] sm:$0xff]
      %v467 = vld [vmem:[%s461 + $0x28] sm:$0x3]
      %v468 = vld [vmem:[%s461 + $0x30] sm:$0xff]
      %v469 = vld [vmem:[%s461 + $0x38] sm:$0x3]
      %v470 = vld [vmem:[%s461 + $0x40] sm:$0xff]
      %v471 = vld [vmem:[%s461 + $0x48] sm:$0x3]
      %v472 = vld [vmem:[%s461 + $0x50] sm:$0xff]
      %v473 = vld [vmem:[%s461 + $0x58] sm:$0x3]
      %v474 = vld [vmem:[%s461 + $0x60] sm:$0xff]
      %v475 = vld [vmem:[%s461 + $0x68] sm:$0x3]
      %v476 = vld [vmem:[%s461 + $0x70] sm:$0xff]
      %v477 = vld [vmem:[%s461 + $0x78] sm:$0x3]
      %vm494 = vcmask 1046528
      %v495 = vrot.slane %v424, 1
      %v496 = vrot.slane %v425, 1
      %v497 = vsel %vm494, %v495, %v496
      %v498 = vrot.slane %v426, 1
      %v499 = vrot.slane %v427, 1
      %v500 = vsel %vm494, %v498, %v499
      %v501 = vrot.slane %v428, 1
      %v502 = vrot.slane %v429, 1
      %v503 = vsel %vm494, %v501, %v502
      %v504 = vrot.slane %v430, 1
      %v505 = vrot.slane %v431, 1
      %v506 = vsel %vm494, %v504, %v505
      %v507 = vrot.slane %v432, 1
      %v508 = vrot.slane %v433, 1
      %v509 = vsel %vm494, %v507, %v508
      %v510 = vrot.slane %v434, 1
      %v511 = vrot.slane %v435, 1
      %v512 = vsel %vm494, %v510, %v511
      %v513 = vrot.slane %v436, 1
      %v514 = vrot.slane %v437, 1
      %v515 = vsel %vm494, %v513, %v514
      %v516 = vrot.slane %v438, 1
      %v517 = vrot.slane %v439, 1
      %v518 = vsel %vm494, %v516, %v517
      %519 = vrot.lane.b32.xlu0 %v497, 8
      %v520 = vpop.permute.xlu0 %519
      %521 = vrot.lane.b32.xlu0 %v500, 8
      %v522 = vpop.permute.xlu0 %521
      %523 = vrot.lane.b32.xlu0 %v503, 8
      %v524 = vpop.permute.xlu0 %523
      %525 = vrot.lane.b32.xlu0 %v506, 8
      %v526 = vpop.permute.xlu0 %525
      %527 = vrot.lane.b32.xlu0 %v509, 8
      %v528 = vpop.permute.xlu0 %527
      %529 = vrot.lane.b32.xlu0 %v512, 8
      %v530 = vpop.permute.xlu0 %529
      %531 = vrot.lane.b32.xlu0 %v515, 8
      %v532 = vpop.permute.xlu0 %531
      %533 = vrot.lane.b32.xlu0 %v518, 8
      %v534 = vpop.permute.xlu0 %533
      %vm543 = vcmask 1045504
      %v544 = vrot.slane %v424, 2
      %v545 = vrot.slane %v425, 2
      %v546 = vsel %vm543, %v544, %v545
      %v547 = vrot.slane %v426, 2
      %v548 = vrot.slane %v427, 2
      %v549 = vsel %vm543, %v547, %v548
      %v550 = vrot.slane %v428, 2
      %v551 = vrot.slane %v429, 2
      %v552 = vsel %vm543, %v550, %v551
      %v553 = vrot.slane %v430, 2
      %v554 = vrot.slane %v431, 2
      %v555 = vsel %vm543, %v553, %v554
      %v556 = vrot.slane %v432, 2
      %v557 = vrot.slane %v433, 2
      %v558 = vsel %vm543, %v556, %v557
      %v559 = vrot.slane %v434, 2
      %v560 = vrot.slane %v435, 2
      %v561 = vsel %vm543, %v559, %v560
      %v562 = vrot.slane %v436, 2
      %v563 = vrot.slane %v437, 2
      %v564 = vsel %vm543, %v562, %v563
      %v565 = vrot.slane %v438, 2
      %v566 = vrot.slane %v439, 2
      %v567 = vsel %vm543, %v565, %v566
      %568 = vrot.lane.b32.xlu0 %v546, 16
      %v569 = vpop.permute.xlu0 %568
      %570 = vrot.lane.b32.xlu0 %v549, 16
      %v571 = vpop.permute.xlu0 %570
      %572 = vrot.lane.b32.xlu0 %v552, 16
      %v573 = vpop.permute.xlu0 %572
      %574 = vrot.lane.b32.xlu0 %v555, 16
      %v575 = vpop.permute.xlu0 %574
      %576 = vrot.lane.b32.xlu0 %v558, 16
      %v577 = vpop.permute.xlu0 %576
      %578 = vrot.lane.b32.xlu0 %v561, 16
      %v579 = vpop.permute.xlu0 %578
      %580 = vrot.lane.b32.xlu0 %v564, 16
      %v581 = vpop.permute.xlu0 %580
      %582 = vrot.lane.b32.xlu0 %v567, 16
      %v583 = vpop.permute.xlu0 %582
      %600 = vrot.lane.b32.xlu0 %v443, 24
      %v601 = vpop.permute.xlu0 %600
      %602 = vrot.lane.b32.xlu0 %v445, 24
      %v603 = vpop.permute.xlu0 %602
      %604 = vrot.lane.b32.xlu0 %v447, 24
      %v605 = vpop.permute.xlu0 %604
      %606 = vrot.lane.b32.xlu0 %v449, 24
      %v607 = vpop.permute.xlu0 %606
      %608 = vrot.lane.b32.xlu0 %v451, 24
      %v609 = vpop.permute.xlu0 %608
      %610 = vrot.lane.b32.xlu0 %v453, 24
      %v611 = vpop.permute.xlu0 %610
      %612 = vrot.lane.b32.xlu0 %v455, 24
      %v613 = vpop.permute.xlu0 %612
      %614 = vrot.lane.b32.xlu0 %v457, 24
      %v615 = vpop.permute.xlu0 %614
      %v632 = vrot.slane %v443, 1
      %v633 = vrot.slane %v444, 1
      %v634 = vsel %vm494, %v632, %v633
      %v635 = vrot.slane %v445, 1
      %v636 = vrot.slane %v446, 1
      %v637 = vsel %vm494, %v635, %v636
      %v638 = vrot.slane %v447, 1
      %v639 = vrot.slane %v448, 1
      %v640 = vsel %vm494, %v638, %v639
      %v641 = vrot.slane %v449, 1
      %v642 = vrot.slane %v450, 1
      %v643 = vsel %vm494, %v641, %v642
      %v644 = vrot.slane %v451, 1
      %v645 = vrot.slane %v452, 1
      %v646 = vsel %vm494, %v644, %v645
      %v647 = vrot.slane %v453, 1
      %v648 = vrot.slane %v454, 1
      %v649 = vsel %vm494, %v647, %v648
      %v650 = vrot.slane %v455, 1
      %v651 = vrot.slane %v456, 1
      %v652 = vsel %vm494, %v650, %v651
      %v653 = vrot.slane %v457, 1
      %v654 = vrot.slane %v458, 1
      %v655 = vsel %vm494, %v653, %v654
      %656 = vrot.lane.b32.xlu0 %v634, 32
      %v657 = vpop.permute.xlu0 %656
      %658 = vrot.lane.b32.xlu0 %v637, 32
      %v659 = vpop.permute.xlu0 %658
      %660 = vrot.lane.b32.xlu0 %v640, 32
      %v661 = vpop.permute.xlu0 %660
      %662 = vrot.lane.b32.xlu0 %v643, 32
      %v663 = vpop.permute.xlu0 %662
      %664 = vrot.lane.b32.xlu0 %v646, 32
      %v665 = vpop.permute.xlu0 %664
      %666 = vrot.lane.b32.xlu0 %v649, 32
      %v667 = vpop.permute.xlu0 %666
      %668 = vrot.lane.b32.xlu0 %v652, 32
      %v669 = vpop.permute.xlu0 %668
      %670 = vrot.lane.b32.xlu0 %v655, 32
      %v671 = vpop.permute.xlu0 %670
      %v680 = vrot.slane %v443, 2
      %v681 = vrot.slane %v444, 2
      %v682 = vsel %vm543, %v680, %v681
      %v683 = vrot.slane %v445, 2
      %v684 = vrot.slane %v446, 2
      %v685 = vsel %vm543, %v683, %v684
      %v686 = vrot.slane %v447, 2
      %v687 = vrot.slane %v448, 2
      %v688 = vsel %vm543, %v686, %v687
      %v689 = vrot.slane %v449, 2
      %v690 = vrot.slane %v450, 2
      %v691 = vsel %vm543, %v689, %v690
      %v692 = vrot.slane %v451, 2
      %v693 = vrot.slane %v452, 2
      %v694 = vsel %vm543, %v692, %v693
      %v695 = vrot.slane %v453, 2
      %v696 = vrot.slane %v454, 2
      %v697 = vsel %vm543, %v695, %v696
      %v698 = vrot.slane %v455, 2
      %v699 = vrot.slane %v456, 2
      %v700 = vsel %vm543, %v698, %v699
      %v701 = vrot.slane %v457, 2
      %v702 = vrot.slane %v458, 2
      %v703 = vsel %vm543, %v701, %v702
      %704 = vrot.lane.b32.xlu0 %v682, 40
      %v705 = vpop.permute.xlu0 %704
      %706 = vrot.lane.b32.xlu0 %v685, 40
      %v707 = vpop.permute.xlu0 %706
      %708 = vrot.lane.b32.xlu0 %v688, 40
      %v709 = vpop.permute.xlu0 %708
      %710 = vrot.lane.b32.xlu0 %v691, 40
      %v711 = vpop.permute.xlu0 %710
      %712 = vrot.lane.b32.xlu0 %v694, 40
      %v713 = vpop.permute.xlu0 %712
      %714 = vrot.lane.b32.xlu0 %v697, 40
      %v715 = vpop.permute.xlu0 %714
      %716 = vrot.lane.b32.xlu0 %v700, 40
      %v717 = vpop.permute.xlu0 %716
      %718 = vrot.lane.b32.xlu0 %v703, 40
      %v719 = vpop.permute.xlu0 %718
      %736 = vrot.lane.b32.xlu0 %v462, 48
      %v737 = vpop.permute.xlu0 %736
      %738 = vrot.lane.b32.xlu0 %v464, 48
      %v739 = vpop.permute.xlu0 %738
      %740 = vrot.lane.b32.xlu0 %v466, 48
      %v741 = vpop.permute.xlu0 %740
      %742 = vrot.lane.b32.xlu0 %v468, 48
      %v743 = vpop.permute.xlu0 %742
      %744 = vrot.lane.b32.xlu0 %v470, 48
      %v745 = vpop.permute.xlu0 %744
      %746 = vrot.lane.b32.xlu0 %v472, 48
      %v747 = vpop.permute.xlu0 %746
      %748 = vrot.lane.b32.xlu0 %v474, 48
      %v749 = vpop.permute.xlu0 %748
      %750 = vrot.lane.b32.xlu0 %v476, 48
      %v751 = vpop.permute.xlu0 %750
      %v768 = vrot.slane %v462, 1
      %v769 = vrot.slane %v463, 1
      %v770 = vsel %vm494, %v768, %v769
      %v771 = vrot.slane %v464, 1
      %v772 = vrot.slane %v465, 1
      %v773 = vsel %vm494, %v771, %v772
      %v774 = vrot.slane %v466, 1
      %v775 = vrot.slane %v467, 1
      %v776 = vsel %vm494, %v774, %v775
      %v777 = vrot.slane %v468, 1
      %v778 = vrot.slane %v469, 1
      %v779 = vsel %vm494, %v777, %v778
      %v780 = vrot.slane %v470, 1
      %v781 = vrot.slane %v471, 1
      %v782 = vsel %vm494, %v780, %v781
      %v783 = vrot.slane %v472, 1
      %v784 = vrot.slane %v473, 1
      %v785 = vsel %vm494, %v783, %v784
      %v786 = vrot.slane %v474, 1
      %v787 = vrot.slane %v475, 1
      %v788 = vsel %vm494, %v786, %v787
      %v789 = vrot.slane %v476, 1
      %v790 = vrot.slane %v477, 1
      %v791 = vsel %vm494, %v789, %v790
      %792 = vrot.lane.b32.xlu0 %v770, 56
      %v793 = vpop.permute.xlu0 %792
      %794 = vrot.lane.b32.xlu0 %v773, 56
      %v795 = vpop.permute.xlu0 %794
      %796 = vrot.lane.b32.xlu0 %v776, 56
      %v797 = vpop.permute.xlu0 %796
      %798 = vrot.lane.b32.xlu0 %v779, 56
      %v799 = vpop.permute.xlu0 %798
      %800 = vrot.lane.b32.xlu0 %v782, 56
      %v801 = vpop.permute.xlu0 %800
      %802 = vrot.lane.b32.xlu0 %v785, 56
      %v803 = vpop.permute.xlu0 %802
      %804 = vrot.lane.b32.xlu0 %v788, 56
      %v805 = vpop.permute.xlu0 %804
      %806 = vrot.lane.b32.xlu0 %v791, 56
      %v807 = vpop.permute.xlu0 %806
      %v816 = vrot.slane %v462, 2
      %v817 = vrot.slane %v463, 2
      %v818 = vsel %vm543, %v816, %v817
      %v819 = vrot.slane %v464, 2
      %v820 = vrot.slane %v465, 2
      %v821 = vsel %vm543, %v819, %v820
      %v822 = vrot.slane %v466, 2
      %v823 = vrot.slane %v467, 2
      %v824 = vsel %vm543, %v822, %v823
      %v825 = vrot.slane %v468, 2
      %v826 = vrot.slane %v469, 2
      %v827 = vsel %vm543, %v825, %v826
      %v828 = vrot.slane %v470, 2
      %v829 = vrot.slane %v471, 2
      %v830 = vsel %vm543, %v828, %v829
      %v831 = vrot.slane %v472, 2
      %v832 = vrot.slane %v473, 2
      %v833 = vsel %vm543, %v831, %v832
      %v834 = vrot.slane %v474, 2
      %v835 = vrot.slane %v475, 2
      %v836 = vsel %vm543, %v834, %v835
      %v837 = vrot.slane %v476, 2
      %v838 = vrot.slane %v477, 2
      %v839 = vsel %vm543, %v837, %v838
      %840 = vrot.lane.b32.xlu0 %v818, 64
      %v841 = vpop.permute.xlu0 %840
      %842 = vrot.lane.b32.xlu0 %v821, 64
      %v843 = vpop.permute.xlu0 %842
      %844 = vrot.lane.b32.xlu0 %v824, 64
      %v845 = vpop.permute.xlu0 %844
      %846 = vrot.lane.b32.xlu0 %v827, 64
      %v847 = vpop.permute.xlu0 %846
      %848 = vrot.lane.b32.xlu0 %v830, 64
      %v849 = vpop.permute.xlu0 %848
      %850 = vrot.lane.b32.xlu0 %v833, 64
      %v851 = vpop.permute.xlu0 %850
      %852 = vrot.lane.b32.xlu0 %v836, 64
      %v853 = vpop.permute.xlu0 %852
      %854 = vrot.lane.b32.xlu0 %v839, 64
      %v855 = vpop.permute.xlu0 %854
      %vm864 = vcmask 64512
      %v865 = vsel %vm864, %v424, %v520
      %v866 = vsel %vm864, %v426, %v522
      %v867 = vsel %vm864, %v428, %v524
      %v868 = vsel %vm864, %v430, %v526
      %v869 = vsel %vm864, %v432, %v528
      %v870 = vsel %vm864, %v434, %v530
      %v871 = vsel %vm864, %v436, %v532
      %v872 = vsel %vm864, %v438, %v534
      %vm873 = vcmask 130048
      %v874 = vsel %vm873, %v865, %v569
      %v875 = vsel %vm873, %v866, %v571
      %v876 = vsel %vm873, %v867, %v573
      %v877 = vsel %vm873, %v868, %v575
      %v878 = vsel %vm873, %v869, %v577
      %v879 = vsel %vm873, %v870, %v579
      %v880 = vsel %vm873, %v871, %v581
      %v881 = vsel %vm873, %v872, %v583
      %vm882 = vcmask 195584
      %v883 = vsel %vm882, %v874, %v601
      %v884 = vsel %vm882, %v875, %v603
      %v885 = vsel %vm882, %v876, %v605
      %v886 = vsel %vm882, %v877, %v607
      %v887 = vsel %vm882, %v878, %v609
      %v888 = vsel %vm882, %v879, %v611
      %v889 = vsel %vm882, %v880, %v613
      %v890 = vsel %vm882, %v881, %v615
      %vm891 = vcmask 261120
      %v892 = vsel %vm891, %v883, %v657
      %v893 = vsel %vm891, %v884, %v659
      %v894 = vsel %vm891, %v885, %v661
      %v895 = vsel %vm891, %v886, %v663
      %v896 = vsel %vm891, %v887, %v665
      %v897 = vsel %vm891, %v888, %v667
      %v898 = vsel %vm891, %v889, %v669
      %v899 = vsel %vm891, %v890, %v671
      %vm900 = vcmask 326656
      %v901 = vsel %vm900, %v892, %v705
      %v902 = vsel %vm900, %v893, %v707
      %v903 = vsel %vm900, %v894, %v709
      %v904 = vsel %vm900, %v895, %v711
      %v905 = vsel %vm900, %v896, %v713
      %v906 = vsel %vm900, %v897, %v715
      %v907 = vsel %vm900, %v898, %v717
      %v908 = vsel %vm900, %v899, %v719
      %vm909 = vcmask 392192
      %v910 = vsel %vm909, %v901, %v737
      %v911 = vsel %vm909, %v902, %v739
      %v912 = vsel %vm909, %v903, %v741
      %v913 = vsel %vm909, %v904, %v743
      %v914 = vsel %vm909, %v905, %v745
      %v915 = vsel %vm909, %v906, %v747
      %v916 = vsel %vm909, %v907, %v749
      %v917 = vsel %vm909, %v908, %v751
      %vm918 = vcmask 457728
      %v919 = vsel %vm918, %v910, %v793
      %v920 = vsel %vm918, %v911, %v795
      %v921 = vsel %vm918, %v912, %v797
      %v922 = vsel %vm918, %v913, %v799
      %v923 = vsel %vm918, %v914, %v801
      %v924 = vsel %vm918, %v915, %v803
      %v925 = vsel %vm918, %v916, %v805
      %v926 = vsel %vm918, %v917, %v807
      %vm927 = vcmask 523264
      %v928 = vsel %vm927, %v919, %v841
      %v929 = vsel %vm927, %v920, %v843
      %v930 = vsel %vm927, %v921, %v845
      %v931 = vsel %vm927, %v922, %v847
      %v932 = vsel %vm927, %v923, %v849
      %v933 = vsel %vm927, %v924, %v851
      %v934 = vsel %vm927, %v925, %v853
      %v935 = vsel %vm927, %v926, %v855
      %v936 = vld [vmem:[%s3] sm:$0xff]
      %v937 = vld [vmem:[%s3 + $0x8] sm:$0xff]
      %v938 = vld [vmem:[%s3 + $0x10] sm:$0xff]
      %v939 = vld [vmem:[%s3 + $0x18] sm:$0xff]
      %v940 = vld [vmem:[%s3 + $0x20] sm:$0xff]
      %v941 = vld [vmem:[%s3 + $0x28] sm:$0xff]
      %v942 = vld [vmem:[%s3 + $0x30] sm:$0xff]
      %v943 = vld [vmem:[%s3 + $0x38] sm:$0xff]
      %v944 = vld [vmem:[%s3 + $0x40] sm:$0xff]
      %vm945 = vcmask 588800
      %v947 = vsel %vm945, %v928, 0
      %v950 = vsel %vm945, %v929, 0
      %v953 = vsel %vm945, %v930, 0
      %v956 = vsel %vm945, %v931, 0
      %v959 = vsel %vm945, %v932, 0
      %v962 = vsel %vm945, %v933, 0
      %v965 = vsel %vm945, %v934, 0
      %v968 = vsel %vm945, %v935, 0
      %970 = vmatprep.subr.mxu0 0.0
      %971 = vmatpush1.msra.mxu0 %v936
      %972 = vmatprep.subr.mxu0 0.0
      %973 = vmatpush1.msra.mxu0 %v937
      %974 = vmatprep.subr.mxu0 0.0
      %975 = vmatpush1.msra.mxu0 %v938
      %976 = vmatprep.subr.mxu0 0.0
      %977 = vmatpush1.msra.mxu0 %v939
      %978 = vmatprep.subr.mxu0 0.0
      %979 = vmatpush1.msra.mxu0 %v940
      %980 = vmatprep.subr.mxu0 0.0
      %981 = vmatpush1.msra.mxu0 %v941
      %982 = vmatprep.subr.mxu0 0.0
      %983 = vmatpush1.msra.mxu0 %v942
      %984 = vmatprep.subr.mxu0 0.0
      %985 = vmatpush1.msra.mxu0 %v943
      %986 = vmatprep.subr.mxu0 0.0
      %987 = vmatpush1.msra.mxu0 %v944
      %988 = vmatprep.subr.mxu0 0.0
      %989 = vmatpush1.msra.mxu0 0.0
      %990 = vmatprep.subr.mxu0 0.0
      %991 = vmatpush1.msra.mxu0 0.0
      %992 = vmatprep.subr.mxu0 0.0
      %993 = vmatpush1.msra.mxu0 0.0
      %994 = vmatprep.subr.mxu0 0.0
      %995 = vmatpush1.msra.mxu0 0.0
      %996 = vmatprep.subr.mxu0 0.0
      %997 = vmatpush1.msra.mxu0 0.0
      %998 = vmatprep.subr.mxu0 0.0
      %999 = vmatpush1.msra.mxu0 0.0
      %1000 = vmatprep.subr.mxu0 0.0
      %1001 = vmatpush1.msra.mxu0 0.0
      %1002 = vmatprep.subr.mxu0 0.0
      %1003 = vmatpush1.msra.mxu0 0.0
      %1004 = vmatprep.subr.mxu0 0.0
      %1005 = vmatpush1.msra.mxu0 0.0
      %1006 = vmatprep.subr.mxu0 0.0
      %1007 = vmatpush1.msra.mxu0 0.0
      %1008 = vmatprep.subr.mxu0 0.0
      %1009 = vmatpush1.msra.mxu0 0.0
      %1010 = vmatprep.subr.mxu0 0.0
      %1011 = vmatpush1.msra.mxu0 0.0
      %1012 = vmatprep.subr.mxu0 0.0
      %1013 = vmatpush1.msra.mxu0 0.0
      %1014 = vmatprep.subr.mxu0 0.0
      %1015 = vmatpush1.msra.mxu0 0.0
      %1016 = vmatprep.subr.mxu0 0.0
      %1017 = vmatpush1.msra.mxu0 0.0
      %1018 = vmatprep.subr.mxu0 0.0
      %1019 = vmatpush1.msra.mxu0 0.0
      %1020 = vmatprep.subr.mxu0 0.0
      %1021 = vmatpush1.msra.mxu0 0.0
      %1022 = vmatprep.subr.mxu0 0.0
      %1023 = vmatpush1.msra.mxu0 0.0
      %1024 = vmatprep.subr.mxu0 0.0
      %1025 = vmatpush1.msra.mxu0 0.0
      %1026 = vmatprep.subr.mxu0 0.0
      %1027 = vmatpush1.msra.mxu0 0.0
      %1028 = vmatprep.subr.mxu0 0.0
      %1029 = vmatpush1.msra.mxu0 0.0
      %1030 = vmatprep.subr.mxu0 0.0
      %1031 = vmatpush1.msra.mxu0 0.0
      %1032 = vmatprep.subr.mxu0 0.0
      %1033 = vmatpush1.msra.mxu0 0.0
      %1034 = vmatprep.mubr.f32.mxu0 0.0
      %1035 = vmatmul.mubr.f32.gmra.mrb[0].mxu0 %v947
      %v1036 = vpop.f32.mrb[0].mxu0
      %v1037 = vadd.f32 0.0, %v1036
      %v1038 = vpop.f32.mrb[0].mxu0
      %1039 = vmatprep.mubr.f32.mxu0 0.0
      %1040 = vmatmul.mubr.f32.gmra.mrb[0].mxu0 %v950
      %v1041 = vpop.f32.mrb[0].mxu0
      %v1042 = vadd.f32 0.0, %v1041
      %v1043 = vpop.f32.mrb[0].mxu0
      %1044 = vmatprep.mubr.f32.mxu0 0.0
      %1045 = vmatmul.mubr.f32.gmra.mrb[0].mxu0 %v953
      %v1046 = vpop.f32.mrb[0].mxu0
      %v1047 = vadd.f32 0.0, %v1046
      %v1048 = vpop.f32.mrb[0].mxu0
      %1049 = vmatprep.mubr.f32.mxu0 0.0
      %1050 = vmatmul.mubr.f32.gmra.mrb[0].mxu0 %v956
      %v1051 = vpop.f32.mrb[0].mxu0
      %v1052 = vadd.f32 0.0, %v1051
      %v1053 = vpop.f32.mrb[0].mxu0
      %1054 = vmatprep.mubr.f32.mxu0 0.0
      %1055 = vmatmul.mubr.f32.gmra.mrb[0].mxu0 %v959
      %v1056 = vpop.f32.mrb[0].mxu0
      %v1057 = vadd.f32 0.0, %v1056
      %v1058 = vpop.f32.mrb[0].mxu0
      %1059 = vmatprep.mubr.f32.mxu0 0.0
      %1060 = vmatmul.mubr.f32.gmra.mrb[0].mxu0 %v962
      %v1061 = vpop.f32.mrb[0].mxu0
      %v1062 = vadd.f32 0.0, %v1061
      %v1063 = vpop.f32.mrb[0].mxu0
      %1064 = vmatprep.mubr.f32.mxu0 0.0
      %1065 = vmatmul.mubr.f32.gmra.mrb[0].mxu0 %v965
      %v1066 = vpop.f32.mrb[0].mxu0
      %v1067 = vadd.f32 0.0, %v1066
      %v1068 = vpop.f32.mrb[0].mxu0
      %1069 = vmatprep.mubr.f32.mxu0 0.0
      %1070 = vmatmul.mubr.f32.gmra.mrb[0].mxu0 %v968
      %v1071 = vpop.f32.mrb[0].mxu0
      %v1072 = vadd.f32 0.0, %v1071
      %v1073 = vpop.f32.mrb[0].mxu0
      %1074 = vdwg.mxu0
      %1075 = vst.msk [vmem:[%s294] sm:$0xff] %vm864, %v1037
      %1076 = vst.msk [vmem:[%s294 + $0x8] sm:$0xff] %vm864, %v1042
      %1077 = vst.msk [vmem:[%s294 + $0x10] sm:$0xff] %vm864, %v1047
      %1078 = vst.msk [vmem:[%s294 + $0x18] sm:$0xff] %vm864, %v1052
      %1079 = vst.msk [vmem:[%s294 + $0x20] sm:$0xff] %vm864, %v1057
      %1080 = vst.msk [vmem:[%s294 + $0x28] sm:$0xff] %vm864, %v1062
      %1081 = vst.msk [vmem:[%s294 + $0x30] sm:$0xff] %vm864, %v1067
      %1082 = vst.msk [vmem:[%s294 + $0x38] sm:$0xff] %vm864, %v1072
      %v1083 = vsel %vm864, %v1037, 0.0
      %v1084 = vsel %vm864, %v1042, 0.0
      %v1085 = vadd.f32 %v1083, %v1084
      %v1086 = vsel %vm864, %v1047, 0.0
      %v1087 = vadd.f32 %v1085, %v1086
      %v1088 = vsel %vm864, %v1052, 0.0
      %v1089 = vadd.f32 %v1087, %v1088
      %v1090 = vsel %vm864, %v1057, 0.0
      %v1091 = vadd.f32 %v1089, %v1090
      %v1092 = vsel %vm864, %v1062, 0.0
      %v1093 = vadd.f32 %v1091, %v1092
      %v1094 = vsel %vm864, %v1067, 0.0
      %v1095 = vadd.f32 %v1093, %v1094
      %v1096 = vsel %vm864, %v1072, 0.0
      %v1097 = vadd.f32 %v1095, %v1096
      %v1098 = vrot.slane %v1097, 4
      %v1099 = vadd.f32 %v1097, %v1098
      %v1100 = vrot.slane %v1099, 2
      %v1101 = vadd.f32 %v1099, %v1100
      %v1102 = vrot.slane %v1101, 1
      %v1103 = vadd.f32 %v1101, %v1102
      %vm1104 = vcmask 57344
      %1105 = vst.msk [vmem:[%s301] sm:$0x1] %vm1104, %v1103
      %v1106 = vmul.f32 %v1037, %v1037
      %v1107 = vmul.f32 %v1042, %v1042
      %v1108 = vmul.f32 %v1047, %v1047
      %v1109 = vmul.f32 %v1052, %v1052
      %v1110 = vmul.f32 %v1057, %v1057
      %v1111 = vmul.f32 %v1062, %v1062
      %v1112 = vmul.f32 %v1067, %v1067
      %v1113 = vmul.f32 %v1072, %v1072
      %v1114 = vsel %vm864, %v1106, 0.0
      %v1115 = vsel %vm864, %v1107, 0.0
      %v1116 = vadd.f32 %v1114, %v1115
      %v1117 = vsel %vm864, %v1108, 0.0
      %v1118 = vadd.f32 %v1116, %v1117
      %v1119 = vsel %vm864, %v1109, 0.0
      %v1120 = vadd.f32 %v1118, %v1119
      %v1121 = vsel %vm864, %v1110, 0.0
      %v1122 = vadd.f32 %v1120, %v1121
      %v1123 = vsel %vm864, %v1111, 0.0
      %v1124 = vadd.f32 %v1122, %v1123
      %v1125 = vsel %vm864, %v1112, 0.0
      %v1126 = vadd.f32 %v1124, %v1125
      %v1127 = vsel %vm864, %v1113, 0.0
      %v1128 = vadd.f32 %v1126, %v1127
      %v1129 = vrot.slane %v1128, 4
      %v1130 = vadd.f32 %v1128, %v1129
      %v1131 = vrot.slane %v1130, 2
      %v1132 = vadd.f32 %v1130, %v1131
      %v1133 = vrot.slane %v1132, 1
      %v1134 = vadd.f32 %v1132, %v1133
      %1135 = vst.msk [vmem:[%s307] sm:$0x1] %vm1104, %v1134
      %s1136 = smul.u32 8, %s23
      %p1137 = scmp.lt.s32.totalorder %s22, 1
      %s1138 = scalar_select %p1137, %s22, 1
      %p1139 = scmp.lt.s32.totalorder %s1136, 7
      %s1140 = scalar_select %p1139, %s1136, 7
      %s1141 = smul.addr %s1138, 8
      %s1142 = sadd.s32 %s1140, %s1141
      %s1143 = smul.addr %s1142, 8
      %s1144 = scalar_lea.vmem %s4, %s1143
      %p1145 = scmp.lt.s32.totalorder %s22, 1
      %s1146 = scalar_select %p1145, %s22, 1
      %p1147 = scmp.lt.s32.totalorder %s23, 0
      %s1148 = scalar_select %p1147, %s23, 0
      %s1149 = sadd.s32 %s1148, %s1146
      %s1150 = scalar_lea.vmem %s5, %s1149
      %p1151 = scmp.lt.s32.totalorder %s22, 1
      %s1152 = scalar_select %p1151, %s22, 1
      %p1153 = scmp.lt.s32.totalorder %s23, 0
      %s1154 = scalar_select %p1153, %s23, 0
      %s1155 = sadd.s32 %s1154, %s1152
      %s1156 = scalar_lea.vmem %s6, %s1155
      // Predicated region
      $region41: #{down_block.4} parent=35 // pred_check
        %p1157 = pneg %p139
      $region42: #{down_block.4} parent=35 // pred_check_branch
        %1159 = sbr.rel (%p1157) target = $region44
      $region43: #{down_block.4} parent=35 // pred_region
        %s1160 = smul.u32 8, %s23
      $region44: #{down_block.4} parent=35 // pred_fallthru
        _
      // Predicated region
      $region45: #{down_block.4} parent=35 // pred_check
        %p1161 = pneg %p167
      $region46: #{down_block.4} parent=35 // pred_check_branch
        %1163 = sbr.rel (%p1161) target = $region48
      $region47: #{down_block.4} parent=35 // pred_region
        _
      $region48: #{down_block.4} parent=35 // pred_fallthru
        _
      // Predicated region
      $region49: #{down_block.4} parent=35 // pred_check
        %p1164 = pneg %p195
      $region50: #{down_block.4} parent=35 // pred_check_branch
        %1166 = sbr.rel (%p1164) target = $region52
      $region51: #{down_block.4} parent=35 // pred_region
        _
      $region52: #{down_block.4} parent=35 // pred_fallthru
        _
    $region36: #{down_block.4} parent=5 // pred_fallthru
      _
    %p1167 = scmp.le.s32.totalorder 2, %s13
    // Predicated region
    $region53: #{down_block.4} parent=5 // pred_check
      %p1168 = pneg %p1167
    $region54: #{down_block.4} parent=5 // pred_check_branch
      %1170 = sbr.rel (%p1168) target = $region56
    $region55: #{down_block.4} parent=5 // pred_region
      %s1171 = ssub.s32 %s13, 2
      // Predicated region
      $region57: #{down_block.4} parent=55 // pred_check
        %p1172 = pneg %p145
      $region58: #{down_block.4} parent=55 // pred_check_branch
        %1174 = sbr.rel (%p1172) target = $region60
      $region59: #{down_block.4} parent=55 // pred_region
        %s1175 = smul.u32 8, %s25
        %p1176 = scmp.lt.s32.totalorder %s24, 1
        %s1177 = scalar_select %p1176, %s24, 1
        %p1178 = scmp.lt.s32.totalorder %s1175, 7
        %s1179 = scalar_select %p1178, %s1175, 7
        %s1180 = smul.addr %s1177, 8
        %s1181 = sadd.s32 %s1179, %s1180
        %s1182 = smul.addr %s1181, 8
        %s1183 = scalar_lea.vmem %s4, %s1182
      $region60: #{down_block.4} parent=55 // pred_fallthru
        _
      // Predicated region
      $region61: #{down_block.4} parent=55 // pred_check
        %p1184 = pneg %p173
      $region62: #{down_block.4} parent=55 // pred_check_branch
        %1186 = sbr.rel (%p1184) target = $region64
      $region63: #{down_block.4} parent=55 // pred_region
        %p1187 = scmp.lt.s32.totalorder %s24, 1
        %s1188 = scalar_select %p1187, %s24, 1
        %p1189 = scmp.lt.s32.totalorder %s25, 0
        %s1190 = scalar_select %p1189, %s25, 0
        %s1191 = sadd.s32 %s1190, %s1188
        %s1192 = scalar_lea.vmem %s5, %s1191
      $region64: #{down_block.4} parent=55 // pred_fallthru
        _
      // Predicated region
      $region65: #{down_block.4} parent=55 // pred_check
        %p1193 = pneg %p201
      $region66: #{down_block.4} parent=55 // pred_check_branch
        %1195 = sbr.rel (%p1193) target = $region68
      $region67: #{down_block.4} parent=55 // pred_region
        %p1196 = scmp.lt.s32.totalorder %s24, 1
        %s1197 = scalar_select %p1196, %s24, 1
        %p1198 = scmp.lt.s32.totalorder %s25, 0
        %s1199 = scalar_select %p1198, %s25, 0
        %s1200 = sadd.s32 %s1199, %s1197
        %s1201 = scalar_lea.vmem %s6, %s1200
      $region68: #{down_block.4} parent=55 // pred_fallthru
        _
    $region56: #{down_block.4} parent=5 // pred_fallthru
      _
  $region6: #{down_block.4} parent=0 // loop_footer
    %s17 = sadd.s32 1, %s13
  $region7: #{down_block.4} parent=0 // loop_footer_branch
    %12 = sbr.rel target = $region3
  $region8: #{down_block.4} parent=0 // loop_exit
    _

// kernel: down_block.3
$region0: #{down_block.3}
  #allocation0 [shape = 'u32[]', space=smem, size = 0x4, offset = 0x4, fixed_abs, tag = 'smem constant byte address 0x4 - core index']
  #allocation1 [shape = 'u32[144,128]{1,0:T(1,128)}', space=vmem, size = 0x12000, scoped, tag = 'internal scratch']
  #allocation2 [shape = 'f32[10,10,4]{2,1,0:T(8,128)}', space=vmem, size = 0x14000, scoped, tag = 'scratch operand']
  %s0 = inlined_call_operand.vmem [shape: f32[2,8,2,8,2,4], index: 0, kind: input, shape index: {}]
  %s1 = inlined_call_operand.vmem [shape: f32[36,8], index: 1, kind: input, shape index: {}]
  %s2 = inlined_call_operand.vmem [shape: f32[2,64,8], index: 2, kind: output, shape index: {0}]
  %s3 = inlined_call_operand.vmem [shape: f32[2,1,1,8], index: 3, kind: output, shape index: {1}]
  %s4 = inlined_call_operand.vmem [shape: f32[2,1,1,8], index: 4, kind: output, shape index: {2}]
  %5 = xla_tuple %s2, %s3, %s4
  %s6 = sld [smem:[#allocation0]]
  $region61: #{down_block.3} parent=0
    _
  %s8 = ssub.s32 1, %s6
  %s9 = scalar_select 0, %s8, %s6
  loop: start=0, step=1, limit=4
  $region2: #{down_block.3} parent=0 // loop_pre_header
    _
  $region3: #{down_block.3} parent=0 // loop_header
    %s11 = sphi 0, %s15
    %p12 = scmp.ge.s32.totalorder %s11, 4
    %s18 = sphi 0, %s30
    %s19 = sphi 0, %s26
    %s20 = sphi 0, %s18
    %s21 = sphi 0, %s19
    %s22 = sphi 0, %s20
    %s23 = sphi 0, %s21
    %s33 = sphi 0, %s35
    %s36 = sphi 0, %s33
    %s37 = sphi 0, %s36
    %s53 = sphi 0, %s37
    %s57 = sphi 0, %s57
    %s59 = sphi 0, %s57
    %s60 = sphi 0, %s59
    %s74 = sphi 0, %s60
    %s82 = sphi 0, %s84
    %s85 = sphi 0, %s82
    %s86 = sphi 0, %s85
    %s102 = sphi 0, %s86
    %s110 = sphi 0, %s112
    %s113 = sphi 0, %s110
    %s114 = sphi 0, %s113
    %s130 = sphi 0, %s114
    %s138 = sphi 0, %s140
    %s141 = sphi 0, %s138
    %s142 = sphi 0, %s141
    %s158 = sphi 0, %s142
  $region4: #{down_block.3} parent=0 // loop_header_branch
    %14 = sbr.rel (%p12) target = $region8
  $region5: #{down_block.3} parent=0 // loop_body
    %s16 = ssub.s32 %s11, 1
    %s17 = ssub.s32 %s11, 2
    %s24 = sadd.s32 1, %s19
    %p25 = scmp.ge.s32.totalorder %s24, 1
    %s26 = scalar_select %p25, 0, %s24
    %s27 = sadd.s32 1, %s18
    %s28 = scalar_select %p25, %s27, %s18
    %p29 = scmp.ge.s32.totalorder %s28, 2
    %s30 = scalar_select %p29, 0, %s28
    %s31 = ssub.s32 %s18, %s30
    %p32 = scmp.eq.s32.totalorder %s31, 0
    %s34 = sadd.s32 %s33, 1
    %s35 = scalar_select %p32, %s33, %s34
    %p38 = pneg %p32
    %p39 = scmp.eq.s32.totalorder %s11, 1
    %p40 = por %p38, %p39
    %p41 = scmp.ne.s32.totalorder %s33, %s36
    %p42 = scmp.eq.s32.totalorder %s11, 0
    %p43 = por %p41, %p42
    %p44 = scmp.ne.s32.totalorder %s33, %s36
    %p45 = scmp.eq.s32.totalorder %s16, 1
    %p46 = por %p44, %p45
    %p47 = scmp.ne.s32.totalorder %s36, %s37
    %p48 = scmp.eq.s32.totalorder %s16, 0
    %p49 = por %p47, %p48
    %p50 = scmp.ne.s32.totalorder %s36, %s37
    %p51 = scmp.eq.s32.totalorder %s17, 1
    %p52 = por %p50, %p51
    %p54 = scmp.ne.s32.totalorder %s37, %s53
    %p55 = scmp.eq.s32.totalorder %s17, 0
    %p56 = por %p54, %p55
    %s58 = sadd.s32 %s57, 1
    %p61 = scmp.eq.s32.totalorder %s11, 1
    %p62 = scmp.ne.s32.totalorder %s57, %s59
    %p63 = scmp.eq.s32.totalorder %s11, 0
    %p64 = por %p62, %p63
    %p65 = scmp.ne.s32.totalorder %s57, %s59
    %p66 = scmp.eq.s32.totalorder %s16, 1
    %p67 = por %p65, %p66
    %p68 = scmp.ne.s32.totalorder %s59, %s60
    %p69 = scmp.eq.s32.totalorder %s16, 0
    %p70 = por %p68, %p69
    %p71 = scmp.ne.s32.totalorder %s59, %s60
    %p72 = scmp.eq.s32.totalorder %s17, 1
    %p73 = por %p71, %p72
    %p75 = scmp.ne.s32.totalorder %s60, %s74
    %p76 = scmp.eq.s32.totalorder %s17, 0
    %p77 = por %p75, %p76
    %s78 = ssub.s32 %s18, %s30
    %s79 = ssub.s32 %s19, %s26
    %s80 = sor.u32 %s78, %s79
    %p81 = scmp.eq.s32.totalorder %s80, 0
    %s83 = sadd.s32 %s82, 1
    %s84 = scalar_select %p81, %s82, %s83
    %p87 = pneg %p81
    %p88 = scmp.eq.s32.totalorder %s11, 1
    %p89 = por %p87, %p88
    %p90 = scmp.ne.s32.totalorder %s82, %s85
    %p91 = scmp.eq.s32.totalorder %s11, 0
    %p92 = por %p90, %p91
    %p93 = scmp.ne.s32.totalorder %s82, %s85
    %p94 = scmp.eq.s32.totalorder %s16, 1
    %p95 = por %p93, %p94
    %p96 = scmp.ne.s32.totalorder %s85, %s86
    %p97 = scmp.eq.s32.totalorder %s16, 0
    %p98 = por %p96, %p97
    %p99 = scmp.ne.s32.totalorder %s85, %s86
    %p100 = scmp.eq.s32.totalorder %s17, 1
    %p101 = por %p99, %p100
    %p103 = scmp.ne.s32.totalorder %s86, %s102
    %p104 = scmp.eq.s32.totalorder %s17, 0
    %p105 = por %p103, %p104
    %s106 = ssub.s32 %s18, %s30
    %s107 = ssub.s32 %s19, %s26
    %s108 = sor.u32 %s106, %s107
    %p109 = scmp.eq.s32.totalorder %s108, 0
    %s111 = sadd.s32 %s110, 1
    %s112 = scalar_select %p109, %s110, %s111
    %p115 = pneg %p109
    %p116 = scmp.eq.s32.totalorder %s11, 1
    %p117 = por %p115, %p116
    %p118 = scmp.ne.s32.totalorder %s110, %s113
    %p119 = scmp.eq.s32.totalorder %s11, 0
    %p120 = por %p118, %p119
    %p121 = scmp.ne.s32.totalorder %s110, %s113
    %p122 = scmp.eq.s32.totalorder %s16, 1
    %p123 = por %p121, %p122
    %p124 = scmp.ne.s32.totalorder %s113, %s114
    %p125 = scmp.eq.s32.totalorder %s16, 0
    %p126 = por %p124, %p125
    %p127 = scmp.ne.s32.totalorder %s113, %s114
    %p128 = scmp.eq.s32.totalorder %s17, 1
    %p129 = por %p127, %p128
    %p131 = scmp.ne.s32.totalorder %s114, %s130
    %p132 = scmp.eq.s32.totalorder %s17, 0
    %p133 = por %p131, %p132
    %s134 = ssub.s32 %s18, %s30
    %s135 = ssub.s32 %s19, %s26
    %s136 = sor.u32 %s134, %s135
    %p137 = scmp.eq.s32.totalorder %s136, 0
    %s139 = sadd.s32 %s138, 1
    %s140 = scalar_select %p137, %s138, %s139
    %p143 = pneg %p137
    %p144 = scmp.eq.s32.totalorder %s11, 1
    %p145 = por %p143, %p144
    %p146 = scmp.ne.s32.totalorder %s138, %s141
    %p147 = scmp.eq.s32.totalorder %s11, 0
    %p148 = por %p146, %p147
    %p149 = scmp.ne.s32.totalorder %s138, %s141
    %p150 = scmp.eq.s32.totalorder %s16, 1
    %p151 = por %p149, %p150
    %p152 = scmp.ne.s32.totalorder %s141, %s142
    %p153 = scmp.eq.s32.totalorder %s16, 0
    %p154 = por %p152, %p153
    %p155 = scmp.ne.s32.totalorder %s141, %s142
    %p156 = scmp.eq.s32.totalorder %s17, 1
    %p157 = por %p155, %p156
    %p159 = scmp.ne.s32.totalorder %s142, %s158
    %p160 = scmp.eq.s32.totalorder %s17, 0
    %p161 = por %p159, %p160
    %p162 = scmp.le.s32.totalorder 1, %s11
    %p163 = scmp.lt.s32.totalorder %s11, 3
    %p164 = pnand %p162, %p163
    %p165 = pneg %p164
    // Predicated region
    $region9: #{down_block.3} parent=5 // pred_check
      _
    $region10: #{down_block.3} parent=5 // pred_check_branch
      %167 = sbr.rel (%p164) target = $region12
    $region11: #{down_block.3} parent=5 // pred_region
      %s168 = ssub.s32 %s11, 1
      // Predicated region
      $region13: #{down_block.3} parent=11 // pred_check
        %p169 = pneg %p70
      $region14: #{down_block.3} parent=11 // pred_check_branch
        %171 = sbr.rel (%p169) target = $region16
      $region15: #{down_block.3} parent=11 // pred_region
        _
      $region16: #{down_block.3} parent=11 // pred_fallthru
        _
    $region12: #{down_block.3} parent=5 // pred_fallthru
      _
    %p172 = scmp.lt.s32.totalorder %s11, 2
    // Predicated region
    $region17: #{down_block.3} parent=5 // pred_check
      %p173 = pneg %p172
    $region18: #{down_block.3} parent=5 // pred_check_branch
      %175 = sbr.rel (%p173) target = $region20
    $region19: #{down_block.3} parent=5 // pred_region
      // Predicated region
      $region21: #{down_block.3} parent=19 // pred_check
        %p176 = pneg %p43
      $region22: #{down_block.3} parent=19 // pred_check_branch
        %178 = sbr.rel (%p176) target = $region24
      $region23: #{down_block.3} parent=19 // pred_region
        %p179 = scmp.lt.s32.totalorder %s18, 1
        %s180 = scalar_select %p179, %s18, 1
        %s181 = smul.addr %s180, 128
        %s182 = smul.addr %s181, 2
        %s183 = scalar_lea.vmem %s0, %s182
      $region24: #{down_block.3} parent=19 // pred_fallthru
        _
    $region20: #{down_block.3} parent=5 // pred_fallthru
      _
    %p184 = scmp.le.s32.totalorder 1, %s11
    %p185 = scmp.lt.s32.totalorder %s11, 3
    %p186 = pnand %p184, %p185
    %p187 = pneg %p186
    // Predicated region
    $region25: #{down_block.3} parent=5 // pred_check
      _
    $region26: #{down_block.3} parent=5 // pred_check_branch
      %189 = sbr.rel (%p186) target = $region28
    $region27: #{down_block.3} parent=5 // pred_region
      %s190 = ssub.s32 %s11, 1
      %p191 = scmp.lt.s32.totalorder %s20, 1
      %s192 = scalar_select %p191, %s20, 1
      %s193 = smul.addr %s192, 128
      %s194 = smul.addr %s193, 2
      %s195 = scalar_lea.vmem %s0, %s194
      %p196 = pneg %p49
      %p197 = pneg %p46
      %p198 = pneg %p70
      %p199 = pneg %p67
      %p200 = pneg %p98
      %p201 = pneg %p95
      %s202 = smul.u32 8, %s21
      %p203 = scmp.lt.s32.totalorder %s20, 1
      %s204 = scalar_select %p203, %s20, 1
      %p205 = scmp.lt.s32.totalorder %s202, 7
      %s206 = scalar_select %p205, %s202, 7
      %s207 = smul.addr %s204, 8
      %s208 = sadd.s32 %s206, %s207
      %s209 = smul.addr %s208, 8
      %s210 = scalar_lea.vmem %s2, %s209
      %p211 = pneg %p126
      %p212 = pneg %p123
      %p213 = scmp.lt.s32.totalorder %s20, 1
      %s214 = scalar_select %p213, %s20, 1
      %p215 = scmp.lt.s32.totalorder %s21, 0
      %s216 = scalar_select %p215, %s21, 0
      %s217 = sadd.s32 %s216, %s214
      %s218 = scalar_lea.vmem %s3, %s217
      %p219 = pneg %p154
      %p220 = pneg %p151
      %p221 = scmp.lt.s32.totalorder %s20, 1
      %s222 = scalar_select %p221, %s20, 1
      %p223 = scmp.lt.s32.totalorder %s21, 0
      %s224 = scalar_select %p223, %s21, 0
      %s225 = sadd.s32 %s224, %s222
      %s226 = scalar_lea.vmem %s4, %s225
      %p227 = scmp.lt.s32.totalorder %s20, 1
      %s228 = scalar_select %p227, %s20, 1
      %s229 = smul.addr %s228, 128
      %s230 = smul.addr %s229, 2
      %s231 = scalar_lea.vmem %s0, %s230
      %s232 = smul.u32 8, %s21
      %p233 = scmp.lt.s32.totalorder %s20, 1
      %s234 = scalar_select %p233, %s20, 1
      %p235 = scmp.lt.s32.totalorder %s232, 7
      %s236 = scalar_select %p235, %s232, 7
      %s237 = smul.addr %s234, 8
      %s238 = sadd.s32 %s236, %s237
      %s239 = smul.addr %s238, 8
      %s240 = scalar_lea.vmem %s2, %s239
      %s241 = smul.u32 8, %s21
      %p242 = scmp.lt.s32.totalorder %s20, 1
      %s243 = scalar_select %p242, %s20, 1
      %p244 = scmp.lt.s32.totalorder %s21, 0
      %s245 = scalar_select %p244, %s21, 0
      %s246 = sadd.s32 %s245, %s243
      %s247 = scalar_lea.vmem %s3, %s246
      %p248 = scmp.lt.s32.totalorder %s20, 1
      %s249 = scalar_select %p248, %s20, 1
      %p250 = scmp.lt.s32.totalorder %s21, 0
      %s251 = scalar_select %p250, %s21, 0
      %s252 = sadd.s32 %s251, %s249
      %s253 = scalar_lea.vmem %s4, %s252
      %p254 = scmp.eq.s32.totalorder %s21, 0
      // Predicated region
      $region29: #{down_block.3} parent=27 // pred_check
        %p255 = pneg %p254
      $region30: #{down_block.3} parent=27 // pred_check_branch
        %257 = sbr.rel (%p255) target = $region32
      $region31: #{down_block.3} parent=27 // pred_region
        %v258 = vld [vmem:[%s231] sm:$0x3]
        %v259 = vld [vmem:[%s231 + $0x2] sm:$0x3]
        %v260 = vld [vmem:[%s231 + $0x4] sm:$0x3]
        %v261 = vld [vmem:[%s231 + $0x6] sm:$0x3]
        %v262 = vld [vmem:[%s231 + $0x8] sm:$0x3]
        %v263 = vld [vmem:[%s231 + $0xa] sm:$0x3]
        %v264 = vld [vmem:[%s231 + $0xc] sm:$0x3]
        %v265 = vld [vmem:[%s231 + $0xe] sm:$0x3]
        %v266 = vld [vmem:[%s231 + $0x10] sm:$0x3]
        %v267 = vld [vmem:[%s231 + $0x12] sm:$0x3]
        %v268 = vld [vmem:[%s231 + $0x14] sm:$0x3]
        %v269 = vld [vmem:[%s231 + $0x16] sm:$0x3]
        %v270 = vld [vmem:[%s231 + $0x18] sm:$0x3]
        %v271 = vld [vmem:[%s231 + $0x1a] sm:$0x3]
        %v272 = vld [vmem:[%s231 + $0x1c] sm:$0x3]
        %v273 = vld [vmem:[%s231 + $0x1e] sm:$0x3]
        %v274 = vld [vmem:[%s231 + $0x20] sm:$0x3]
        %v275 = vld [vmem:[%s231 + $0x22] sm:$0x3]
        %v276 = vld [vmem:[%s231 + $0x24] sm:$0x3]
        %v277 = vld [vmem:[%s231 + $0x26] sm:$0x3]
        %v278 = vld [vmem:[%s231 + $0x28] sm:$0x3]
        %v279 = vld [vmem:[%s231 + $0x2a] sm:$0x3]
        %v280 = vld [vmem:[%s231 + $0x2c] sm:$0x3]
        %v281 = vld [vmem:[%s231 + $0x2e] sm:$0x3]
        %v282 = vld [vmem:[%s231 + $0x30] sm:$0x3]
        %v283 = vld [vmem:[%s231 + $0x32] sm:$0x3]
        %v284 = vld [vmem:[%s231 + $0x34] sm:$0x3]
        %v285 = vld [vmem:[%s231 + $0x36] sm:$0x3]
        %v286 = vld [vmem:[%s231 + $0x38] sm:$0x3]
        %v287 = vld [vmem:[%s231 + $0x3a] sm:$0x3]
        %v288 = vld [vmem:[%s231 + $0x3c] sm:$0x3]
        %v289 = vld [vmem:[%s231 + $0x3e] sm:$0x3]
        %v290 = vld [vmem:[%s231 + $0x40] sm:$0x3]
        %v291 = vld [vmem:[%s231 + $0x42] sm:$0x3]
        %v292 = vld [vmem:[%s231 + $0x44] sm:$0x3]
        %v293 = vld [vmem:[%s231 + $0x46] sm:$0x3]
        %v294 = vld [vmem:[%s231 + $0x48] sm:$0x3]
        %v295 = vld [vmem:[%s231 + $0x4a] sm:$0x3]
        %v296 = vld [vmem:[%s231 + $0x4c] sm:$0x3]
        %v297 = vld [vmem:[%s231 + $0x4e] sm:$0x3]
        %v298 = vld [vmem:[%s231 + $0x50] sm:$0x3]
        %v299 = vld [vmem:[%s231 + $0x52] sm:$0x3]
        %v300 = vld [vmem:[%s231 + $0x54] sm:$0x3]
        %v301 = vld [vmem:[%s231 + $0x56] sm:$0x3]
        %v302 = vld [vmem:[%s231 + $0x58] sm:$0x3]
        %v303 = vld [vmem:[%s231 + $0x5a] sm:$0x3]
        %v304 = vld [vmem:[%s231 + $0x5c] sm:$0x3]
        %v305 = vld [vmem:[%s231 + $0x5e] sm:$0x3]
        %v306 = vld [vmem:[%s231 + $0x60] sm:$0x3]
        %v307 = vld [vmem:[%s231 + $0x62] sm:$0x3]
        %v308 = vld [vmem:[%s231 + $0x64] sm:$0x3]
        %v309 = vld [vmem:[%s231 + $0x66] sm:$0x3]
        %v310 = vld [vmem:[%s231 + $0x68] sm:$0x3]
        %v311 = vld [vmem:[%s231 + $0x6a] sm:$0x3]
        %v312 = vld [vmem:[%s231 + $0x6c] sm:$0x3]
        %v313 = vld [vmem:[%s231 + $0x6e] sm:$0x3]
        %v314 = vld [vmem:[%s231 + $0x70] sm:$0x3]
        %v315 = vld [vmem:[%s231 + $0x72] sm:$0x3]
        %v316 = vld [vmem:[%s231 + $0x74] sm:$0x3]
        %v317 = vld [vmem:[%s231 + $0x76] sm:$0x3]
        %v318 = vld [vmem:[%s231 + $0x78] sm:$0x3]
        %v319 = vld [vmem:[%s231 + $0x7a] sm:$0x3]
        %v320 = vld [vmem:[%s231 + $0x7c] sm:$0x3]
        %v321 = vld [vmem:[%s231 + $0x7e] sm:$0x3]
        %v322 = vld [vmem:[%s231 + $0x80] sm:$0x3]
        %v323 = vld [vmem:[%s231 + $0x82] sm:$0x3]
        %v324 = vld [vmem:[%s231 + $0x84] sm:$0x3]
        %v325 = vld [vmem:[%s231 + $0x86] sm:$0x3]
        %v326 = vld [vmem:[%s231 + $0x88] sm:$0x3]
        %v327 = vld [vmem:[%s231 + $0x8a] sm:$0x3]
        %v328 = vld [vmem:[%s231 + $0x8c] sm:$0x3]
        %v329 = vld [vmem:[%s231 + $0x8e] sm:$0x3]
        %v330 = vld [vmem:[%s231 + $0x90] sm:$0x3]
        %v331 = vld [vmem:[%s231 + $0x92] sm:$0x3]
        %v332 = vld [vmem:[%s231 + $0x94] sm:$0x3]
        %v333 = vld [vmem:[%s231 + $0x96] sm:$0x3]
        %v334 = vld [vmem:[%s231 + $0x98] sm:$0x3]
        %v335 = vld [vmem:[%s231 + $0x9a] sm:$0x3]
        %v336 = vld [vmem:[%s231 + $0x9c] sm:$0x3]
        %v337 = vld [vmem:[%s231 + $0x9e] sm:$0x3]
        %v338 = vld [vmem:[%s231 + $0xa0] sm:$0x3]
        %v339 = vld [vmem:[%s231 + $0xa2] sm:$0x3]
        %v340 = vld [vmem:[%s231 + $0xa4] sm:$0x3]
        %v341 = vld [vmem:[%s231 + $0xa6] sm:$0x3]
        %v342 = vld [vmem:[%s231 + $0xa8] sm:$0x3]
        %v343 = vld [vmem:[%s231 + $0xaa] sm:$0x3]
        %v344 = vld [vmem:[%s231 + $0xac] sm:$0x3]
        %v345 = vld [vmem:[%s231 + $0xae] sm:$0x3]
        %v346 = vld [vmem:[%s231 + $0xb0] sm:$0x3]
        %v347 = vld [vmem:[%s231 + $0xb2] sm:$0x3]
        %v348 = vld [vmem:[%s231 + $0xb4] sm:$0x3]
        %v349 = vld [vmem:[%s231 + $0xb6] sm:$0x3]
        %v350 = vld [vmem:[%s231 + $0xb8] sm:$0x3]
        %v351 = vld [vmem:[%s231 + $0xba] sm:$0x3]
        %v352 = vld [vmem:[%s231 + $0xbc] sm:$0x3]
        %v353 = vld [vmem:[%s231 + $0xbe] sm:$0x3]
        %v354 = vld [vmem:[%s231 + $0xc0] sm:$0x3]
        %v355 = vld [vmem:[%s231 + $0xc2] sm:$0x3]
        %v356 = vld [vmem:[%s231 + $0xc4] sm:$0x3]
        %v357 = vld [vmem:[%s231 + $0xc6] sm:$0x3]
        %v358 = vld [vmem:[%s231 + $0xc8] sm:$0x3]
        %v359 = vld [vmem:[%s231 + $0xca] sm:$0x3]
        %v360 = vld [vmem:[%s231 + $0xcc] sm:$0x3]
        %v361 = vld [vmem:[%s231 + $0xce] sm:$0x3]
        %v362 = vld [vmem:[%s231 + $0xd0] sm:$0x3]
        %v363 = vld [vmem:[%s231 + $0xd2] sm:$0x3]
        %v364 = vld [vmem:[%s231 + $0xd4] sm:$0x3]
        %v365 = vld [vmem:[%s231 + $0xd6] sm:$0x3]
        %v366 = vld [vmem:[%s231 + $0xd8] sm:$0x3]
        %v367 = vld [vmem:[%s231 + $0xda] sm:$0x3]
        %v368 = vld [vmem:[%s231 + $0xdc] sm:$0x3]
        %v369 = vld [vmem:[%s231 + $0xde] sm:$0x3]
        %v370 = vld [vmem:[%s231 + $0xe0] sm:$0x3]
        %v371 = vld [vmem:[%s231 + $0xe2] sm:$0x3]
        %v372 = vld [vmem:[%s231 + $0xe4] sm:$0x3]
        %v373 = vld [vmem:[%s231 + $0xe6] sm:$0x3]
        %v374 = vld [vmem:[%s231 + $0xe8] sm:$0x3]
        %v375 = vld [vmem:[%s231 + $0xea] sm:$0x3]
        %v376 = vld [vmem:[%s231 + $0xec] sm:$0x3]
        %v377 = vld [vmem:[%s231 + $0xee] sm:$0x3]
        %v378 = vld [vmem:[%s231 + $0xf0] sm:$0x3]
        %v379 = vld [vmem:[%s231 + $0xf2] sm:$0x3]
        %v380 = vld [vmem:[%s231 + $0xf4] sm:$0x3]
        %v381 = vld [vmem:[%s231 + $0xf6] sm:$0x3]
        %v382 = vld [vmem:[%s231 + $0xf8] sm:$0x3]
        %v383 = vld [vmem:[%s231 + $0xfa] sm:$0x3]
        %v384 = vld [vmem:[%s231 + $0xfc] sm:$0x3]
        %v385 = vld [vmem:[%s231 + $0xfe] sm:$0x3]
        %v450 = vrot.slane %v258, 1
        %v451 = vrot.slane %v259, 1
        %v452 = vrot.slane %v260, 1
        %v453 = vrot.slane %v261, 1
        %v454 = vrot.slane %v262, 1
        %v455 = vrot.slane %v263, 1
        %v456 = vrot.slane %v264, 1
        %v457 = vrot.slane %v265, 1
        %v458 = vrot.slane %v274, 1
        %v459 = vrot.slane %v275, 1
        %v460 = vrot.slane %v276, 1
        %v461 = vrot.slane %v277, 1
        %v462 = vrot.slane %v278, 1
        %v463 = vrot.slane %v279, 1
        %v464 = vrot.slane %v280, 1
        %v465 = vrot.slane %v281, 1
        %v466 = vrot.slane %v290, 1
        %v467 = vrot.slane %v291, 1
        %v468 = vrot.slane %v292, 1
        %v469 = vrot.slane %v293, 1
        %v470 = vrot.slane %v294, 1
        %v471 = vrot.slane %v295, 1
        %v472 = vrot.slane %v296, 1
        %v473 = vrot.slane %v297, 1
        %v474 = vrot.slane %v306, 1
        %v475 = vrot.slane %v307, 1
        %v476 = vrot.slane %v308, 1
        %v477 = vrot.slane %v309, 1
        %v478 = vrot.slane %v310, 1
        %v479 = vrot.slane %v311, 1
        %v480 = vrot.slane %v312, 1
        %v481 = vrot.slane %v313, 1
        %v482 = vrot.slane %v322, 1
        %v483 = vrot.slane %v323, 1
        %v484 = vrot.slane %v324, 1
        %v485 = vrot.slane %v325, 1
        %v486 = vrot.slane %v326, 1
        %v487 = vrot.slane %v327, 1
        %v488 = vrot.slane %v328, 1
        %v489 = vrot.slane %v329, 1
        %v490 = vrot.slane %v338, 1
        %v491 = vrot.slane %v339, 1
        %v492 = vrot.slane %v340, 1
        %v493 = vrot.slane %v341, 1
        %v494 = vrot.slane %v342, 1
        %v495 = vrot.slane %v343, 1
        %v496 = vrot.slane %v344, 1
        %v497 = vrot.slane %v345, 1
        %v498 = vrot.slane %v354, 1
        %v499 = vrot.slane %v355, 1
        %v500 = vrot.slane %v356, 1
        %v501 = vrot.slane %v357, 1
        %v502 = vrot.slane %v358, 1
        %v503 = vrot.slane %v359, 1
        %v504 = vrot.slane %v360, 1
        %v505 = vrot.slane %v361, 1
        %v506 = vrot.slane %v370, 1
        %v507 = vrot.slane %v371, 1
        %v508 = vrot.slane %v372, 1
        %v509 = vrot.slane %v373, 1
        %v510 = vrot.slane %v374, 1
        %v511 = vrot.slane %v375, 1
        %v512 = vrot.slane %v376, 1
        %v513 = vrot.slane %v377, 1
        %v578 = vmax.f32 %v258, %v450
        %v579 = vmax.f32 %v259, %v451
        %v580 = vmax.f32 %v260, %v452
        %v581 = vmax.f32 %v261, %v453
        %v582 = vmax.f32 %v262, %v454
        %v583 = vmax.f32 %v263, %v455
        %v584 = vmax.f32 %v264, %v456
        %v585 = vmax.f32 %v265, %v457
        %v586 = vmax.f32 %v274, %v458
        %v587 = vmax.f32 %v275, %v459
        %v588 = vmax.f32 %v276, %v460
        %v589 = vmax.f32 %v277, %v461
        %v590 = vmax.f32 %v278, %v462
        %v591 = vmax.f32 %v279, %v463
        %v592 = vmax.f32 %v280, %v464
        %v593 = vmax.f32 %v281, %v465
        %v594 = vmax.f32 %v290, %v466
        %v595 = vmax.f32 %v291, %v467
        %v596 = vmax.f32 %v292, %v468
        %v597 = vmax.f32 %v293, %v469
        %v598 = vmax.f32 %v294, %v470
        %v599 = vmax.f32 %v295, %v471
        %v600 = vmax.f32 %v296, %v472
        %v601 = vmax.f32 %v297, %v473
        %v602 = vmax.f32 %v306, %v474
        %v603 = vmax.f32 %v307, %v475
        %v604 = vmax.f32 %v308, %v476
        %v605 = vmax.f32 %v309, %v477
        %v606 = vmax.f32 %v310, %v478
        %v607 = vmax.f32 %v311, %v479
        %v608 = vmax.f32 %v312, %v480
        %v609 = vmax.f32 %v313, %v481
        %v610 = vmax.f32 %v322, %v482
        %v611 = vmax.f32 %v323, %v483
        %v612 = vmax.f32 %v324, %v484
        %v613 = vmax.f32 %v325, %v485
        %v614 = vmax.f32 %v326, %v486
        %v615 = vmax.f32 %v327, %v487
        %v616 = vmax.f32 %v328, %v488
        %v617 = vmax.f32 %v329, %v489
        %v618 = vmax.f32 %v338, %v490
        %v619 = vmax.f32 %v339, %v491
        %v620 = vmax.f32 %v340, %v492
        %v621 = vmax.f32 %v341, %v493
        %v622 = vmax.f32 %v342, %v494
        %v623 = vmax.f32 %v343, %v495
        %v624 = vmax.f32 %v344, %v496
        %v625 = vmax.f32 %v345, %v497
        %v626 = vmax.f32 %v354, %v498
        %v627 = vmax.f32 %v355, %v499
        %v628 = vmax.f32 %v356, %v500
        %v629 = vmax.f32 %v357, %v501
        %v630 = vmax.f32 %v358, %v502
        %v631 = vmax.f32 %v359, %v503
        %v632 = vmax.f32 %v360, %v504
        %v633 = vmax.f32 %v361, %v505
        %v634 = vmax.f32 %v370, %v506
        %v635 = vmax.f32 %v371, %v507
        %v636 = vmax.f32 %v372, %v508
        %v637 = vmax.f32 %v373, %v509
        %v638 = vmax.f32 %v374, %v510
        %v639 = vmax.f32 %v375, %v511
        %v640 = vmax.f32 %v376, %v512
        %v641 = vmax.f32 %v377, %v513
        %v706 = vrot.slane %v266, 1
        %v707 = vrot.slane %v267, 1
        %v708 = vrot.slane %v268, 1
        %v709 = vrot.slane %v269, 1
        %v710 = vrot.slane %v270, 1
        %v711 = vrot.slane %v271, 1
        %v712 = vrot.slane %v272, 1
        %v713 = vrot.slane %v273, 1
        %v714 = vrot.slane %v282, 1
        %v715 = vrot.slane %v283, 1
        %v716 = vrot.slane %v284, 1
        %v717 = vrot.slane %v285, 1
        %v718 = vrot.slane %v286, 1
        %v719 = vrot.slane %v287, 1
        %v720 = vrot.slane %v288, 1
        %v721 = vrot.slane %v289, 1
        %v722 = vrot.slane %v298, 1
        %v723 = vrot.slane %v299, 1
        %v724 = vrot.slane %v300, 1
        %v725 = vrot.slane %v301, 1
        %v726 = vrot.slane %v302, 1
        %v727 = vrot.slane %v303, 1
        %v728 = vrot.slane %v304, 1
        %v729 = vrot.slane %v305, 1
        %v730 = vrot.slane %v314, 1
        %v731 = vrot.slane %v315, 1
        %v732 = vrot.slane %v316, 1
        %v733 = vrot.slane %v317, 1
        %v734 = vrot.slane %v318, 1
        %v735 = vrot.slane %v319, 1
        %v736 = vrot.slane %v320, 1
        %v737 = vrot.slane %v321, 1
        %v738 = vrot.slane %v330, 1
        %v739 = vrot.slane %v331, 1
        %v740 = vrot.slane %v332, 1
        %v741 = vrot.slane %v333, 1
        %v742 = vrot.slane %v334, 1
        %v743 = vrot.slane %v335, 1
        %v744 = vrot.slane %v336, 1
        %v745 = vrot.slane %v337, 1
        %v746 = vrot.slane %v346, 1
        %v747 = vrot.slane %v347, 1
        %v748 = vrot.slane %v348, 1
        %v749 = vrot.slane %v349, 1
        %v750 = vrot.slane %v350, 1
        %v751 = vrot.slane %v351, 1
        %v752 = vrot.slane %v352, 1
        %v753 = vrot.slane %v353, 1
        %v754 = vrot.slane %v362, 1
        %v755 = vrot.slane %v363, 1
        %v756 = vrot.slane %v364, 1
        %v757 = vrot.slane %v365, 1
        %v758 = vrot.slane %v366, 1
        %v759 = vrot.slane %v367, 1
        %v760 = vrot.slane %v368, 1
        %v761 = vrot.slane %v369, 1
        %v762 = vrot.slane %v378, 1
        %v763 = vrot.slane %v379, 1
        %v764 = vrot.slane %v380, 1
        %v765 = vrot.slane %v381, 1
        %v766 = vrot.slane %v382, 1
        %v767 = vrot.slane %v383, 1
        %v768 = vrot.slane %v384, 1
        %v769 = vrot.slane %v385, 1
        %v834 = vmax.f32 %v266, %v706
        %v835 = vmax.f32 %v267, %v707
        %v836 = vmax.f32 %v268, %v708
        %v837 = vmax.f32 %v269, %v709
        %v838 = vmax.f32 %v270, %v710
        %v839 = vmax.f32 %v271, %v711
        %v840 = vmax.f32 %v272, %v712
        %v841 = vmax.f32 %v273, %v713
        %v842 = vmax.f32 %v282, %v714
        %v843 = vmax.f32 %v283, %v715
        %v844 = vmax.f32 %v284, %v716
        %v845 = vmax.f32 %v285, %v717
        %v846 = vmax.f32 %v286, %v718
        %v847 = vmax.f32 %v287, %v719
        %v848 = vmax.f32 %v288, %v720
        %v849 = vmax.f32 %v289, %v721
        %v850 = vmax.f32 %v298, %v722
        %v851 = vmax.f32 %v299, %v723
        %v852 = vmax.f32 %v300, %v724
        %v853 = vmax.f32 %v301, %v725
        %v854 = vmax.f32 %v302, %v726
        %v855 = vmax.f32 %v303, %v727
        %v856 = vmax.f32 %v304, %v728
        %v857 = vmax.f32 %v305, %v729
        %v858 = vmax.f32 %v314, %v730
        %v859 = vmax.f32 %v315, %v731
        %v860 = vmax.f32 %v316, %v732
        %v861 = vmax.f32 %v317, %v733
        %v862 = vmax.f32 %v318, %v734
        %v863 = vmax.f32 %v319, %v735
        %v864 = vmax.f32 %v320, %v736
        %v865 = vmax.f32 %v321, %v737
        %v866 = vmax.f32 %v330, %v738
        %v867 = vmax.f32 %v331, %v739
        %v868 = vmax.f32 %v332, %v740
        %v869 = vmax.f32 %v333, %v741
        %v870 = vmax.f32 %v334, %v742
        %v871 = vmax.f32 %v335, %v743
        %v872 = vmax.f32 %v336, %v744
        %v873 = vmax.f32 %v337, %v745
        %v874 = vmax.f32 %v346, %v746
        %v875 = vmax.f32 %v347, %v747
        %v876 = vmax.f32 %v348, %v748
        %v877 = vmax.f32 %v349, %v749
        %v878 = vmax.f32 %v350, %v750
        %v879 = vmax.f32 %v351, %v751
        %v880 = vmax.f32 %v352, %v752
        %v881 = vmax.f32 %v353, %v753
        %v882 = vmax.f32 %v362, %v754
        %v883 = vmax.f32 %v363, %v755
        %v884 = vmax.f32 %v364, %v756
        %v885 = vmax.f32 %v365, %v757
        %v886 = vmax.f32 %v366, %v758
        %v887 = vmax.f32 %v367, %v759
        %v888 = vmax.f32 %v368, %v760
        %v889 = vmax.f32 %v369, %v761
        %v890 = vmax.f32 %v378, %v762
        %v891 = vmax.f32 %v379, %v763
        %v892 = vmax.f32 %v380, %v764
        %v893 = vmax.f32 %v381, %v765
        %v894 = vmax.f32 %v382, %v766
        %v895 = vmax.f32 %v383, %v767
        %v896 = vmax.f32 %v384, %v768
        %v897 = vmax.f32 %v385, %v769
        %v898 = vmax.f32 %v578, %v834
        %v899 = vmax.f32 %v579, %v835
        %v900 = vmax.f32 %v580, %v836
        %v901 = vmax.f32 %v581, %v837
        %v902 = vmax.f32 %v582, %v838
        %v903 = vmax.f32 %v583, %v839
        %v904 = vmax.f32 %v584, %v840
        %v905 = vmax.f32 %v585, %v841
        %v906 = vmax.f32 %v586, %v842
        %v907 = vmax.f32 %v587, %v843
        %v908 = vmax.f32 %v588, %v844
        %v909 = vmax.f32 %v589, %v845
        %v910 = vmax.f32 %v590, %v846
        %v911 = vmax.f32 %v591, %v847
        %v912 = vmax.f32 %v592, %v848
        %v913 = vmax.f32 %v593, %v849
        %v914 = vmax.f32 %v594, %v850
        %v915 = vmax.f32 %v595, %v851
        %v916 = vmax.f32 %v596, %v852
        %v917 = vmax.f32 %v597, %v853
        %v918 = vmax.f32 %v598, %v854
        %v919 = vmax.f32 %v599, %v855
        %v920 = vmax.f32 %v600, %v856
        %v921 = vmax.f32 %v601, %v857
        %v922 = vmax.f32 %v602, %v858
        %v923 = vmax.f32 %v603, %v859
        %v924 = vmax.f32 %v604, %v860
        %v925 = vmax.f32 %v605, %v861
        %v926 = vmax.f32 %v606, %v862
        %v927 = vmax.f32 %v607, %v863
        %v928 = vmax.f32 %v608, %v864
        %v929 = vmax.f32 %v609, %v865
        %v930 = vmax.f32 %v610, %v866
        %v931 = vmax.f32 %v611, %v867
        %v932 = vmax.f32 %v612, %v868
        %v933 = vmax.f32 %v613, %v869
        %v934 = vmax.f32 %v614, %v870
        %v935 = vmax.f32 %v615, %v871
        %v936 = vmax.f32 %v616, %v872
        %v937 = vmax.f32 %v617, %v873
        %v938 = vmax.f32 %v618, %v874
        %v939 = vmax.f32 %v619, %v875
        %v940 = vmax.f32 %v620, %v876
        %v941 = vmax.f32 %v621, %v877
        %v942 = vmax.f32 %v622, %v878
        %v943 = vmax.f32 %v623, %v879
        %v944 = vmax.f32 %v624, %v880
        %v945 = vmax.f32 %v625, %v881
        %v946 = vmax.f32 %v626, %v882
        %v947 = vmax.f32 %v627, %v883
        %v948 = vmax.f32 %v628, %v884
        %v949 = vmax.f32 %v629, %v885
        %v950 = vmax.f32 %v630, %v886
        %v951 = vmax.f32 %v631, %v887
        %v952 = vmax.f32 %v632, %v888
        %v953 = vmax.f32 %v633, %v889
        %v954 = vmax.f32 %v634, %v890
        %v955 = vmax.f32 %v635, %v891
        %v956 = vmax.f32 %v636, %v892
        %v957 = vmax.f32 %v637, %v893
        %v958 = vmax.f32 %v638, %v894
        %v959 = vmax.f32 %v639, %v895
        %v960 = vmax.f32 %v640, %v896
        %v961 = vmax.f32 %v641, %v897
        %v1026 = vrot.slane %v898, 7
        %v1027 = vrot.slane %v899, 6
        %vm1028 = vcmask 1042434
        %v1029 = vsel %vm1028, %v1027, %v1026
        %v1030 = vrot.slane %v900, 5
        %vm1031 = vcmask 1043459
        %v1032 = vsel %vm1031, %v1030, %v1029
        %v1033 = vrot.slane %v901, 4
        %vm1034 = vcmask 1044484
        %v1035 = vsel %vm1034, %v1033, %v1032
        %v1036 = vrot.slane %v902, 3
        %vm1037 = vcmask 1045509
        %v1038 = vsel %vm1037, %v1036, %v1035
        %v1039 = vrot.slane %v903, 2
        %vm1040 = vcmask 1046534
        %v1041 = vsel %vm1040, %v1039, %v1038
        %v1042 = vrot.slane %v904, 1
        %vm1043 = vcmask 1047559
        %v1044 = vsel %vm1043, %v1042, %v1041
        %v1045 = vrot.slane %v906, 7
        %v1046 = vrot.slane %v907, 6
        %v1047 = vsel %vm1028, %v1046, %v1045
        %v1048 = vrot.slane %v908, 5
        %v1049 = vsel %vm1031, %v1048, %v1047
        %v1050 = vrot.slane %v909, 4
        %v1051 = vsel %vm1034, %v1050, %v1049
        %v1052 = vrot.slane %v910, 3
        %v1053 = vsel %vm1037, %v1052, %v1051
        %v1054 = vrot.slane %v911, 2
        %v1055 = vsel %vm1040, %v1054, %v1053
        %v1056 = vrot.slane %v912, 1
        %v1057 = vsel %vm1043, %v1056, %v1055
        %v1058 = vrot.slane %v914, 7
        %v1059 = vrot.slane %v915, 6
        %v1060 = vsel %vm1028, %v1059, %v1058
        %v1061 = vrot.slane %v916, 5
        %v1062 = vsel %vm1031, %v1061, %v1060
        %v1063 = vrot.slane %v917, 4
        %v1064 = vsel %vm1034, %v1063, %v1062
        %v1065 = vrot.slane %v918, 3
        %v1066 = vsel %vm1037, %v1065, %v1064
        %v1067 = vrot.slane %v919, 2
        %v1068 = vsel %vm1040, %v1067, %v1066
        %v1069 = vrot.slane %v920, 1
        %v1070 = vsel %vm1043, %v1069, %v1068
        %v1071 = vrot.slane %v922, 7
        %v1072 = vrot.slane %v923, 6
        %v1073 = vsel %vm1028, %v1072, %v1071
        %v1074 = vrot.slane %v924, 5
        %v1075 = vsel %vm1031, %v1074, %v1073
        %v1076 = vrot.slane %v925, 4
        %v1077 = vsel %vm1034, %v1076, %v1075
        %v1078 = vrot.slane %v926, 3
        %v1079 = vsel %vm1037, %v1078, %v1077
        %v1080 = vrot.slane %v927, 2
        %v1081 = vsel %vm1040, %v1080, %v1079
        %v1082 = vrot.slane %v928, 1
        %v1083 = vsel %vm1043, %v1082, %v1081
        %v1084 = vrot.slane %v930, 7
        %v1085 = vrot.slane %v931, 6
        %v1086 = vsel %vm1028, %v1085, %v1084
        %v1087 = vrot.slane %v932, 5
        %v1088 = vsel %vm1031, %v1087, %v1086
        %v1089 = vrot.slane %v933, 4
        %v1090 = vsel %vm1034, %v1089, %v1088
        %v1091 = vrot.slane %v934, 3
        %v1092 = vsel %vm1037, %v1091, %v1090
        %v1093 = vrot.slane %v935, 2
        %v1094 = vsel %vm1040, %v1093, %v1092
        %v1095 = vrot.slane %v936, 1
        %v1096 = vsel %vm1043, %v1095, %v1094
        %v1097 = vrot.slane %v938, 7
        %v1098 = vrot.slane %v939, 6
        %v1099 = vsel %vm1028, %v1098, %v1097
        %v1100 = vrot.slane %v940, 5
        %v1101 = vsel %vm1031, %v1100, %v1099
        %v1102 = vrot.slane %v941, 4
        %v1103 = vsel %vm1034, %v1102, %v1101
        %v1104 = vrot.slane %v942, 3
        %v1105 = vsel %vm1037, %v1104, %v1103
        %v1106 = vrot.slane %v943, 2
        %v1107 = vsel %vm1040, %v1106, %v1105
        %v1108 = vrot.slane %v944, 1
        %v1109 = vsel %vm1043, %v1108, %v1107
        %v1110 = vrot.slane %v946, 7
        %v1111 = vrot.slane %v947, 6
        %v1112 = vsel %vm1028, %v1111, %v1110
        %v1113 = vrot.slane %v948, 5
        %v1114 = vsel %vm1031, %v1113, %v1112
        %v1115 = vrot.slane %v949, 4
        %v1116 = vsel %vm1034, %v1115, %v1114
        %v1117 = vrot.slane %v950, 3
        %v1118 = vsel %vm1037, %v1117, %v1116
        %v1119 = vrot.slane %v951, 2
        %v1120 = vsel %vm1040, %v1119, %v1118
        %v1121 = vrot.slane %v952, 1
        %v1122 = vsel %vm1043, %v1121, %v1120
        %v1123 = vrot.slane %v954, 7
        %v1124 = vrot.slane %v955, 6
        %v1125 = vsel %vm1028, %v1124, %v1123
        %v1126 = vrot.slane %v956, 5
        %v1127 = vsel %vm1031, %v1126, %v1125
        %v1128 = vrot.slane %v957, 4
        %v1129 = vsel %vm1034, %v1128, %v1127
        %v1130 = vrot.slane %v958, 3
        %v1131 = vsel %vm1037, %v1130, %v1129
        %v1132 = vrot.slane %v959, 2
        %v1133 = vsel %vm1040, %v1132, %v1131
        %v1134 = vrot.slane %v960, 1
        %v1135 = vsel %vm1043, %v1134, %v1133
        %vm1152 = vcmask 1040384
        %v1153 = vsel %vm1152, 0.0, %v1044
        %v1154 = vsel %vm1152, 0.0, %v1057
        %v1155 = vsel %vm1152, 0.0, %v1070
        %v1156 = vsel %vm1152, 0.0, %v1083
        %v1157 = vsel %vm1152, 0.0, %v1096
        %v1158 = vsel %vm1152, 0.0, %v1109
        %v1159 = vsel %vm1152, 0.0, %v1122
        %v1160 = vsel %vm1152, 0.0, %v1135
        %v1161 = vsel %vm1152, %v905, 0.0
        %v1162 = vsel %vm1152, %v913, 0.0
        %v1163 = vsel %vm1152, %v921, 0.0
        %v1164 = vsel %vm1152, %v929, 0.0
        %v1165 = vsel %vm1152, %v937, 0.0
        %v1166 = vsel %vm1152, %v945, 0.0
        %v1167 = vsel %vm1152, %v953, 0.0
        %v1168 = vsel %vm1152, %v961, 0.0
        %vm1169 = vcmask 31744
        %1170 = vst.msk [vmem:[#allocation2] sm:$0xff] %vm1169, 0.0
        %vm1171 = vcmask 25600
        %1172 = vst.msk [vmem:[#allocation2 + $0x8] sm:$0x3] %vm1171, 0.0
        %1173 = vst.msk [vmem:[#allocation2 + $0x10] sm:$0xff] %vm1169, %v1153
        %1174 = vst.msk [vmem:[#allocation2 + $0x18] sm:$0x3] %vm1171, %v1161
        %1175 = vst.msk [vmem:[#allocation2 + $0x20] sm:$0xff] %vm1169, %v1154
        %1176 = vst.msk [vmem:[#allocation2 + $0x28] sm:$0x3] %vm1171, %v1162
        %1177 = vst.msk [vmem:[#allocation2 + $0x30] sm:$0xff] %vm1169, %v1155
        %1178 = vst.msk [vmem:[#allocation2 + $0x38] sm:$0x3] %vm1171, %v1163
        %1179 = vst.msk [vmem:[#allocation2 + $0x40] sm:$0xff] %vm1169, %v1156
        %1180 = vst.msk [vmem:[#allocation2 + $0x48] sm:$0x3] %vm1171, %v1164
        %1181 = vst.msk [vmem:[#allocation2 + $0x50] sm:$0xff] %vm1169, %v1157
        %1182 = vst.msk [vmem:[#allocation2 + $0x58] sm:$0x3] %vm1171, %v1165
        %1183 = vst.msk [vmem:[#allocation2 + $0x60] sm:$0xff] %vm1169, %v1158
        %1184 = vst.msk [vmem:[#allocation2 + $0x68] sm:$0x3] %vm1171, %v1166
        %1185 = vst.msk [vmem:[#allocation2 + $0x70] sm:$0xff] %vm1169, %v1159
        %1186 = vst.msk [vmem:[#allocation2 + $0x78] sm:$0x3] %vm1171, %v1167
        %1187 = vst.msk [vmem:[#allocation2 + $0x80] sm:$0xff] %vm1169, %v1160
        %1188 = vst.msk [vmem:[#allocation2 + $0x88] sm:$0x3] %vm1171, %v1168
        %1189 = vst.msk [vmem:[#allocation2 + $0x90] sm:$0xff] %vm1169, 0.0
        %1190 = vst.msk [vmem:[#allocation2 + $0x98] sm:$0x3] %vm1171, 0.0
      $region32: #{down_block.3} parent=27 // pred_fallthru
        _
      %s1191 = smul.u32 %s21, 8
      %s1192 = smul.u32 %s1191, 16
      %s1193 = scalar_lea.vmem [#allocation2], %s1192
      %v1194 = vld [vmem:[%s1193] sm:$0xff]
      %v1195 = vld [vmem:[%s1193 + $0x8] sm:$0x3]
      %v1196 = vld [vmem:[%s1193 + $0x10] sm:$0xff]
      %v1197 = vld [vmem:[%s1193 + $0x18] sm:$0x3]
      %v1198 = vld [vmem:[%s1193 + $0x20] sm:$0xff]
      %v1199 = vld [vmem:[%s1193 + $0x28] sm:$0x3]
      %v1200 = vld [vmem:[%s1193 + $0x30] sm:$0xff]
      %v1201 = vld [vmem:[%s1193 + $0x38] sm:$0x3]
      %v1202 = vld [vmem:[%s1193 + $0x40] sm:$0xff]
      %v1203 = vld [vmem:[%s1193 + $0x48] sm:$0x3]
      %v1204 = vld [vmem:[%s1193 + $0x50] sm:$0xff]
      %v1205 = vld [vmem:[%s1193 + $0x58] sm:$0x3]
      %v1206 = vld [vmem:[%s1193 + $0x60] sm:$0xff]
      %v1207 = vld [vmem:[%s1193 + $0x68] sm:$0x3]
      %v1208 = vld [vmem:[%s1193 + $0x70] sm:$0xff]
      %v1209 = vld [vmem:[%s1193 + $0x78] sm:$0x3]
      %s1210 = sadd.s32 %s1191, 1
      %s1211 = smul.u32 %s1210, 16
      %s1212 = scalar_lea.vmem [#allocation2], %s1211
      %v1213 = vld [vmem:[%s1212] sm:$0xff]
      %v1214 = vld [vmem:[%s1212 + $0x8] sm:$0x3]
      %v1215 = vld [vmem:[%s1212 + $0x10] sm:$0xff]
      %v1216 = vld [vmem:[%s1212 + $0x18] sm:$0x3]
      %v1217 = vld [vmem:[%s1212 + $0x20] sm:$0xff]
      %v1218 = vld [vmem:[%s1212 + $0x28] sm:$0x3]
      %v1219 = vld [vmem:[%s1212 + $0x30] sm:$0xff]
      %v1220 = vld [vmem:[%s1212 + $0x38] sm:$0x3]
      %v1221 = vld [vmem:[%s1212 + $0x40] sm:$0xff]
      %v1222 = vld [vmem:[%s1212 + $0x48] sm:$0x3]
      %v1223 = vld [vmem:[%s1212 + $0x50] sm:$0xff]
      %v1224 = vld [vmem:[%s1212 + $0x58] sm:$0x3]
      %v1225 = vld [vmem:[%s1212 + $0x60] sm:$0xff]
      %v1226 = vld [vmem:[%s1212 + $0x68] sm:$0x3]
      %v1227 = vld [vmem:[%s1212 + $0x70] sm:$0xff]
      %v1228 = vld [vmem:[%s1212 + $0x78] sm:$0x3]
      %s1229 = sadd.s32 %s1191, 2
      %s1230 = smul.u32 %s1229, 16
      %s1231 = scalar_lea.vmem [#allocation2], %s1230
      %v1232 = vld [vmem:[%s1231] sm:$0xff]
      %v1233 = vld [vmem:[%s1231 + $0x8] sm:$0x3]
      %v1234 = vld [vmem:[%s1231 + $0x10] sm:$0xff]
      %v1235 = vld [vmem:[%s1231 + $0x18] sm:$0x3]
      %v1236 = vld [vmem:[%s1231 + $0x20] sm:$0xff]
      %v1237 = vld [vmem:[%s1231 + $0x28] sm:$0x3]
      %v1238 = vld [vmem:[%s1231 + $0x30] sm:$0xff]
      %v1239 = vld [vmem:[%s1231 + $0x38] sm:$0x3]
      %v1240 = vld [vmem:[%s1231 + $0x40] sm:$0xff]
      %v1241 = vld [vmem:[%s1231 + $0x48] sm:$0x3]
      %v1242 = vld [vmem:[%s1231 + $0x50] sm:$0xff]
      %v1243 = vld [vmem:[%s1231 + $0x58] sm:$0x3]
      %v1244 = vld [vmem:[%s1231 + $0x60] sm:$0xff]
      %v1245 = vld [vmem:[%s1231 + $0x68] sm:$0x3]
      %v1246 = vld [vmem:[%s1231 + $0x70] sm:$0xff]
      %v1247 = vld [vmem:[%s1231 + $0x78] sm:$0x3]
      %vm1264 = vcmask 1046528
      %v1265 = vrot.slane %v1194, 1
      %v1266 = vrot.slane %v1195, 1
      %v1267 = vsel %vm1264, %v1265, %v1266
      %v1268 = vrot.slane %v1196, 1
      %v1269 = vrot.slane %v1197, 1
      %v1270 = vsel %vm1264, %v1268, %v1269
      %v1271 = vrot.slane %v1198, 1
      %v1272 = vrot.slane %v1199, 1
      %v1273 = vsel %vm1264, %v1271, %v1272
      %v1274 = vrot.slane %v1200, 1
      %v1275 = vrot.slane %v1201, 1
      %v1276 = vsel %vm1264, %v1274, %v1275
      %v1277 = vrot.slane %v1202, 1
      %v1278 = vrot.slane %v1203, 1
      %v1279 = vsel %vm1264, %v1277, %v1278
      %v1280 = vrot.slane %v1204, 1
      %v1281 = vrot.slane %v1205, 1
      %v1282 = vsel %vm1264, %v1280, %v1281
      %v1283 = vrot.slane %v1206, 1
      %v1284 = vrot.slane %v1207, 1
      %v1285 = vsel %vm1264, %v1283, %v1284
      %v1286 = vrot.slane %v1208, 1
      %v1287 = vrot.slane %v1209, 1
      %v1288 = vsel %vm1264, %v1286, %v1287
      %1289 = vrot.lane.b32.xlu0 %v1267, 4
      %v1290 = vpop.permute.xlu0 %1289
      %1291 = vrot.lane.b32.xlu0 %v1270, 4
      %v1292 = vpop.permute.xlu0 %1291
      %1293 = vrot.lane.b32.xlu0 %v1273, 4
      %v1294 = vpop.permute.xlu0 %1293
      %1295 = vrot.lane.b32.xlu0 %v1276, 4
      %v1296 = vpop.permute.xlu0 %1295
      %1297 = vrot.lane.b32.xlu0 %v1279, 4
      %v1298 = vpop.permute.xlu0 %1297
      %1299 = vrot.lane.b32.xlu0 %v1282, 4
      %v1300 = vpop.permute.xlu0 %1299
      %1301 = vrot.lane.b32.xlu0 %v1285, 4
      %v1302 = vpop.permute.xlu0 %1301
      %1303 = vrot.lane.b32.xlu0 %v1288, 4
      %v1304 = vpop.permute.xlu0 %1303
      %vm1313 = vcmask 1045504
      %v1314 = vrot.slane %v1194, 2
      %v1315 = vrot.slane %v1195, 2
      %v1316 = vsel %vm1313, %v1314, %v1315
      %v1317 = vrot.slane %v1196, 2
      %v1318 = vrot.slane %v1197, 2
      %v1319 = vsel %vm1313, %v1317, %v1318
      %v1320 = vrot.slane %v1198, 2
      %v1321 = vrot.slane %v1199, 2
      %v1322 = vsel %vm1313, %v1320, %v1321
      %v1323 = vrot.slane %v1200, 2
      %v1324 = vrot.slane %v1201, 2
      %v1325 = vsel %vm1313, %v1323, %v1324
      %v1326 = vrot.slane %v1202, 2
      %v1327 = vrot.slane %v1203, 2
      %v1328 = vsel %vm1313, %v1326, %v1327
      %v1329 = vrot.slane %v1204, 2
      %v1330 = vrot.slane %v1205, 2
      %v1331 = vsel %vm1313, %v1329, %v1330
      %v1332 = vrot.slane %v1206, 2
      %v1333 = vrot.slane %v1207, 2
      %v1334 = vsel %vm1313, %v1332, %v1333
      %v1335 = vrot.slane %v1208, 2
      %v1336 = vrot.slane %v1209, 2
      %v1337 = vsel %vm1313, %v1335, %v1336
      %1338 = vrot.lane.b32.xlu0 %v1316, 8
      %v1339 = vpop.permute.xlu0 %1338
      %1340 = vrot.lane.b32.xlu0 %v1319, 8
      %v1341 = vpop.permute.xlu0 %1340
      %1342 = vrot.lane.b32.xlu0 %v1322, 8
      %v1343 = vpop.permute.xlu0 %1342
      %1344 = vrot.lane.b32.xlu0 %v1325, 8
      %v1345 = vpop.permute.xlu0 %1344
      %1346 = vrot.lane.b32.xlu0 %v1328, 8
      %v1347 = vpop.permute.xlu0 %1346
      %1348 = vrot.lane.b32.xlu0 %v1331, 8
      %v1349 = vpop.permute.xlu0 %1348
      %1350 = vrot.lane.b32.xlu0 %v1334, 8
      %v1351 = vpop.permute.xlu0 %1350
      %1352 = vrot.lane.b32.xlu0 %v1337, 8
      %v1353 = vpop.permute.xlu0 %1352
      %1370 = vrot.lane.b32.xlu0 %v1213, 12
      %v1371 = vpop.permute.xlu0 %1370
      %1372 = vrot.lane.b32.xlu0 %v1215, 12
      %v1373 = vpop.permute.xlu0 %1372
      %1374 = vrot.lane.b32.xlu0 %v1217, 12
      %v1375 = vpop.permute.xlu0 %1374
      %1376 = vrot.lane.b32.xlu0 %v1219, 12
      %v1377 = vpop.permute.xlu0 %1376
      %1378 = vrot.lane.b32.xlu0 %v1221, 12
      %v1379 = vpop.permute.xlu0 %1378
      %1380 = vrot.lane.b32.xlu0 %v1223, 12
      %v1381 = vpop.permute.xlu0 %1380
      %1382 = vrot.lane.b32.xlu0 %v1225, 12
      %v1383 = vpop.permute.xlu0 %1382
      %1384 = vrot.lane.b32.xlu0 %v1227, 12
      %v1385 = vpop.permute.xlu0 %1384
      %v1402 = vrot.slane %v1213, 1
      %v1403 = vrot.slane %v1214, 1
      %v1404 = vsel %vm1264, %v1402, %v1403
      %v1405 = vrot.slane %v1215, 1
      %v1406 = vrot.slane %v1216, 1
      %v1407 = vsel %vm1264, %v1405, %v1406
      %v1408 = vrot.slane %v1217, 1
      %v1409 = vrot.slane %v1218, 1
      %v1410 = vsel %vm1264, %v1408, %v1409
      %v1411 = vrot.slane %v1219, 1
      %v1412 = vrot.slane %v1220, 1
      %v1413 = vsel %vm1264, %v1411, %v1412
      %v1414 = vrot.slane %v1221, 1
      %v1415 = vrot.slane %v1222, 1
      %v1416 = vsel %vm1264, %v1414, %v1415
      %v1417 = vrot.slane %v1223, 1
      %v1418 = vrot.slane %v1224, 1
      %v1419 = vsel %vm1264, %v1417, %v1418
      %v1420 = vrot.slane %v1225, 1
      %v1421 = vrot.slane %v1226, 1
      %v1422 = vsel %vm1264, %v1420, %v1421
      %v1423 = vrot.slane %v1227, 1
      %v1424 = vrot.slane %v1228, 1
      %v1425 = vsel %vm1264, %v1423, %v1424
      %1426 = vrot.lane.b32.xlu0 %v1404, 16
      %v1427 = vpop.permute.xlu0 %1426
      %1428 = vrot.lane.b32.xlu0 %v1407, 16
      %v1429 = vpop.permute.xlu0 %1428
      %1430 = vrot.lane.b32.xlu0 %v1410, 16
      %v1431 = vpop.permute.xlu0 %1430
      %1432 = vrot.lane.b32.xlu0 %v1413, 16
      %v1433 = vpop.permute.xlu0 %1432
      %1434 = vrot.lane.b32.xlu0 %v1416, 16
      %v1435 = vpop.permute.xlu0 %1434
      %1436 = vrot.lane.b32.xlu0 %v1419, 16
      %v1437 = vpop.permute.xlu0 %1436
      %1438 = vrot.lane.b32.xlu0 %v1422, 16
      %v1439 = vpop.permute.xlu0 %1438
      %1440 = vrot.lane.b32.xlu0 %v1425, 16
      %v1441 = vpop.permute.xlu0 %1440
      %v1450 = vrot.slane %v1213, 2
      %v1451 = vrot.slane %v1214, 2
      %v1452 = vsel %vm1313, %v1450, %v1451
      %v1453 = vrot.slane %v1215, 2
      %v1454 = vrot.slane %v1216, 2
      %v1455 = vsel %vm1313, %v1453, %v1454
      %v1456 = vrot.slane %v1217, 2
      %v1457 = vrot.slane %v1218, 2
      %v1458 = vsel %vm1313, %v1456, %v1457
      %v1459 = vrot.slane %v1219, 2
      %v1460 = vrot.slane %v1220, 2
      %v1461 = vsel %vm1313, %v1459, %v1460
      %v1462 = vrot.slane %v1221, 2
      %v1463 = vrot.slane %v1222, 2
      %v1464 = vsel %vm1313, %v1462, %v1463
      %v1465 = vrot.slane %v1223, 2
      %v1466 = vrot.slane %v1224, 2
      %v1467 = vsel %vm1313, %v1465, %v1466
      %v1468 = vrot.slane %v1225, 2
      %v1469 = vrot.slane %v1226, 2
      %v1470 = vsel %vm1313, %v1468, %v1469
      %v1471 = vrot.slane %v1227, 2
      %v1472 = vrot.slane %v1228, 2
      %v1473 = vsel %vm1313, %v1471, %v1472
      %1474 = vrot.lane.b32.xlu0 %v1452, 20
      %v1475 = vpop.permute.xlu0 %1474
      %1476 = vrot.lane.b32.xlu0 %v1455, 20
      %v1477 = vpop.permute.xlu0 %1476
      %1478 = vrot.lane.b32.xlu0 %v1458, 20
      %v1479 = vpop.permute.xlu0 %1478
      %1480 = vrot.lane.b32.xlu0 %v1461, 20
      %v1481 = vpop.permute.xlu0 %1480
      %1482 = vrot.lane.b32.xlu0 %v1464, 20
      %v1483 = vpop.permute.xlu0 %1482
      %1484 = vrot.lane.b32.xlu0 %v1467, 20
      %v1485 = vpop.permute.xlu0 %1484
      %1486 = vrot.lane.b32.xlu0 %v1470, 20
      %v1487 = vpop.permute.xlu0 %1486
      %1488 = vrot.lane.b32.xlu0 %v1473, 20
      %v1489 = vpop.permute.xlu0 %1488
      %1506 = vrot.lane.b32.xlu0 %v1232, 24
      %v1507 = vpop.permute.xlu0 %1506
      %1508 = vrot.lane.b32.xlu0 %v1234, 24
      %v1509 = vpop.permute.xlu0 %1508
      %1510 = vrot.lane.b32.xlu0 %v1236, 24
      %v1511 = vpop.permute.xlu0 %1510
      %1512 = vrot.lane.b32.xlu0 %v1238, 24
      %v1513 = vpop.permute.xlu0 %1512
      %1514 = vrot.lane.b32.xlu0 %v1240, 24
      %v1515 = vpop.permute.xlu0 %1514
      %1516 = vrot.lane.b32.xlu0 %v1242, 24
      %v1517 = vpop.permute.xlu0 %1516
      %1518 = vrot.lane.b32.xlu0 %v1244, 24
      %v1519 = vpop.permute.xlu0 %1518
      %1520 = vrot.lane.b32.xlu0 %v1246, 24
      %v1521 = vpop.permute.xlu0 %1520
      %v1538 = vrot.slane %v1232, 1
      %v1539 = vrot.slane %v1233, 1
      %v1540 = vsel %vm1264, %v1538, %v1539
      %v1541 = vrot.slane %v1234, 1
      %v1542 = vrot.slane %v1235, 1
      %v1543 = vsel %vm1264, %v1541, %v1542
      %v1544 = vrot.slane %v1236, 1
      %v1545 = vrot.slane %v1237, 1
      %v1546 = vsel %vm1264, %v1544, %v1545
      %v1547 = vrot.slane %v1238, 1
      %v1548 = vrot.slane %v1239, 1
      %v1549 = vsel %vm1264, %v1547, %v1548
      %v1550 = vrot.slane %v1240, 1
      %v1551 = vrot.slane %v1241, 1
      %v1552 = vsel %vm1264, %v1550, %v1551
      %v1553 = vrot.slane %v1242, 1
      %v1554 = vrot.slane %v1243, 1
      %v1555 = vsel %vm1264, %v1553, %v1554
      %v1556 = vrot.slane %v1244, 1
      %v1557 = vrot.slane %v1245, 1
      %v1558 = vsel %vm1264, %v1556, %v1557
      %v1559 = vrot.slane %v1246, 1
      %v1560 = vrot.slane %v1247, 1
      %v1561 = vsel %vm1264, %v1559, %v1560
      %1562 = vrot.lane.b32.xlu0 %v1540, 28
      %v1563 = vpop.permute.xlu0 %1562
      %1564 = vrot.lane.b32.xlu0 %v1543, 28
      %v1565 = vpop.permute.xlu0 %1564
      %1566 = vrot.lane.b32.xlu0 %v1546, 28
      %v1567 = vpop.permute.xlu0 %1566
      %1568 = vrot.lane.b32.xlu0 %v1549, 28
      %v1569 = vpop.permute.xlu0 %1568
      %1570 = vrot.lane.b32.xlu0 %v1552, 28
      %v1571 = vpop.permute.xlu0 %1570
      %1572 = vrot.lane.b32.xlu0 %v1555, 28
      %v1573 = vpop.permute.xlu0 %1572
      %1574 = vrot.lane.b32.xlu0 %v1558, 28
      %v1575 = vpop.permute.xlu0 %1574
      %1576 = vrot.lane.b32.xlu0 %v1561, 28
      %v1577 = vpop.permute.xlu0 %1576
      %v1586 = vrot.slane %v1232, 2
      %v1587 = vrot.slane %v1233, 2
      %v1588 = vsel %vm1313, %v1586, %v1587
      %v1589 = vrot.slane %v1234, 2
      %v1590 = vrot.slane %v1235, 2
      %v1591 = vsel %vm1313, %v1589, %v1590
      %v1592 = vrot.slane %v1236, 2
      %v1593 = vrot.slane %v1237, 2
      %v1594 = vsel %vm1313, %v1592, %v1593
      %v1595 = vrot.slane %v1238, 2
      %v1596 = vrot.slane %v1239, 2
      %v1597 = vsel %vm1313, %v1595, %v1596
      %v1598 = vrot.slane %v1240, 2
      %v1599 = vrot.slane %v1241, 2
      %v1600 = vsel %vm1313, %v1598, %v1599
      %v1601 = vrot.slane %v1242, 2
      %v1602 = vrot.slane %v1243, 2
      %v1603 = vsel %vm1313, %v1601, %v1602
      %v1604 = vrot.slane %v1244, 2
      %v1605 = vrot.slane %v1245, 2
      %v1606 = vsel %vm1313, %v1604, %v1605
      %v1607 = vrot.slane %v1246, 2
      %v1608 = vrot.slane %v1247, 2
      %v1609 = vsel %vm1313, %v1607, %v1608
      %1610 = vrot.lane.b32.xlu0 %v1588, 32
      %v1611 = vpop.permute.xlu0 %1610
      %1612 = vrot.lane.b32.xlu0 %v1591, 32
      %v1613 = vpop.permute.xlu0 %1612
      %1614 = vrot.lane.b32.xlu0 %v1594, 32
      %v1615 = vpop.permute.xlu0 %1614
      %1616 = vrot.lane.b32.xlu0 %v1597, 32
      %v1617 = vpop.permute.xlu0 %1616
      %1618 = vrot.lane.b32.xlu0 %v1600, 32
      %v1619 = vpop.permute.xlu0 %1618
      %1620 = vrot.lane.b32.xlu0 %v1603, 32
      %v1621 = vpop.permute.xlu0 %1620
      %1622 = vrot.lane.b32.xlu0 %v1606, 32
      %v1623 = vpop.permute.xlu0 %1622
      %1624 = vrot.lane.b32.xlu0 %v1609, 32
      %v1625 = vpop.permute.xlu0 %1624
      %vm1634 = vcmask 31744
      %v1635 = vsel %vm1634, %v1194, %v1290
      %v1636 = vsel %vm1634, %v1196, %v1292
      %v1637 = vsel %vm1634, %v1198, %v1294
      %v1638 = vsel %vm1634, %v1200, %v1296
      %v1639 = vsel %vm1634, %v1202, %v1298
      %v1640 = vsel %vm1634, %v1204, %v1300
      %v1641 = vsel %vm1634, %v1206, %v1302
      %v1642 = vsel %vm1634, %v1208, %v1304
      %vm1643 = vcmask 64512
      %v1644 = vsel %vm1643, %v1635, %v1339
      %v1645 = vsel %vm1643, %v1636, %v1341
      %v1646 = vsel %vm1643, %v1637, %v1343
      %v1647 = vsel %vm1643, %v1638, %v1345
      %v1648 = vsel %vm1643, %v1639, %v1347
      %v1649 = vsel %vm1643, %v1640, %v1349
      %v1650 = vsel %vm1643, %v1641, %v1351
      %v1651 = vsel %vm1643, %v1642, %v1353
      %vm1652 = vcmask 97280
      %v1653 = vsel %vm1652, %v1644, %v1371
      %v1654 = vsel %vm1652, %v1645, %v1373
      %v1655 = vsel %vm1652, %v1646, %v1375
      %v1656 = vsel %vm1652, %v1647, %v1377
      %v1657 = vsel %vm1652, %v1648, %v1379
      %v1658 = vsel %vm1652, %v1649, %v1381
      %v1659 = vsel %vm1652, %v1650, %v1383
      %v1660 = vsel %vm1652, %v1651, %v1385
      %vm1661 = vcmask 130048
      %v1662 = vsel %vm1661, %v1653, %v1427
      %v1663 = vsel %vm1661, %v1654, %v1429
      %v1664 = vsel %vm1661, %v1655, %v1431
      %v1665 = vsel %vm1661, %v1656, %v1433
      %v1666 = vsel %vm1661, %v1657, %v1435
      %v1667 = vsel %vm1661, %v1658, %v1437
      %v1668 = vsel %vm1661, %v1659, %v1439
      %v1669 = vsel %vm1661, %v1660, %v1441
      %vm1670 = vcmask 162816
      %v1671 = vsel %vm1670, %v1662, %v1475
      %v1672 = vsel %vm1670, %v1663, %v1477
      %v1673 = vsel %vm1670, %v1664, %v1479
      %v1674 = vsel %vm1670, %v1665, %v1481
      %v1675 = vsel %vm1670, %v1666, %v1483
      %v1676 = vsel %vm1670, %v1667, %v1485
      %v1677 = vsel %vm1670, %v1668, %v1487
      %v1678 = vsel %vm1670, %v1669, %v1489
      %vm1679 = vcmask 195584
      %v1680 = vsel %vm1679, %v1671, %v1507
      %v1681 = vsel %vm1679, %v1672, %v1509
      %v1682 = vsel %vm1679, %v1673, %v1511
      %v1683 = vsel %vm1679, %v1674, %v1513
      %v1684 = vsel %vm1679, %v1675, %v1515
      %v1685 = vsel %vm1679, %v1676, %v1517
      %v1686 = vsel %vm1679, %v1677, %v1519
      %v1687 = vsel %vm1679, %v1678, %v1521
      %vm1688 = vcmask 228352
      %v1689 = vsel %vm1688, %v1680, %v1563
      %v1690 = vsel %vm1688, %v1681, %v1565
      %v1691 = vsel %vm1688, %v1682, %v1567
      %v1692 = vsel %vm1688, %v1683, %v1569
      %v1693 = vsel %vm1688, %v1684, %v1571
      %v1694 = vsel %vm1688, %v1685, %v1573
      %v1695 = vsel %vm1688, %v1686, %v1575
      %v1696 = vsel %vm1688, %v1687, %v1577
      %vm1697 = vcmask 261120
      %v1698 = vsel %vm1697, %v1689, %v1611
      %v1699 = vsel %vm1697, %v1690, %v1613
      %v1700 = vsel %vm1697, %v1691, %v1615
      %v1701 = vsel %vm1697, %v1692, %v1617
      %v1702 = vsel %vm1697, %v1693, %v1619
      %v1703 = vsel %vm1697, %v1694, %v1621
      %v1704 = vsel %vm1697, %v1695, %v1623
      %v1705 = vsel %vm1697, %v1696, %v1625
      %v1706 = vld [vmem:[%s1] sm:$0xff]
      %v1707 = vld [vmem:[%s1 + $0x8] sm:$0xff]
      %v1708 = vld [vmem:[%s1 + $0x10] sm:$0xff]
      %v1709 = vld [vmem:[%s1 + $0x18] sm:$0xff]
      %v1710 = vld [vmem:[%s1 + $0x20] sm:$0xf]
      %vm1711 = vcmask 293888
      %v1713 = vsel %vm1711, %v1698, 0
      %v1716 = vsel %vm1711, %v1699, 0
      %v1719 = vsel %vm1711, %v1700, 0
      %v1722 = vsel %vm1711, %v1701, 0
      %v1725 = vsel %vm1711, %v1702, 0
      %v1728 = vsel %vm1711, %v1703, 0
      %v1731 = vsel %vm1711, %v1704, 0
      %v1734 = vsel %vm1711, %v1705, 0
      %vm1736 = vcmask 1043456
      %v1738 = vsel %vm1736, %v1710, 0
      %1740 = vmatprep.subr.mxu0 0.0
      %1741 = vmatpush1.msra.mxu0 %v1706
      %1742 = vmatprep.subr.mxu0 0.0
      %1743 = vmatpush1.msra.mxu0 %v1707
      %1744 = vmatprep.subr.mxu0 0.0
      %1745 = vmatpush1.msra.mxu0 %v1708
      %1746 = vmatprep.subr.mxu0 0.0
      %1747 = vmatpush1.msra.mxu0 %v1709
      %1748 = vmatprep.subr.mxu0 0.0
      %1749 = vmatpush1.msra.mxu0 %v1738
      %1750 = vmatprep.subr.mxu0 0.0
      %1751 = vmatpush1.msra.mxu0 0.0
      %1752 = vmatprep.subr.mxu0 0.0
      %1753 = vmatpush1.msra.mxu0 0.0
      %1754 = vmatprep.subr.mxu0 0.0
      %1755 = vmatpush1.msra.mxu0 0.0
      %1756 = vmatprep.subr.mxu0 0.0
      %1757 = vmatpush1.msra.mxu0 0.0
      %1758 = vmatprep.subr.mxu0 0.0
      %1759 = vmatpush1.msra.mxu0 0.0
      %1760 = vmatprep.subr.mxu0 0.0
      %1761 = vmatpush1.msra.mxu0 0.0
      %1762 = vmatprep.subr.mxu0 0.0
      %1763 = vmatpush1.msra.mxu0 0.0
      %1764 = vmatprep.subr.mxu0 0.0
      %1765 = vmatpush1.msra.mxu0 0.0
      %1766 = vmatprep.subr.mxu0 0.0
      %1767 = vmatpush1.msra.mxu0 0.0
      %1768 = vmatprep.subr.mxu0 0.0
      %1769 = vmatpush1.msra.mxu0 0.0
      %1770 = vmatprep.subr.mxu0 0.0
      %1771 = vmatpush1.msra.mxu0 0.0
      %1772 = vmatprep.subr.mxu0 0.0
      %1773 = vmatpush1.msra.mxu0 0.0
      %1774 = vmatprep.subr.mxu0 0.0
      %1775 = vmatpush1.msra.mxu0 0.0
      %1776 = vmatprep.subr.mxu0 0.0
      %1777 = vmatpush1.msra.mxu0 0.0
      %1778 = vmatprep.subr.mxu0 0.0
      %1779 = vmatpush1.msra.mxu0 0.0
      %1780 = vmatprep.subr.mxu0 0.0
      %1781 = vmatpush1.msra.mxu0 0.0
      %1782 = vmatprep.subr.mxu0 0.0
      %1783 = vmatpush1.msra.mxu0 0.0
      %1784 = vmatprep.subr.mxu0 0.0
      %1785 = vmatpush1.msra.mxu0 0.0
      %1786 = vmatprep.subr.mxu0 0.0
      %1787 = vmatpush1.msra.mxu0 0.0
      %1788 = vmatprep.subr.mxu0 0.0
      %1789 = vmatpush1.msra.mxu0 0.0
      %1790 = vmatprep.subr.mxu0 0.0
      %1791 = vmatpush1.msra.mxu0 0.0
      %1792 = vmatprep.subr.mxu0 0.0
      %1793 = vmatpush1.msra.mxu0 0.0
      %1794 = vmatprep.subr.mxu0 0.0
      %1795 = vmatpush1.msra.mxu0 0.0
      %1796 = vmatprep.subr.mxu0 0.0
      %1797 = vmatpush1.msra.mxu0 0.0
      %1798 = vmatprep.subr.mxu0 0.0
      %1799 = vmatpush1.msra.mxu0 0.0
      %1800 = vmatprep.subr.mxu0 0.0
      %1801 = vmatpush1.msra.mxu0 0.0
      %1802 = vmatprep.subr.mxu0 0.0
      %1803 = vmatpush1.msra.mxu0 0.0
      %1804 = vmatprep.mubr.f32.mxu0 0.0
      %1805 = vmatmul.mubr.f32.gmra.mrb[0].mxu0 %v1713
      %v1806 = vpop.f32.mrb[0].mxu0
      %v1807 = vadd.f32 0.0, %v1806
      %v1808 = vpop.f32.mrb[0].mxu0
      %1809 = vmatprep.mubr.f32.mxu0 0.0
      %1810 = vmatmul.mubr.f32.gmra.mrb[0].mxu0 %v1716
      %v1811 = vpop.f32.mrb[0].mxu0
      %v1812 = vadd.f32 0.0, %v1811
      %v1813 = vpop.f32.mrb[0].mxu0
      %1814 = vmatprep.mubr.f32.mxu0 0.0
      %1815 = vmatmul.mubr.f32.gmra.mrb[0].mxu0 %v1719
      %v1816 = vpop.f32.mrb[0].mxu0
      %v1817 = vadd.f32 0.0, %v1816
      %v1818 = vpop.f32.mrb[0].mxu0
      %1819 = vmatprep.mubr.f32.mxu0 0.0
      %1820 = vmatmul.mubr.f32.gmra.mrb[0].mxu0 %v1722
      %v1821 = vpop.f32.mrb[0].mxu0
      %v1822 = vadd.f32 0.0, %v1821
      %v1823 = vpop.f32.mrb[0].mxu0
      %1824 = vmatprep.mubr.f32.mxu0 0.0
      %1825 = vmatmul.mubr.f32.gmra.mrb[0].mxu0 %v1725
      %v1826 = vpop.f32.mrb[0].mxu0
      %v1827 = vadd.f32 0.0, %v1826
      %v1828 = vpop.f32.mrb[0].mxu0
      %1829 = vmatprep.mubr.f32.mxu0 0.0
      %1830 = vmatmul.mubr.f32.gmra.mrb[0].mxu0 %v1728
      %v1831 = vpop.f32.mrb[0].mxu0
      %v1832 = vadd.f32 0.0, %v1831
      %v1833 = vpop.f32.mrb[0].mxu0
      %1834 = vmatprep.mubr.f32.mxu0 0.0
      %1835 = vmatmul.mubr.f32.gmra.mrb[0].mxu0 %v1731
      %v1836 = vpop.f32.mrb[0].mxu0
      %v1837 = vadd.f32 0.0, %v1836
      %v1838 = vpop.f32.mrb[0].mxu0
      %1839 = vmatprep.mubr.f32.mxu0 0.0
      %1840 = vmatmul.mubr.f32.gmra.mrb[0].mxu0 %v1734
      %v1841 = vpop.f32.mrb[0].mxu0
      %v1842 = vadd.f32 0.0, %v1841
      %v1843 = vpop.f32.mrb[0].mxu0
      %1844 = vdwg.mxu0
      %1845 = vst.msk [vmem:[%s240] sm:$0xff] %vm1643, %v1807
      %1846 = vst.msk [vmem:[%s240 + $0x8] sm:$0xff] %vm1643, %v1812
      %1847 = vst.msk [vmem:[%s240 + $0x10] sm:$0xff] %vm1643, %v1817
      %1848 = vst.msk [vmem:[%s240 + $0x18] sm:$0xff] %vm1643, %v1822
      %1849 = vst.msk [vmem:[%s240 + $0x20] sm:$0xff] %vm1643, %v1827
      %1850 = vst.msk [vmem:[%s240 + $0x28] sm:$0xff] %vm1643, %v1832
      %1851 = vst.msk [vmem:[%s240 + $0x30] sm:$0xff] %vm1643, %v1837
      %1852 = vst.msk [vmem:[%s240 + $0x38] sm:$0xff] %vm1643, %v1842
      %v1853 = vsel %vm1643, %v1807, 0.0
      %v1854 = vsel %vm1643, %v1812, 0.0
      %v1855 = vadd.f32 %v1853, %v1854
      %v1856 = vsel %vm1643, %v1817, 0.0
      %v1857 = vadd.f32 %v1855, %v1856
      %v1858 = vsel %vm1643, %v1822, 0.0
      %v1859 = vadd.f32 %v1857, %v1858
      %v1860 = vsel %vm1643, %v1827, 0.0
      %v1861 = vadd.f32 %v1859, %v1860
      %v1862 = vsel %vm1643, %v1832, 0.0
      %v1863 = vadd.f32 %v1861, %v1862
      %v1864 = vsel %vm1643, %v1837, 0.0
      %v1865 = vadd.f32 %v1863, %v1864
      %v1866 = vsel %vm1643, %v1842, 0.0
      %v1867 = vadd.f32 %v1865, %v1866
      %v1868 = vrot.slane %v1867, 4
      %v1869 = vadd.f32 %v1867, %v1868
      %v1870 = vrot.slane %v1869, 2
      %v1871 = vadd.f32 %v1869, %v1870
      %v1872 = vrot.slane %v1871, 1
      %v1873 = vadd.f32 %v1871, %v1872
      %vm1874 = vcmask 57344
      %1875 = vst.msk [vmem:[%s247] sm:$0x1] %vm1874, %v1873
      %v1876 = vmul.f32 %v1807, %v1807
      %v1877 = vmul.f32 %v1812, %v1812
      %v1878 = vmul.f32 %v1817, %v1817
      %v1879 = vmul.f32 %v1822, %v1822
      %v1880 = vmul.f32 %v1827, %v1827
      %v1881 = vmul.f32 %v1832, %v1832
      %v1882 = vmul.f32 %v1837, %v1837
      %v1883 = vmul.f32 %v1842, %v1842
      %v1884 = vsel %vm1643, %v1876, 0.0
      %v1885 = vsel %vm1643, %v1877, 0.0
      %v1886 = vadd.f32 %v1884, %v1885
      %v1887 = vsel %vm1643, %v1878, 0.0
      %v1888 = vadd.f32 %v1886, %v1887
      %v1889 = vsel %vm1643, %v1879, 0.0
      %v1890 = vadd.f32 %v1888, %v1889
      %v1891 = vsel %vm1643, %v1880, 0.0
      %v1892 = vadd.f32 %v1890, %v1891
      %v1893 = vsel %vm1643, %v1881, 0.0
      %v1894 = vadd.f32 %v1892, %v1893
      %v1895 = vsel %vm1643, %v1882, 0.0
      %v1896 = vadd.f32 %v1894, %v1895
      %v1897 = vsel %vm1643, %v1883, 0.0
      %v1898 = vadd.f32 %v1896, %v1897
      %v1899 = vrot.slane %v1898, 4
      %v1900 = vadd.f32 %v1898, %v1899
      %v1901 = vrot.slane %v1900, 2
      %v1902 = vadd.f32 %v1900, %v1901
      %v1903 = vrot.slane %v1902, 1
      %v1904 = vadd.f32 %v1902, %v1903
      %1905 = vst.msk [vmem:[%s253] sm:$0x1] %vm1874, %v1904
      %s1906 = smul.u32 8, %s21
      %p1907 = scmp.lt.s32.totalorder %s20, 1
      %s1908 = scalar_select %p1907, %s20, 1
      %p1909 = scmp.lt.s32.totalorder %s1906, 7
      %s1910 = scalar_select %p1909, %s1906, 7
      %s1911 = smul.addr %s1908, 8
      %s1912 = sadd.s32 %s1910, %s1911
      %s1913 = smul.addr %s1912, 8
      %s1914 = scalar_lea.vmem %s2, %s1913
      %p1915 = scmp.lt.s32.totalorder %s20, 1
      %s1916 = scalar_select %p1915, %s20, 1
      %p1917 = scmp.lt.s32.totalorder %s21, 0
      %s1918 = scalar_select %p1917, %s21, 0
      %s1919 = sadd.s32 %s1918, %s1916
      %s1920 = scalar_lea.vmem %s3, %s1919
      %p1921 = scmp.lt.s32.totalorder %s20, 1
      %s1922 = scalar_select %p1921, %s20, 1
      %p1923 = scmp.lt.s32.totalorder %s21, 0
      %s1924 = scalar_select %p1923, %s21, 0
      %s1925 = sadd.s32 %s1924, %s1922
      %s1926 = scalar_lea.vmem %s4, %s1925
      // Predicated region
      $region33: #{down_block.3} parent=27 // pred_check
        %p1927 = pneg %p95
      $region34: #{down_block.3} parent=27 // pred_check_branch
        %1929 = sbr.rel (%p1927) target = $region36
      $region35: #{down_block.3} parent=27 // pred_region
        %s1930 = smul.u32 8, %s21
      $region36: #{down_block.3} parent=27 // pred_fallthru
        _
      // Predicated region
      $region37: #{down_block.3} parent=27 // pred_check
        %p1931 = pneg %p123
      $region38: #{down_block.3} parent=27 // pred_check_branch
        %1933 = sbr.rel (%p1931) target = $region40
      $region39: #{down_block.3} parent=27 // pred_region
        _
      $region40: #{down_block.3} parent=27 // pred_fallthru
        _
      // Predicated region
      $region41: #{down_block.3} parent=27 // pred_check
        %p1934 = pneg %p151
      $region42: #{down_block.3} parent=27 // pred_check_branch
        %1936 = sbr.rel (%p1934) target = $region44
      $region43: #{down_block.3} parent=27 // pred_region
        _
      $region44: #{down_block.3} parent=27 // pred_fallthru
        _
    $region28: #{down_block.3} parent=5 // pred_fallthru
      _
    %p1937 = scmp.le.s32.totalorder 2, %s11
    // Predicated region
    $region45: #{down_block.3} parent=5 // pred_check
      %p1938 = pneg %p1937
    $region46: #{down_block.3} parent=5 // pred_check_branch
      %1940 = sbr.rel (%p1938) target = $region48
    $region47: #{down_block.3} parent=5 // pred_region
      %s1941 = ssub.s32 %s11, 2
      // Predicated region
      $region49: #{down_block.3} parent=47 // pred_check
        %p1942 = pneg %p101
      $region50: #{down_block.3} parent=47 // pred_check_branch
        %1944 = sbr.rel (%p1942) target = $region52
      $region51: #{down_block.3} parent=47 // pred_region
        %s1945 = smul.u32 8, %s23
        %p1946 = scmp.lt.s32.totalorder %s22, 1
        %s1947 = scalar_select %p1946, %s22, 1
        %p1948 = scmp.lt.s32.totalorder %s1945, 7
        %s1949 = scalar_select %p1948, %s1945, 7
        %s1950 = smul.addr %s1947, 8
        %s1951 = sadd.s32 %s1949, %s1950
        %s1952 = smul.addr %s1951, 8
        %s1953 = scalar_lea.vmem %s2, %s1952
      $region52: #{down_block.3} parent=47 // pred_fallthru
        _
      // Predicated region
      $region53: #{down_block.3} parent=47 // pred_check
        %p1954 = pneg %p129
      $region54: #{down_block.3} parent=47 // pred_check_branch
        %1956 = sbr.rel (%p1954) target = $region56
      $region55: #{down_block.3} parent=47 // pred_region
        %p1957 = scmp.lt.s32.totalorder %s22, 1
        %s1958 = scalar_select %p1957, %s22, 1
        %p1959 = scmp.lt.s32.totalorder %s23, 0
        %s1960 = scalar_select %p1959, %s23, 0
        %s1961 = sadd.s32 %s1960, %s1958
        %s1962 = scalar_lea.vmem %s3, %s1961
      $region56: #{down_block.3} parent=47 // pred_fallthru
        _
      // Predicated region
      $region57: #{down_block.3} parent=47 // pred_check
        %p1963 = pneg %p157
      $region58: #{down_block.3} parent=47 // pred_check_branch
        %1965 = sbr.rel (%p1963) target = $region60
      $region59: #{down_block.3} parent=47 // pred_region
        %p1966 = scmp.lt.s32.totalorder %s22, 1
        %s1967 = scalar_select %p1966, %s22, 1
        %p1968 = scmp.lt.s32.totalorder %s23, 0
        %s1969 = scalar_select %p1968, %s23, 0
        %s1970 = sadd.s32 %s1969, %s1967
        %s1971 = scalar_lea.vmem %s4, %s1970
      $region60: #{down_block.3} parent=47 // pred_fallthru
        _
    $region48: #{down_block.3} parent=5 // pred_fallthru
      _
  $region6: #{down_block.3} parent=0 // loop_footer
    %s15 = sadd.s32 1, %s11
  $region7: #{down_block.3} parent=0 // loop_footer_branch
    %10 = sbr.rel target = $region3
  $region8: #{down_block.3} parent=0 // loop_exit
    _

</llo_original>
